<compile_context>
chip_gen: v7x
topology: tpu7x:2x2x1
jax: 0.10.0
libtpu: 0.0.40
codegen_flags: <defaults>
</compile_context>

<pallas_src>
import jax
import jax.numpy as jnp
import numpy as np
from jax.experimental import pallas as pl
from jax.experimental.pallas import tpu as pltpu

PI = 3.141592653589793


def _ceil_to(x, m):
    return ((x + m - 1) // m) * m


def rotate_kernel(h_ref, r_ref, t_ref, o_ref, acc_ref):
    """Process one (TB, TD) tile of (triples x embedding-dim).

    Grid axis 0 = batch blocks ("parallel"), axis 1 = embedding-dim blocks
    ("arbitrary", reduction).  Partial row sums accumulate in the lane-dense
    (1, TB) VMEM scratch; the score is written on the last D block.
    """
    j = pl.program_id(1)

    @pl.when(j == 0)
    def _():
        acc_ref[...] = jnp.zeros_like(acc_ref)

    h_e = h_ref[...]             # (TB, TD)  real head embedding
    r_e = r_ref[...] * PI        # (TB, TD)  rotation phase
    t_e = t_ref[...]             # (TB, TD)  real tail embedding

    cos_r = jnp.cos(r_e)
    sin_r = jnp.sin(r_e)

    # h is purely real, so h * e^{i r} = (h*cos, h*sin); t is real.
    d_re = h_e * cos_r - t_e     # real(h ∘ r - t)
    d_im = h_e * sin_r           # imag(h ∘ r - t)

    # Per-element complex modulus (torch.norm over the size-2 axis), then the
    # partial sum over this D tile, accumulated lane-dense.
    modulus = jnp.sqrt(d_re * d_re + d_im * d_im)          # (TB, TD)
    acc_ref[...] += jnp.sum(modulus, axis=-1)[None, :]     # (1, TB)

    @pl.when(j == pl.num_programs(1) - 1)
    def _():
        o_ref[...] = -acc_ref[...]


def rotate_score(ent_table, rel_table, h, r, t):
    """Pallas implementation of RotatEModel.forward -> (B,) scores."""
    B = h.shape[0]
    D = ent_table.shape[1]

    # Pre-gather the embedding rows once (XLA gather); the kernel then streams
    # big rectangular tiles with normal BlockSpec double-buffering.
    h_e = jnp.take(ent_table, h, axis=0).astype(jnp.float32)
    r_e = jnp.take(rel_table, r, axis=0).astype(jnp.float32)
    t_e = jnp.take(ent_table, t, axis=0).astype(jnp.float32)

    # Batch tile: multiple of 128 so the (1, TB) score output is lane-dense
    # (unmasked stores) and the sublane dim is (8,)-aligned.
    TB = min(512, _ceil_to(B, 128))
    B_pad = _ceil_to(B, TB)

    # Embedding-dim tile: full D when it fits, otherwise pad/tile by 512.
    MAX_TD = 512
    if D <= MAX_TD:
        TD, D_pad = D, D
    else:
        TD = MAX_TD
        D_pad = _ceil_to(D, TD)

    def _pad(x):
        # Zero rows score 0 (discarded); zero columns contribute 0 to the sum.
        return jnp.pad(x, ((0, B_pad - B), (0, D_pad - D)))

    h_e, r_e, t_e = _pad(h_e), _pad(r_e), _pad(t_e)

    nb = B_pad // TB
    nd = D_pad // TD

    cost = pl.CostEstimate(
        flops=10 * B_pad * D_pad,
        transcendentals=3 * B_pad * D_pad,        # cos, sin, sqrt per element
        bytes_accessed=3 * B_pad * D_pad * 4 + B_pad * 4,
    )

    out = pl.pallas_call(
        rotate_kernel,
        grid_spec=pltpu.PrefetchScalarGridSpec(
            num_scalar_prefetch=0,
            grid=(nb, nd),
            in_specs=[
                pl.BlockSpec((TB, TD), lambda i, j: (i, j)),
                pl.BlockSpec((TB, TD), lambda i, j: (i, j)),
                pl.BlockSpec((TB, TD), lambda i, j: (i, j)),
            ],
            out_specs=pl.BlockSpec((1, TB), lambda i, j: (i, 0)),
            scratch_shapes=[pltpu.VMEM((1, TB), jnp.float32)],
        ),
        out_shape=jax.ShapeDtypeStruct((nb, TB), jnp.float32),
        compiler_params=pltpu.CompilerParams(
            dimension_semantics=("parallel", "arbitrary"),
            vmem_limit_bytes=32 * 1024 * 1024,
        ),
        cost_estimate=cost,
    )(h_e, r_e, t_e)

    return out.reshape(-1)[:B]   # (B,)


def rotate_score_ref(ent_table, rel_table, h, r, t):
    """Pure-JAX reference matching the PyTorch forward."""
    h_e = ent_table[h]
    r_e = rel_table[r] * PI
    t_e = ent_table[t]
    d_re = h_e * jnp.cos(r_e) - t_e
    d_im = h_e * jnp.sin(r_e)
    return -jnp.sum(jnp.sqrt(d_re * d_re + d_im * d_im), axis=-1)


if __name__ == "__main__":
    num_entities = 32
    num_relations = 8
    embedding_dim = 64
    batch = 8

    key = jax.random.PRNGKey(0)
    k_ent, k_rel, k_h, k_r, k_t = jax.random.split(key, 5)

    # nn.Embedding default init ~ N(0, 1), done deterministically in-script.
    ent_table = jax.random.normal(k_ent, (num_entities, embedding_dim), jnp.float32)
    rel_table = jax.random.normal(k_rel, (num_relations, embedding_dim), jnp.float32)

    h = jax.random.randint(k_h, (batch,), 0, num_entities, dtype=jnp.int32)
    r = jax.random.randint(k_r, (batch,), 0, num_relations, dtype=jnp.int32)
    t = jax.random.randint(k_t, (batch,), 0, num_entities, dtype=jnp.int32)

    score = jax.jit(rotate_score)(ent_table, rel_table, h, r, t)
    score = jax.block_until_ready(score)

    ref = rotate_score_ref(ent_table, rel_table, h, r, t)
    assert score.shape == (batch,)
    assert np.allclose(np.asarray(score), np.asarray(ref), rtol=1e-3, atol=1e-3), (
        "Pallas kernel does not match reference")

    print("KERNEL_OK")
</pallas_src>

<mosaic_0001>
module attributes {stable_mosaic.version = 11 : i64} {
  func.func @rotate_kernel(%arg0: i32, %arg1: i32, %arg2: memref<128x64xf32, #tpu.memory_space<vmem>>, %arg3: memref<128x64xf32, #tpu.memory_space<vmem>>, %arg4: memref<128x64xf32, #tpu.memory_space<vmem>>, %arg5: memref<1x128xf32, #tpu.memory_space<vmem>>, %arg6: memref<1x128xf32, #tpu.memory_space<vmem>>) attributes {dimension_semantics = [#tpu.dimension_semantics<parallel>, #tpu.dimension_semantics<arbitrary>], iteration_bounds = array<i64: 1, 1>, scalar_prefetch = 0 : i64, scratch_operands = 1 : i64, tpu.core_type = #tpu.core_type<tc>, window_params = [{transform_indices = @transform_0, window_bounds = array<i64: 128, 64>}, {transform_indices = @transform_1, window_bounds = array<i64: 128, 64>}, {transform_indices = @transform_2, window_bounds = array<i64: 128, 64>}, {transform_indices = @transform_3, window_bounds = array<i64: 1, 128>}]} {
    %c0_i32 = arith.constant 0 : i32
    %0 = arith.cmpi eq, %arg1, %c0_i32 : i32
    %1 = arith.extui %0 : i1 to i32
    %c0_i32_0 = arith.constant 0 : i32
    %2 = arith.cmpi ne, %1, %c0_i32_0 : i32
    scf.if %2 {
      %cst_13 = arith.constant 0.000000e+00 : f32
      %25 = vector.broadcast %cst_13 : f32 to vector<1x128xf32>
      %c0_14 = arith.constant 0 : index
      %c0_15 = arith.constant 0 : index
      %26 = vector.load %arg6[%c0_14, %c0_15] : memref<1x128xf32, #tpu.memory_space<vmem>>, vector<1x128xf32>
      tpu.vector_store %arg6[%c0_14, %c0_15], %25 {strides = array<i32>} : memref<1x128xf32, #tpu.memory_space<vmem>>, vector<1x128xf32>,
    } else {
    }
    %c0 = arith.constant 0 : index
    %c0_1 = arith.constant 0 : index
    %3 = vector.load %arg2[%c0, %c0_1] : memref<128x64xf32, #tpu.memory_space<vmem>>, vector<128x64xf32>
    %c0_2 = arith.constant 0 : index
    %c0_3 = arith.constant 0 : index
    %4 = vector.load %arg3[%c0_2, %c0_3] : memref<128x64xf32, #tpu.memory_space<vmem>>, vector<128x64xf32>
    %cst = arith.constant 3.14159274 : f32
    %5 = vector.broadcast %cst : f32 to vector<128x64xf32>
    %6 = arith.mulf %4, %5 : vector<128x64xf32>
    %c0_4 = arith.constant 0 : index
    %c0_5 = arith.constant 0 : index
    %7 = vector.load %arg4[%c0_4, %c0_5] : memref<128x64xf32, #tpu.memory_space<vmem>>, vector<128x64xf32>
    %8 = math.cos %6 : vector<128x64xf32>
    %9 = math.sin %6 : vector<128x64xf32>
    %10 = arith.mulf %3, %8 : vector<128x64xf32>
    %11 = arith.subf %10, %7 : vector<128x64xf32>
    %12 = arith.mulf %3, %9 : vector<128x64xf32>
    %13 = arith.mulf %11, %11 : vector<128x64xf32>
    %14 = arith.mulf %12, %12 : vector<128x64xf32>
    %15 = arith.addf %13, %14 : vector<128x64xf32>
    %16 = math.sqrt %15 : vector<128x64xf32>
    %c0_6 = arith.constant 0 : index
    %c0_7 = arith.constant 0 : index
    %17 = vector.load %arg6[%c0_6, %c0_7] : memref<1x128xf32, #tpu.memory_space<vmem>>, vector<1x128xf32>
    %cst_8 = arith.constant dense<0.000000e+00> : vector<128xf32>
    %18 = vector.multi_reduction <add>, %16, %cst_8 [1] : vector<128x64xf32> to vector<128xf32>
    %19 = vector.shape_cast %18 : vector<128xf32> to vector<1x128xf32>
    %20 = arith.addf %17, %19 : vector<1x128xf32>
    %c0_9 = arith.constant 0 : index
    %c0_10 = arith.constant 0 : index
    %21 = vector.load %arg6[%c0_9, %c0_10] : memref<1x128xf32, #tpu.memory_space<vmem>>, vector<1x128xf32>
    tpu.vector_store %arg6[%c0_9, %c0_10], %20 {strides = array<i32>} : memref<1x128xf32, #tpu.memory_space<vmem>>, vector<1x128xf32>,
    %c0_i32_11 = arith.constant 0 : i32
    %22 = arith.cmpi eq, %arg1, %c0_i32_11 : i32
    %23 = arith.extui %22 : i1 to i32
    %c0_i32_12 = arith.constant 0 : i32
    %24 = arith.cmpi ne, %23, %c0_i32_12 : i32
    scf.if %24 {
      %c0_13 = arith.constant 0 : index
      %c0_14 = arith.constant 0 : index
      %25 = vector.load %arg6[%c0_13, %c0_14] : memref<1x128xf32, #tpu.memory_space<vmem>>, vector<1x128xf32>
      %cst_15 = arith.constant 0.000000e+00 : f32
      %26 = vector.broadcast %cst_15 : f32 to vector<1x128xf32>
      %27 = arith.subf %26, %25 : vector<1x128xf32>
      %c0_16 = arith.constant 0 : index
      %c0_17 = arith.constant 0 : index
      %28 = vector.load %arg5[%c0_16, %c0_17] : memref<1x128xf32, #tpu.memory_space<vmem>>, vector<1x128xf32>
      tpu.vector_store %arg5[%c0_16, %c0_17], %27 {strides = array<i32>} : memref<1x128xf32, #tpu.memory_space<vmem>>, vector<1x128xf32>,
    } else {
    }
    return
  }
  func.func @transform_0(%arg0: i32, %arg1: i32) -> (i32, i32) {
    %c0_i32 = arith.constant 0 : i32
    return %arg0, %arg1 : i32, i32
  }
  func.func @transform_1(%arg0: i32, %arg1: i32) -> (i32, i32) {
    %c0_i32 = arith.constant 0 : i32
    return %arg0, %arg1 : i32, i32
  }
  func.func @transform_2(%arg0: i32, %arg1: i32) -> (i32, i32) {
    %c0_i32 = arith.constant 0 : i32
    return %arg0, %arg1 : i32, i32
  }
  func.func @transform_3(%arg0: i32, %arg1: i32) -> (i32, i32) {
    %c0_i32 = arith.constant 0 : i32
    %c0_i32_0 = arith.constant 0 : i32
    return %arg0, %c0_i32 : i32, i32
  }
}

</mosaic_0001>

<llo_original>
// kernel: rotate_score.1
$region0: #{rotate_score.1}
  #allocation0 [shape = 'u32[]', space=smem, size = 0x4, offset = 0x4, fixed_abs, tag = 'smem constant byte address 0x4 - core index']
  #allocation1 [shape = 'u32[144,128]{1,0:T(1,128)}', space=vmem, size = 0x12000, scoped, tag = 'internal scratch']
  #allocation2 [shape = 'f32[1,128]{1,0:T(1,128)}', space=vmem, size = 0x200, scoped, tag = 'scratch operand']
  %s0 = inlined_call_operand.vmem [shape: f32[128,64], index: 0, kind: input, shape index: {}]
  %s1 = inlined_call_operand.vmem [shape: f32[128,64], index: 1, kind: input, shape index: {}]
  %s2 = inlined_call_operand.vmem [shape: f32[128,64], index: 2, kind: input, shape index: {}]
  %s3 = inlined_call_operand.vmem [shape: f32[1,128], index: 3, kind: output, shape index: {}]
  %s4 = sld [smem:[#allocation0]]
  $region30: #{rotate_score.1} parent=0
    _
  %s6 = ssub.s32 1, %s4
  %s7 = scalar_select 0, %s6, %s4
  // Predicated region
  $region2: #{rotate_score.1} parent=0 // pred_check
    _
  $region3: #{rotate_score.1} parent=0 // pred_check_branch
    %9 = sbr.rel (0) target = $region5
  $region4: #{rotate_score.1} parent=0 // pred_region
    _
  $region5: #{rotate_score.1} parent=0 // pred_fallthru
    _
  // Predicated region
  $region6: #{rotate_score.1} parent=0 // pred_check
    _
  $region7: #{rotate_score.1} parent=0 // pred_check_branch
    %11 = sbr.rel (0) target = $region9
  $region8: #{rotate_score.1} parent=0 // pred_region
    _
  $region9: #{rotate_score.1} parent=0 // pred_fallthru
    _
  // Predicated region
  $region10: #{rotate_score.1} parent=0 // pred_check
    _
  $region11: #{rotate_score.1} parent=0 // pred_check_branch
    %13 = sbr.rel (0) target = $region13
  $region12: #{rotate_score.1} parent=0 // pred_region
    _
  $region13: #{rotate_score.1} parent=0 // pred_fallthru
    _
  %p14 = scmp.eq.s32.totalorder 0, 0
  // Predicated region
  $region14: #{rotate_score.1} parent=0 // pred_check
    %p15 = pneg %p14
  $region15: #{rotate_score.1} parent=0 // pred_check_branch
    %17 = sbr.rel (%p15) target = $region17
  $region16: #{rotate_score.1} parent=0 // pred_region
    %18 = vst [vmem:[#allocation2] sm:$0x1] 0.0
  $region17: #{rotate_score.1} parent=0 // pred_fallthru
    _
  %v19 = vld [vmem:[%s0] sm:$0xff]
  %v20 = vld [vmem:[%s0 + $0x8] sm:$0xff]
  %v21 = vld [vmem:[%s0 + $0x10] sm:$0xff]
  %v22 = vld [vmem:[%s0 + $0x18] sm:$0xff]
  %v23 = vld [vmem:[%s0 + $0x20] sm:$0xff]
  %v24 = vld [vmem:[%s0 + $0x28] sm:$0xff]
  %v25 = vld [vmem:[%s0 + $0x30] sm:$0xff]
  %v26 = vld [vmem:[%s0 + $0x38] sm:$0xff]
  %v27 = vld [vmem:[%s0 + $0x40] sm:$0xff]
  %v28 = vld [vmem:[%s0 + $0x48] sm:$0xff]
  %v29 = vld [vmem:[%s0 + $0x50] sm:$0xff]
  %v30 = vld [vmem:[%s0 + $0x58] sm:$0xff]
  %v31 = vld [vmem:[%s0 + $0x60] sm:$0xff]
  %v32 = vld [vmem:[%s0 + $0x68] sm:$0xff]
  %v33 = vld [vmem:[%s0 + $0x70] sm:$0xff]
  %v34 = vld [vmem:[%s0 + $0x78] sm:$0xff]
  %v35 = vld [vmem:[%s1] sm:$0xff]
  %v36 = vld [vmem:[%s1 + $0x8] sm:$0xff]
  %v37 = vld [vmem:[%s1 + $0x10] sm:$0xff]
  %v38 = vld [vmem:[%s1 + $0x18] sm:$0xff]
  %v39 = vld [vmem:[%s1 + $0x20] sm:$0xff]
  %v40 = vld [vmem:[%s1 + $0x28] sm:$0xff]
  %v41 = vld [vmem:[%s1 + $0x30] sm:$0xff]
  %v42 = vld [vmem:[%s1 + $0x38] sm:$0xff]
  %v43 = vld [vmem:[%s1 + $0x40] sm:$0xff]
  %v44 = vld [vmem:[%s1 + $0x48] sm:$0xff]
  %v45 = vld [vmem:[%s1 + $0x50] sm:$0xff]
  %v46 = vld [vmem:[%s1 + $0x58] sm:$0xff]
  %v47 = vld [vmem:[%s1 + $0x60] sm:$0xff]
  %v48 = vld [vmem:[%s1 + $0x68] sm:$0xff]
  %v49 = vld [vmem:[%s1 + $0x70] sm:$0xff]
  %v50 = vld [vmem:[%s1 + $0x78] sm:$0xff]
  %v51 = vmul.f32 %v35, 3.1415927
  %v52 = vmul.f32 %v36, 3.1415927
  %v53 = vmul.f32 %v37, 3.1415927
  %v54 = vmul.f32 %v38, 3.1415927
  %v55 = vmul.f32 %v39, 3.1415927
  %v56 = vmul.f32 %v40, 3.1415927
  %v57 = vmul.f32 %v41, 3.1415927
  %v58 = vmul.f32 %v42, 3.1415927
  %v59 = vmul.f32 %v43, 3.1415927
  %v60 = vmul.f32 %v44, 3.1415927
  %v61 = vmul.f32 %v45, 3.1415927
  %v62 = vmul.f32 %v46, 3.1415927
  %v63 = vmul.f32 %v47, 3.1415927
  %v64 = vmul.f32 %v48, 3.1415927
  %v65 = vmul.f32 %v49, 3.1415927
  %v66 = vmul.f32 %v50, 3.1415927
  %v67 = vld [vmem:[%s2] sm:$0xff]
  %v68 = vld [vmem:[%s2 + $0x8] sm:$0xff]
  %v69 = vld [vmem:[%s2 + $0x10] sm:$0xff]
  %v70 = vld [vmem:[%s2 + $0x18] sm:$0xff]
  %v71 = vld [vmem:[%s2 + $0x20] sm:$0xff]
  %v72 = vld [vmem:[%s2 + $0x28] sm:$0xff]
  %v73 = vld [vmem:[%s2 + $0x30] sm:$0xff]
  %v74 = vld [vmem:[%s2 + $0x38] sm:$0xff]
  %v75 = vld [vmem:[%s2 + $0x40] sm:$0xff]
  %v76 = vld [vmem:[%s2 + $0x48] sm:$0xff]
  %v77 = vld [vmem:[%s2 + $0x50] sm:$0xff]
  %v78 = vld [vmem:[%s2 + $0x58] sm:$0xff]
  %v79 = vld [vmem:[%s2 + $0x60] sm:$0xff]
  %v80 = vld [vmem:[%s2 + $0x68] sm:$0xff]
  %v81 = vld [vmem:[%s2 + $0x70] sm:$0xff]
  %v82 = vld [vmem:[%s2 + $0x78] sm:$0xff]
  %v83 = vand.u32 2147483647, %v51
  %vm84 = vcmp.le.f32.partialorder %v83, 0.7853982
  %vm85 = vcmp.lt.s32.totalorder %v51, 0
  %v86 = vand.u32 %v51, 2139095040
  %v87 = vshrl.u32 %v86, 23
  %v88 = vsub.s32 %v87, 127
  %v89 = vand.u32 2147483647, %v51
  %v90 = vand.u32 %v89, 8388607
  %v91 = vor.u32 %v90, 8388608
  %v92 = vsub.s32 0, %v91
  %v93 = vadd.s32 %v88, 1
  %vm94 = vcmp.gt.s32.totalorder %v93, 0
  %v95 = vsel %vm94, %v93, 0
  %v96 = vshrl.u32 %v95, 5
  %v97 = vand.u32 %v95, 31
  %v98 = vsub.s32 32, %v97
  %v99 = vshrl.u32 683565275, %v98
  %v100 = vshll.u32 683565275, %v97
  %v101 = vshrl.u32 2475754826, %v98
  %v102 = vor.u32 %v100, %v101
  %v103 = vshll.u32 2475754826, %v97
  %v104 = vshrl.u32 2131351028, %v98
  %v105 = vor.u32 %v103, %v104
  %v106 = vshll.u32 2131351028, %v97
  %v107 = vshrl.u32 2102212464, %v98
  %v108 = vor.u32 %v106, %v107
  %v109 = vshll.u32 2102212464, %v97
  %v110 = vshrl.u32 920167782, %v98
  %v111 = vor.u32 %v109, %v110
  %v112 = vshll.u32 920167782, %v97
  %v113 = vshrl.u32 1326507024, %v98
  %v114 = vor.u32 %v112, %v113
  %vm115 = vcmp.lt.s32.totalorder %v96, 1
  %vm116 = vcmp.lt.s32.totalorder %v96, 2
  %vm117 = vcmp.lt.s32.totalorder %v96, 3
  %vm118 = vcmp.lt.s32.totalorder %v96, 4
  %v119 = vsel %vm115, %v99, %v102
  %v120 = vsel %vm118, %v108, 2102212464
  %v121 = vsel %vm117, %v105, %v120
  %v122 = vsel %vm116, %v119, %v121
  %v123 = vsel %vm115, %v102, %v105
  %v124 = vsel %vm118, %v111, 920167782
  %v125 = vsel %vm117, %v108, %v124
  %v126 = vsel %vm116, %v123, %v125
  %v127 = vsel %vm115, %v105, %v108
  %v128 = vsel %vm118, %v114, 1326507024
  %v129 = vsel %vm117, %v111, %v128
  %v130 = vsel %vm116, %v127, %v129
  %v131 = vshll.u32 %v91, 8
  %v132 = vmul.u32.u64.compose %v131, %v130
  %v133 = vextract.low.u32 %v132
  %v134 = vextract.high.u32 %v132
  %v135 = vmul.u32.u64.compose %v131, %v126
  %v136 = vextract.low.u32 %v135
  %v137 = vextract.high.u32 %v135
  %v138 = vmul.u32 %v131, %v122
  %v139 = vadd.s32 %v134, %v136
  %vm140 = vc.u32 %v134, %v136
  %v141 = vadd.s32 %v137, 1
  %v142 = vsel %vm140, %v141, %v137
  %v143 = vadd.s32 %v138, %v142
  %v144 = vadd.s32 %v143, 536870912
  %v145 = vshrl.u32 %v144, 30
  %v146 = vshll.u32 %v145, 30
  %v147 = vsub.s32 %v143, %v146
  %vm148 = vcmp.lt.s32.totalorder %v147, 0
  %v149 = vsub.s32 0, %v147
  %v150 = vsel %vm148, %v149, %v147
  %v151 = vclz %v150
  %v152 = vsub.s32 %v151, 2
  %vm153 = vcmp.gt.s32.totalorder 0, %v152
  %v154 = vsel %vm153, 0, %v152
  %v155 = vsub.s32 32, %v154
  %v156 = vshll.u32 %v147, %v154
  %v157 = vshrl.u32 %v139, %v155
  %v158 = vor.u32 %v156, %v157
  %v159 = vsub.s32 4294967266, %v154
  %v160 = vadd.s32 %v159, 127
  %v161 = vshll.u32 %v160, 23
  %v162 = vor.u32 4788187, %v161
  %v163 = vand.u32 2147483647, %v162
  %v165 = vcvt.s32.f32 %v158
  %v166 = vmul.f32 %v165, %v163
  %v167 = vxor.u32 %v166, 2147483648
  %v168 = vsel %vm85, %v167, %v166
  %v169 = vsub.s32 4, %v145
  %v170 = vsel %vm85, %v169, %v145
  %v171 = vsel %vm84, %v51, %v168
  %v172 = vsel %vm84, 0, %v170
  %v173 = vcosq.f32.pop %v171
  %v174 = vsinq.f32.pop %v171
  %vm175 = vweird.f32 %v51
  %v176 = vand.u32 %v172, 3
  %vm177 = vcmp.lt.s32.totalorder %v176, 2
  %vm178 = vcmp.eq.s32.totalorder %v176, 0
  %v179 = vxor.u32 %v174, 2147483648
  %v180 = vsel %vm178, %v173, %v179
  %vm181 = vcmp.eq.s32.totalorder %v176, 2
  %v182 = vxor.u32 %v173, 2147483648
  %v183 = vsel %vm181, %v182, %v174
  %v184 = vsel %vm177, %v180, %v183
  %v185 = vsel %vm175, nan, %v184
  %v186 = vand.u32 2147483647, %v52
  %vm187 = vcmp.le.f32.partialorder %v186, 0.7853982
  %vm188 = vcmp.lt.s32.totalorder %v52, 0
  %v189 = vand.u32 %v52, 2139095040
  %v190 = vshrl.u32 %v189, 23
  %v191 = vsub.s32 %v190, 127
  %v192 = vand.u32 2147483647, %v52
  %v193 = vand.u32 %v192, 8388607
  %v194 = vor.u32 %v193, 8388608
  %v195 = vsub.s32 0, %v194
  %v196 = vadd.s32 %v191, 1
  %vm197 = vcmp.gt.s32.totalorder %v196, 0
  %v198 = vsel %vm197, %v196, 0
  %v199 = vshrl.u32 %v198, 5
  %v200 = vand.u32 %v198, 31
  %v201 = vsub.s32 32, %v200
  %v202 = vshrl.u32 683565275, %v201
  %v203 = vshll.u32 683565275, %v200
  %v204 = vshrl.u32 2475754826, %v201
  %v205 = vor.u32 %v203, %v204
  %v206 = vshll.u32 2475754826, %v200
  %v207 = vshrl.u32 2131351028, %v201
  %v208 = vor.u32 %v206, %v207
  %v209 = vshll.u32 2131351028, %v200
  %v210 = vshrl.u32 2102212464, %v201
  %v211 = vor.u32 %v209, %v210
  %v212 = vshll.u32 2102212464, %v200
  %v213 = vshrl.u32 920167782, %v201
  %v214 = vor.u32 %v212, %v213
  %v215 = vshll.u32 920167782, %v200
  %v216 = vshrl.u32 1326507024, %v201
  %v217 = vor.u32 %v215, %v216
  %vm218 = vcmp.lt.s32.totalorder %v199, 1
  %vm219 = vcmp.lt.s32.totalorder %v199, 2
  %vm220 = vcmp.lt.s32.totalorder %v199, 3
  %vm221 = vcmp.lt.s32.totalorder %v199, 4
  %v222 = vsel %vm218, %v202, %v205
  %v223 = vsel %vm221, %v211, 2102212464
  %v224 = vsel %vm220, %v208, %v223
  %v225 = vsel %vm219, %v222, %v224
  %v226 = vsel %vm218, %v205, %v208
  %v227 = vsel %vm221, %v214, 920167782
  %v228 = vsel %vm220, %v211, %v227
  %v229 = vsel %vm219, %v226, %v228
  %v230 = vsel %vm218, %v208, %v211
  %v231 = vsel %vm221, %v217, 1326507024
  %v232 = vsel %vm220, %v214, %v231
  %v233 = vsel %vm219, %v230, %v232
  %v234 = vshll.u32 %v194, 8
  %v235 = vmul.u32.u64.compose %v234, %v233
  %v236 = vextract.low.u32 %v235
  %v237 = vextract.high.u32 %v235
  %v238 = vmul.u32.u64.compose %v234, %v229
  %v239 = vextract.low.u32 %v238
  %v240 = vextract.high.u32 %v238
  %v241 = vmul.u32 %v234, %v225
  %v242 = vadd.s32 %v237, %v239
  %vm243 = vc.u32 %v237, %v239
  %v244 = vadd.s32 %v240, 1
  %v245 = vsel %vm243, %v244, %v240
  %v246 = vadd.s32 %v241, %v245
  %v247 = vadd.s32 %v246, 536870912
  %v248 = vshrl.u32 %v247, 30
  %v249 = vshll.u32 %v248, 30
  %v250 = vsub.s32 %v246, %v249
  %vm251 = vcmp.lt.s32.totalorder %v250, 0
  %v252 = vsub.s32 0, %v250
  %v253 = vsel %vm251, %v252, %v250
  %v254 = vclz %v253
  %v255 = vsub.s32 %v254, 2
  %vm256 = vcmp.gt.s32.totalorder 0, %v255
  %v257 = vsel %vm256, 0, %v255
  %v258 = vsub.s32 32, %v257
  %v259 = vshll.u32 %v250, %v257
  %v260 = vshrl.u32 %v242, %v258
  %v261 = vor.u32 %v259, %v260
  %v262 = vsub.s32 4294967266, %v257
  %v263 = vadd.s32 %v262, 127
  %v264 = vshll.u32 %v263, 23
  %v265 = vor.u32 4788187, %v264
  %v266 = vand.u32 2147483647, %v265
  %v268 = vcvt.s32.f32 %v261
  %v269 = vmul.f32 %v268, %v266
  %v270 = vxor.u32 %v269, 2147483648
  %v271 = vsel %vm188, %v270, %v269
  %v272 = vsub.s32 4, %v248
  %v273 = vsel %vm188, %v272, %v248
  %v274 = vsel %vm187, %v52, %v271
  %v275 = vsel %vm187, 0, %v273
  %v276 = vcosq.f32.pop %v274
  %v277 = vsinq.f32.pop %v274
  %vm278 = vweird.f32 %v52
  %v279 = vand.u32 %v275, 3
  %vm280 = vcmp.lt.s32.totalorder %v279, 2
  %vm281 = vcmp.eq.s32.totalorder %v279, 0
  %v282 = vxor.u32 %v277, 2147483648
  %v283 = vsel %vm281, %v276, %v282
  %vm284 = vcmp.eq.s32.totalorder %v279, 2
  %v285 = vxor.u32 %v276, 2147483648
  %v286 = vsel %vm284, %v285, %v277
  %v287 = vsel %vm280, %v283, %v286
  %v288 = vsel %vm278, nan, %v287
  %v289 = vand.u32 2147483647, %v53
  %vm290 = vcmp.le.f32.partialorder %v289, 0.7853982
  %vm291 = vcmp.lt.s32.totalorder %v53, 0
  %v292 = vand.u32 %v53, 2139095040
  %v293 = vshrl.u32 %v292, 23
  %v294 = vsub.s32 %v293, 127
  %v295 = vand.u32 2147483647, %v53
  %v296 = vand.u32 %v295, 8388607
  %v297 = vor.u32 %v296, 8388608
  %v298 = vsub.s32 0, %v297
  %v299 = vadd.s32 %v294, 1
  %vm300 = vcmp.gt.s32.totalorder %v299, 0
  %v301 = vsel %vm300, %v299, 0
  %v302 = vshrl.u32 %v301, 5
  %v303 = vand.u32 %v301, 31
  %v304 = vsub.s32 32, %v303
  %v305 = vshrl.u32 683565275, %v304
  %v306 = vshll.u32 683565275, %v303
  %v307 = vshrl.u32 2475754826, %v304
  %v308 = vor.u32 %v306, %v307
  %v309 = vshll.u32 2475754826, %v303
  %v310 = vshrl.u32 2131351028, %v304
  %v311 = vor.u32 %v309, %v310
  %v312 = vshll.u32 2131351028, %v303
  %v313 = vshrl.u32 2102212464, %v304
  %v314 = vor.u32 %v312, %v313
  %v315 = vshll.u32 2102212464, %v303
  %v316 = vshrl.u32 920167782, %v304
  %v317 = vor.u32 %v315, %v316
  %v318 = vshll.u32 920167782, %v303
  %v319 = vshrl.u32 1326507024, %v304
  %v320 = vor.u32 %v318, %v319
  %vm321 = vcmp.lt.s32.totalorder %v302, 1
  %vm322 = vcmp.lt.s32.totalorder %v302, 2
  %vm323 = vcmp.lt.s32.totalorder %v302, 3
  %vm324 = vcmp.lt.s32.totalorder %v302, 4
  %v325 = vsel %vm321, %v305, %v308
  %v326 = vsel %vm324, %v314, 2102212464
  %v327 = vsel %vm323, %v311, %v326
  %v328 = vsel %vm322, %v325, %v327
  %v329 = vsel %vm321, %v308, %v311
  %v330 = vsel %vm324, %v317, 920167782
  %v331 = vsel %vm323, %v314, %v330
  %v332 = vsel %vm322, %v329, %v331
  %v333 = vsel %vm321, %v311, %v314
  %v334 = vsel %vm324, %v320, 1326507024
  %v335 = vsel %vm323, %v317, %v334
  %v336 = vsel %vm322, %v333, %v335
  %v337 = vshll.u32 %v297, 8
  %v338 = vmul.u32.u64.compose %v337, %v336
  %v339 = vextract.low.u32 %v338
  %v340 = vextract.high.u32 %v338
  %v341 = vmul.u32.u64.compose %v337, %v332
  %v342 = vextract.low.u32 %v341
  %v343 = vextract.high.u32 %v341
  %v344 = vmul.u32 %v337, %v328
  %v345 = vadd.s32 %v340, %v342
  %vm346 = vc.u32 %v340, %v342
  %v347 = vadd.s32 %v343, 1
  %v348 = vsel %vm346, %v347, %v343
  %v349 = vadd.s32 %v344, %v348
  %v350 = vadd.s32 %v349, 536870912
  %v351 = vshrl.u32 %v350, 30
  %v352 = vshll.u32 %v351, 30
  %v353 = vsub.s32 %v349, %v352
  %vm354 = vcmp.lt.s32.totalorder %v353, 0
  %v355 = vsub.s32 0, %v353
  %v356 = vsel %vm354, %v355, %v353
  %v357 = vclz %v356
  %v358 = vsub.s32 %v357, 2
  %vm359 = vcmp.gt.s32.totalorder 0, %v358
  %v360 = vsel %vm359, 0, %v358
  %v361 = vsub.s32 32, %v360
  %v362 = vshll.u32 %v353, %v360
  %v363 = vshrl.u32 %v345, %v361
  %v364 = vor.u32 %v362, %v363
  %v365 = vsub.s32 4294967266, %v360
  %v366 = vadd.s32 %v365, 127
  %v367 = vshll.u32 %v366, 23
  %v368 = vor.u32 4788187, %v367
  %v369 = vand.u32 2147483647, %v368
  %v371 = vcvt.s32.f32 %v364
  %v372 = vmul.f32 %v371, %v369
  %v373 = vxor.u32 %v372, 2147483648
  %v374 = vsel %vm291, %v373, %v372
  %v375 = vsub.s32 4, %v351
  %v376 = vsel %vm291, %v375, %v351
  %v377 = vsel %vm290, %v53, %v374
  %v378 = vsel %vm290, 0, %v376
  %v379 = vcosq.f32.pop %v377
  %v380 = vsinq.f32.pop %v377
  %vm381 = vweird.f32 %v53
  %v382 = vand.u32 %v378, 3
  %vm383 = vcmp.lt.s32.totalorder %v382, 2
  %vm384 = vcmp.eq.s32.totalorder %v382, 0
  %v385 = vxor.u32 %v380, 2147483648
  %v386 = vsel %vm384, %v379, %v385
  %vm387 = vcmp.eq.s32.totalorder %v382, 2
  %v388 = vxor.u32 %v379, 2147483648
  %v389 = vsel %vm387, %v388, %v380
  %v390 = vsel %vm383, %v386, %v389
  %v391 = vsel %vm381, nan, %v390
  %v392 = vand.u32 2147483647, %v54
  %vm393 = vcmp.le.f32.partialorder %v392, 0.7853982
  %vm394 = vcmp.lt.s32.totalorder %v54, 0
  %v395 = vand.u32 %v54, 2139095040
  %v396 = vshrl.u32 %v395, 23
  %v397 = vsub.s32 %v396, 127
  %v398 = vand.u32 2147483647, %v54
  %v399 = vand.u32 %v398, 8388607
  %v400 = vor.u32 %v399, 8388608
  %v401 = vsub.s32 0, %v400
  %v402 = vadd.s32 %v397, 1
  %vm403 = vcmp.gt.s32.totalorder %v402, 0
  %v404 = vsel %vm403, %v402, 0
  %v405 = vshrl.u32 %v404, 5
  %v406 = vand.u32 %v404, 31
  %v407 = vsub.s32 32, %v406
  %v408 = vshrl.u32 683565275, %v407
  %v409 = vshll.u32 683565275, %v406
  %v410 = vshrl.u32 2475754826, %v407
  %v411 = vor.u32 %v409, %v410
  %v412 = vshll.u32 2475754826, %v406
  %v413 = vshrl.u32 2131351028, %v407
  %v414 = vor.u32 %v412, %v413
  %v415 = vshll.u32 2131351028, %v406
  %v416 = vshrl.u32 2102212464, %v407
  %v417 = vor.u32 %v415, %v416
  %v418 = vshll.u32 2102212464, %v406
  %v419 = vshrl.u32 920167782, %v407
  %v420 = vor.u32 %v418, %v419
  %v421 = vshll.u32 920167782, %v406
  %v422 = vshrl.u32 1326507024, %v407
  %v423 = vor.u32 %v421, %v422
  %vm424 = vcmp.lt.s32.totalorder %v405, 1
  %vm425 = vcmp.lt.s32.totalorder %v405, 2
  %vm426 = vcmp.lt.s32.totalorder %v405, 3
  %vm427 = vcmp.lt.s32.totalorder %v405, 4
  %v428 = vsel %vm424, %v408, %v411
  %v429 = vsel %vm427, %v417, 2102212464
  %v430 = vsel %vm426, %v414, %v429
  %v431 = vsel %vm425, %v428, %v430
  %v432 = vsel %vm424, %v411, %v414
  %v433 = vsel %vm427, %v420, 920167782
  %v434 = vsel %vm426, %v417, %v433
  %v435 = vsel %vm425, %v432, %v434
  %v436 = vsel %vm424, %v414, %v417
  %v437 = vsel %vm427, %v423, 1326507024
  %v438 = vsel %vm426, %v420, %v437
  %v439 = vsel %vm425, %v436, %v438
  %v440 = vshll.u32 %v400, 8
  %v441 = vmul.u32.u64.compose %v440, %v439
  %v442 = vextract.low.u32 %v441
  %v443 = vextract.high.u32 %v441
  %v444 = vmul.u32.u64.compose %v440, %v435
  %v445 = vextract.low.u32 %v444
  %v446 = vextract.high.u32 %v444
  %v447 = vmul.u32 %v440, %v431
  %v448 = vadd.s32 %v443, %v445
  %vm449 = vc.u32 %v443, %v445
  %v450 = vadd.s32 %v446, 1
  %v451 = vsel %vm449, %v450, %v446
  %v452 = vadd.s32 %v447, %v451
  %v453 = vadd.s32 %v452, 536870912
  %v454 = vshrl.u32 %v453, 30
  %v455 = vshll.u32 %v454, 30
  %v456 = vsub.s32 %v452, %v455
  %vm457 = vcmp.lt.s32.totalorder %v456, 0
  %v458 = vsub.s32 0, %v456
  %v459 = vsel %vm457, %v458, %v456
  %v460 = vclz %v459
  %v461 = vsub.s32 %v460, 2
  %vm462 = vcmp.gt.s32.totalorder 0, %v461
  %v463 = vsel %vm462, 0, %v461
  %v464 = vsub.s32 32, %v463
  %v465 = vshll.u32 %v456, %v463
  %v466 = vshrl.u32 %v448, %v464
  %v467 = vor.u32 %v465, %v466
  %v468 = vsub.s32 4294967266, %v463
  %v469 = vadd.s32 %v468, 127
  %v470 = vshll.u32 %v469, 23
  %v471 = vor.u32 4788187, %v470
  %v472 = vand.u32 2147483647, %v471
  %v474 = vcvt.s32.f32 %v467
  %v475 = vmul.f32 %v474, %v472
  %v476 = vxor.u32 %v475, 2147483648
  %v477 = vsel %vm394, %v476, %v475
  %v478 = vsub.s32 4, %v454
  %v479 = vsel %vm394, %v478, %v454
  %v480 = vsel %vm393, %v54, %v477
  %v481 = vsel %vm393, 0, %v479
  %v482 = vcosq.f32.pop %v480
  %v483 = vsinq.f32.pop %v480
  %vm484 = vweird.f32 %v54
  %v485 = vand.u32 %v481, 3
  %vm486 = vcmp.lt.s32.totalorder %v485, 2
  %vm487 = vcmp.eq.s32.totalorder %v485, 0
  %v488 = vxor.u32 %v483, 2147483648
  %v489 = vsel %vm487, %v482, %v488
  %vm490 = vcmp.eq.s32.totalorder %v485, 2
  %v491 = vxor.u32 %v482, 2147483648
  %v492 = vsel %vm490, %v491, %v483
  %v493 = vsel %vm486, %v489, %v492
  %v494 = vsel %vm484, nan, %v493
  %v495 = vand.u32 2147483647, %v55
  %vm496 = vcmp.le.f32.partialorder %v495, 0.7853982
  %vm497 = vcmp.lt.s32.totalorder %v55, 0
  %v498 = vand.u32 %v55, 2139095040
  %v499 = vshrl.u32 %v498, 23
  %v500 = vsub.s32 %v499, 127
  %v501 = vand.u32 2147483647, %v55
  %v502 = vand.u32 %v501, 8388607
  %v503 = vor.u32 %v502, 8388608
  %v504 = vsub.s32 0, %v503
  %v505 = vadd.s32 %v500, 1
  %vm506 = vcmp.gt.s32.totalorder %v505, 0
  %v507 = vsel %vm506, %v505, 0
  %v508 = vshrl.u32 %v507, 5
  %v509 = vand.u32 %v507, 31
  %v510 = vsub.s32 32, %v509
  %v511 = vshrl.u32 683565275, %v510
  %v512 = vshll.u32 683565275, %v509
  %v513 = vshrl.u32 2475754826, %v510
  %v514 = vor.u32 %v512, %v513
  %v515 = vshll.u32 2475754826, %v509
  %v516 = vshrl.u32 2131351028, %v510
  %v517 = vor.u32 %v515, %v516
  %v518 = vshll.u32 2131351028, %v509
  %v519 = vshrl.u32 2102212464, %v510
  %v520 = vor.u32 %v518, %v519
  %v521 = vshll.u32 2102212464, %v509
  %v522 = vshrl.u32 920167782, %v510
  %v523 = vor.u32 %v521, %v522
  %v524 = vshll.u32 920167782, %v509
  %v525 = vshrl.u32 1326507024, %v510
  %v526 = vor.u32 %v524, %v525
  %vm527 = vcmp.lt.s32.totalorder %v508, 1
  %vm528 = vcmp.lt.s32.totalorder %v508, 2
  %vm529 = vcmp.lt.s32.totalorder %v508, 3
  %vm530 = vcmp.lt.s32.totalorder %v508, 4
  %v531 = vsel %vm527, %v511, %v514
  %v532 = vsel %vm530, %v520, 2102212464
  %v533 = vsel %vm529, %v517, %v532
  %v534 = vsel %vm528, %v531, %v533
  %v535 = vsel %vm527, %v514, %v517
  %v536 = vsel %vm530, %v523, 920167782
  %v537 = vsel %vm529, %v520, %v536
  %v538 = vsel %vm528, %v535, %v537
  %v539 = vsel %vm527, %v517, %v520
  %v540 = vsel %vm530, %v526, 1326507024
  %v541 = vsel %vm529, %v523, %v540
  %v542 = vsel %vm528, %v539, %v541
  %v543 = vshll.u32 %v503, 8
  %v544 = vmul.u32.u64.compose %v543, %v542
  %v545 = vextract.low.u32 %v544
  %v546 = vextract.high.u32 %v544
  %v547 = vmul.u32.u64.compose %v543, %v538
  %v548 = vextract.low.u32 %v547
  %v549 = vextract.high.u32 %v547
  %v550 = vmul.u32 %v543, %v534
  %v551 = vadd.s32 %v546, %v548
  %vm552 = vc.u32 %v546, %v548
  %v553 = vadd.s32 %v549, 1
  %v554 = vsel %vm552, %v553, %v549
  %v555 = vadd.s32 %v550, %v554
  %v556 = vadd.s32 %v555, 536870912
  %v557 = vshrl.u32 %v556, 30
  %v558 = vshll.u32 %v557, 30
  %v559 = vsub.s32 %v555, %v558
  %vm560 = vcmp.lt.s32.totalorder %v559, 0
  %v561 = vsub.s32 0, %v559
  %v562 = vsel %vm560, %v561, %v559
  %v563 = vclz %v562
  %v564 = vsub.s32 %v563, 2
  %vm565 = vcmp.gt.s32.totalorder 0, %v564
  %v566 = vsel %vm565, 0, %v564
  %v567 = vsub.s32 32, %v566
  %v568 = vshll.u32 %v559, %v566
  %v569 = vshrl.u32 %v551, %v567
  %v570 = vor.u32 %v568, %v569
  %v571 = vsub.s32 4294967266, %v566
  %v572 = vadd.s32 %v571, 127
  %v573 = vshll.u32 %v572, 23
  %v574 = vor.u32 4788187, %v573
  %v575 = vand.u32 2147483647, %v574
  %v577 = vcvt.s32.f32 %v570
  %v578 = vmul.f32 %v577, %v575
  %v579 = vxor.u32 %v578, 2147483648
  %v580 = vsel %vm497, %v579, %v578
  %v581 = vsub.s32 4, %v557
  %v582 = vsel %vm497, %v581, %v557
  %v583 = vsel %vm496, %v55, %v580
  %v584 = vsel %vm496, 0, %v582
  %v585 = vcosq.f32.pop %v583
  %v586 = vsinq.f32.pop %v583
  %vm587 = vweird.f32 %v55
  %v588 = vand.u32 %v584, 3
  %vm589 = vcmp.lt.s32.totalorder %v588, 2
  %vm590 = vcmp.eq.s32.totalorder %v588, 0
  %v591 = vxor.u32 %v586, 2147483648
  %v592 = vsel %vm590, %v585, %v591
  %vm593 = vcmp.eq.s32.totalorder %v588, 2
  %v594 = vxor.u32 %v585, 2147483648
  %v595 = vsel %vm593, %v594, %v586
  %v596 = vsel %vm589, %v592, %v595
  %v597 = vsel %vm587, nan, %v596
  %v598 = vand.u32 2147483647, %v56
  %vm599 = vcmp.le.f32.partialorder %v598, 0.7853982
  %vm600 = vcmp.lt.s32.totalorder %v56, 0
  %v601 = vand.u32 %v56, 2139095040
  %v602 = vshrl.u32 %v601, 23
  %v603 = vsub.s32 %v602, 127
  %v604 = vand.u32 2147483647, %v56
  %v605 = vand.u32 %v604, 8388607
  %v606 = vor.u32 %v605, 8388608
  %v607 = vsub.s32 0, %v606
  %v608 = vadd.s32 %v603, 1
  %vm609 = vcmp.gt.s32.totalorder %v608, 0
  %v610 = vsel %vm609, %v608, 0
  %v611 = vshrl.u32 %v610, 5
  %v612 = vand.u32 %v610, 31
  %v613 = vsub.s32 32, %v612
  %v614 = vshrl.u32 683565275, %v613
  %v615 = vshll.u32 683565275, %v612
  %v616 = vshrl.u32 2475754826, %v613
  %v617 = vor.u32 %v615, %v616
  %v618 = vshll.u32 2475754826, %v612
  %v619 = vshrl.u32 2131351028, %v613
  %v620 = vor.u32 %v618, %v619
  %v621 = vshll.u32 2131351028, %v612
  %v622 = vshrl.u32 2102212464, %v613
  %v623 = vor.u32 %v621, %v622
  %v624 = vshll.u32 2102212464, %v612
  %v625 = vshrl.u32 920167782, %v613
  %v626 = vor.u32 %v624, %v625
  %v627 = vshll.u32 920167782, %v612
  %v628 = vshrl.u32 1326507024, %v613
  %v629 = vor.u32 %v627, %v628
  %vm630 = vcmp.lt.s32.totalorder %v611, 1
  %vm631 = vcmp.lt.s32.totalorder %v611, 2
  %vm632 = vcmp.lt.s32.totalorder %v611, 3
  %vm633 = vcmp.lt.s32.totalorder %v611, 4
  %v634 = vsel %vm630, %v614, %v617
  %v635 = vsel %vm633, %v623, 2102212464
  %v636 = vsel %vm632, %v620, %v635
  %v637 = vsel %vm631, %v634, %v636
  %v638 = vsel %vm630, %v617, %v620
  %v639 = vsel %vm633, %v626, 920167782
  %v640 = vsel %vm632, %v623, %v639
  %v641 = vsel %vm631, %v638, %v640
  %v642 = vsel %vm630, %v620, %v623
  %v643 = vsel %vm633, %v629, 1326507024
  %v644 = vsel %vm632, %v626, %v643
  %v645 = vsel %vm631, %v642, %v644
  %v646 = vshll.u32 %v606, 8
  %v647 = vmul.u32.u64.compose %v646, %v645
  %v648 = vextract.low.u32 %v647
  %v649 = vextract.high.u32 %v647
  %v650 = vmul.u32.u64.compose %v646, %v641
  %v651 = vextract.low.u32 %v650
  %v652 = vextract.high.u32 %v650
  %v653 = vmul.u32 %v646, %v637
  %v654 = vadd.s32 %v649, %v651
  %vm655 = vc.u32 %v649, %v651
  %v656 = vadd.s32 %v652, 1
  %v657 = vsel %vm655, %v656, %v652
  %v658 = vadd.s32 %v653, %v657
  %v659 = vadd.s32 %v658, 536870912
  %v660 = vshrl.u32 %v659, 30
  %v661 = vshll.u32 %v660, 30
  %v662 = vsub.s32 %v658, %v661
  %vm663 = vcmp.lt.s32.totalorder %v662, 0
  %v664 = vsub.s32 0, %v662
  %v665 = vsel %vm663, %v664, %v662
  %v666 = vclz %v665
  %v667 = vsub.s32 %v666, 2
  %vm668 = vcmp.gt.s32.totalorder 0, %v667
  %v669 = vsel %vm668, 0, %v667
  %v670 = vsub.s32 32, %v669
  %v671 = vshll.u32 %v662, %v669
  %v672 = vshrl.u32 %v654, %v670
  %v673 = vor.u32 %v671, %v672
  %v674 = vsub.s32 4294967266, %v669
  %v675 = vadd.s32 %v674, 127
  %v676 = vshll.u32 %v675, 23
  %v677 = vor.u32 4788187, %v676
  %v678 = vand.u32 2147483647, %v677
  %v680 = vcvt.s32.f32 %v673
  %v681 = vmul.f32 %v680, %v678
  %v682 = vxor.u32 %v681, 2147483648
  %v683 = vsel %vm600, %v682, %v681
  %v684 = vsub.s32 4, %v660
  %v685 = vsel %vm600, %v684, %v660
  %v686 = vsel %vm599, %v56, %v683
  %v687 = vsel %vm599, 0, %v685
  %v688 = vcosq.f32.pop %v686
  %v689 = vsinq.f32.pop %v686
  %vm690 = vweird.f32 %v56
  %v691 = vand.u32 %v687, 3
  %vm692 = vcmp.lt.s32.totalorder %v691, 2
  %vm693 = vcmp.eq.s32.totalorder %v691, 0
  %v694 = vxor.u32 %v689, 2147483648
  %v695 = vsel %vm693, %v688, %v694
  %vm696 = vcmp.eq.s32.totalorder %v691, 2
  %v697 = vxor.u32 %v688, 2147483648
  %v698 = vsel %vm696, %v697, %v689
  %v699 = vsel %vm692, %v695, %v698
  %v700 = vsel %vm690, nan, %v699
  %v701 = vand.u32 2147483647, %v57
  %vm702 = vcmp.le.f32.partialorder %v701, 0.7853982
  %vm703 = vcmp.lt.s32.totalorder %v57, 0
  %v704 = vand.u32 %v57, 2139095040
  %v705 = vshrl.u32 %v704, 23
  %v706 = vsub.s32 %v705, 127
  %v707 = vand.u32 2147483647, %v57
  %v708 = vand.u32 %v707, 8388607
  %v709 = vor.u32 %v708, 8388608
  %v710 = vsub.s32 0, %v709
  %v711 = vadd.s32 %v706, 1
  %vm712 = vcmp.gt.s32.totalorder %v711, 0
  %v713 = vsel %vm712, %v711, 0
  %v714 = vshrl.u32 %v713, 5
  %v715 = vand.u32 %v713, 31
  %v716 = vsub.s32 32, %v715
  %v717 = vshrl.u32 683565275, %v716
  %v718 = vshll.u32 683565275, %v715
  %v719 = vshrl.u32 2475754826, %v716
  %v720 = vor.u32 %v718, %v719
  %v721 = vshll.u32 2475754826, %v715
  %v722 = vshrl.u32 2131351028, %v716
  %v723 = vor.u32 %v721, %v722
  %v724 = vshll.u32 2131351028, %v715
  %v725 = vshrl.u32 2102212464, %v716
  %v726 = vor.u32 %v724, %v725
  %v727 = vshll.u32 2102212464, %v715
  %v728 = vshrl.u32 920167782, %v716
  %v729 = vor.u32 %v727, %v728
  %v730 = vshll.u32 920167782, %v715
  %v731 = vshrl.u32 1326507024, %v716
  %v732 = vor.u32 %v730, %v731
  %vm733 = vcmp.lt.s32.totalorder %v714, 1
  %vm734 = vcmp.lt.s32.totalorder %v714, 2
  %vm735 = vcmp.lt.s32.totalorder %v714, 3
  %vm736 = vcmp.lt.s32.totalorder %v714, 4
  %v737 = vsel %vm733, %v717, %v720
  %v738 = vsel %vm736, %v726, 2102212464
  %v739 = vsel %vm735, %v723, %v738
  %v740 = vsel %vm734, %v737, %v739
  %v741 = vsel %vm733, %v720, %v723
  %v742 = vsel %vm736, %v729, 920167782
  %v743 = vsel %vm735, %v726, %v742
  %v744 = vsel %vm734, %v741, %v743
  %v745 = vsel %vm733, %v723, %v726
  %v746 = vsel %vm736, %v732, 1326507024
  %v747 = vsel %vm735, %v729, %v746
  %v748 = vsel %vm734, %v745, %v747
  %v749 = vshll.u32 %v709, 8
  %v750 = vmul.u32.u64.compose %v749, %v748
  %v751 = vextract.low.u32 %v750
  %v752 = vextract.high.u32 %v750
  %v753 = vmul.u32.u64.compose %v749, %v744
  %v754 = vextract.low.u32 %v753
  %v755 = vextract.high.u32 %v753
  %v756 = vmul.u32 %v749, %v740
  %v757 = vadd.s32 %v752, %v754
  %vm758 = vc.u32 %v752, %v754
  %v759 = vadd.s32 %v755, 1
  %v760 = vsel %vm758, %v759, %v755
  %v761 = vadd.s32 %v756, %v760
  %v762 = vadd.s32 %v761, 536870912
  %v763 = vshrl.u32 %v762, 30
  %v764 = vshll.u32 %v763, 30
  %v765 = vsub.s32 %v761, %v764
  %vm766 = vcmp.lt.s32.totalorder %v765, 0
  %v767 = vsub.s32 0, %v765
  %v768 = vsel %vm766, %v767, %v765
  %v769 = vclz %v768
  %v770 = vsub.s32 %v769, 2
  %vm771 = vcmp.gt.s32.totalorder 0, %v770
  %v772 = vsel %vm771, 0, %v770
  %v773 = vsub.s32 32, %v772
  %v774 = vshll.u32 %v765, %v772
  %v775 = vshrl.u32 %v757, %v773
  %v776 = vor.u32 %v774, %v775
  %v777 = vsub.s32 4294967266, %v772
  %v778 = vadd.s32 %v777, 127
  %v779 = vshll.u32 %v778, 23
  %v780 = vor.u32 4788187, %v779
  %v781 = vand.u32 2147483647, %v780
  %v783 = vcvt.s32.f32 %v776
  %v784 = vmul.f32 %v783, %v781
  %v785 = vxor.u32 %v784, 2147483648
  %v786 = vsel %vm703, %v785, %v784
  %v787 = vsub.s32 4, %v763
  %v788 = vsel %vm703, %v787, %v763
  %v789 = vsel %vm702, %v57, %v786
  %v790 = vsel %vm702, 0, %v788
  %v791 = vcosq.f32.pop %v789
  %v792 = vsinq.f32.pop %v789
  %vm793 = vweird.f32 %v57
  %v794 = vand.u32 %v790, 3
  %vm795 = vcmp.lt.s32.totalorder %v794, 2
  %vm796 = vcmp.eq.s32.totalorder %v794, 0
  %v797 = vxor.u32 %v792, 2147483648
  %v798 = vsel %vm796, %v791, %v797
  %vm799 = vcmp.eq.s32.totalorder %v794, 2
  %v800 = vxor.u32 %v791, 2147483648
  %v801 = vsel %vm799, %v800, %v792
  %v802 = vsel %vm795, %v798, %v801
  %v803 = vsel %vm793, nan, %v802
  %v804 = vand.u32 2147483647, %v58
  %vm805 = vcmp.le.f32.partialorder %v804, 0.7853982
  %vm806 = vcmp.lt.s32.totalorder %v58, 0
  %v807 = vand.u32 %v58, 2139095040
  %v808 = vshrl.u32 %v807, 23
  %v809 = vsub.s32 %v808, 127
  %v810 = vand.u32 2147483647, %v58
  %v811 = vand.u32 %v810, 8388607
  %v812 = vor.u32 %v811, 8388608
  %v813 = vsub.s32 0, %v812
  %v814 = vadd.s32 %v809, 1
  %vm815 = vcmp.gt.s32.totalorder %v814, 0
  %v816 = vsel %vm815, %v814, 0
  %v817 = vshrl.u32 %v816, 5
  %v818 = vand.u32 %v816, 31
  %v819 = vsub.s32 32, %v818
  %v820 = vshrl.u32 683565275, %v819
  %v821 = vshll.u32 683565275, %v818
  %v822 = vshrl.u32 2475754826, %v819
  %v823 = vor.u32 %v821, %v822
  %v824 = vshll.u32 2475754826, %v818
  %v825 = vshrl.u32 2131351028, %v819
  %v826 = vor.u32 %v824, %v825
  %v827 = vshll.u32 2131351028, %v818
  %v828 = vshrl.u32 2102212464, %v819
  %v829 = vor.u32 %v827, %v828
  %v830 = vshll.u32 2102212464, %v818
  %v831 = vshrl.u32 920167782, %v819
  %v832 = vor.u32 %v830, %v831
  %v833 = vshll.u32 920167782, %v818
  %v834 = vshrl.u32 1326507024, %v819
  %v835 = vor.u32 %v833, %v834
  %vm836 = vcmp.lt.s32.totalorder %v817, 1
  %vm837 = vcmp.lt.s32.totalorder %v817, 2
  %vm838 = vcmp.lt.s32.totalorder %v817, 3
  %vm839 = vcmp.lt.s32.totalorder %v817, 4
  %v840 = vsel %vm836, %v820, %v823
  %v841 = vsel %vm839, %v829, 2102212464
  %v842 = vsel %vm838, %v826, %v841
  %v843 = vsel %vm837, %v840, %v842
  %v844 = vsel %vm836, %v823, %v826
  %v845 = vsel %vm839, %v832, 920167782
  %v846 = vsel %vm838, %v829, %v845
  %v847 = vsel %vm837, %v844, %v846
  %v848 = vsel %vm836, %v826, %v829
  %v849 = vsel %vm839, %v835, 1326507024
  %v850 = vsel %vm838, %v832, %v849
  %v851 = vsel %vm837, %v848, %v850
  %v852 = vshll.u32 %v812, 8
  %v853 = vmul.u32.u64.compose %v852, %v851
  %v854 = vextract.low.u32 %v853
  %v855 = vextract.high.u32 %v853
  %v856 = vmul.u32.u64.compose %v852, %v847
  %v857 = vextract.low.u32 %v856
  %v858 = vextract.high.u32 %v856
  %v859 = vmul.u32 %v852, %v843
  %v860 = vadd.s32 %v855, %v857
  %vm861 = vc.u32 %v855, %v857
  %v862 = vadd.s32 %v858, 1
  %v863 = vsel %vm861, %v862, %v858
  %v864 = vadd.s32 %v859, %v863
  %v865 = vadd.s32 %v864, 536870912
  %v866 = vshrl.u32 %v865, 30
  %v867 = vshll.u32 %v866, 30
  %v868 = vsub.s32 %v864, %v867
  %vm869 = vcmp.lt.s32.totalorder %v868, 0
  %v870 = vsub.s32 0, %v868
  %v871 = vsel %vm869, %v870, %v868
  %v872 = vclz %v871
  %v873 = vsub.s32 %v872, 2
  %vm874 = vcmp.gt.s32.totalorder 0, %v873
  %v875 = vsel %vm874, 0, %v873
  %v876 = vsub.s32 32, %v875
  %v877 = vshll.u32 %v868, %v875
  %v878 = vshrl.u32 %v860, %v876
  %v879 = vor.u32 %v877, %v878
  %v880 = vsub.s32 4294967266, %v875
  %v881 = vadd.s32 %v880, 127
  %v882 = vshll.u32 %v881, 23
  %v883 = vor.u32 4788187, %v882
  %v884 = vand.u32 2147483647, %v883
  %v886 = vcvt.s32.f32 %v879
  %v887 = vmul.f32 %v886, %v884
  %v888 = vxor.u32 %v887, 2147483648
  %v889 = vsel %vm806, %v888, %v887
  %v890 = vsub.s32 4, %v866
  %v891 = vsel %vm806, %v890, %v866
  %v892 = vsel %vm805, %v58, %v889
  %v893 = vsel %vm805, 0, %v891
  %v894 = vcosq.f32.pop %v892
  %v895 = vsinq.f32.pop %v892
  %vm896 = vweird.f32 %v58
  %v897 = vand.u32 %v893, 3
  %vm898 = vcmp.lt.s32.totalorder %v897, 2
  %vm899 = vcmp.eq.s32.totalorder %v897, 0
  %v900 = vxor.u32 %v895, 2147483648
  %v901 = vsel %vm899, %v894, %v900
  %vm902 = vcmp.eq.s32.totalorder %v897, 2
  %v903 = vxor.u32 %v894, 2147483648
  %v904 = vsel %vm902, %v903, %v895
  %v905 = vsel %vm898, %v901, %v904
  %v906 = vsel %vm896, nan, %v905
  %v907 = vand.u32 2147483647, %v59
  %vm908 = vcmp.le.f32.partialorder %v907, 0.7853982
  %vm909 = vcmp.lt.s32.totalorder %v59, 0
  %v910 = vand.u32 %v59, 2139095040
  %v911 = vshrl.u32 %v910, 23
  %v912 = vsub.s32 %v911, 127
  %v913 = vand.u32 2147483647, %v59
  %v914 = vand.u32 %v913, 8388607
  %v915 = vor.u32 %v914, 8388608
  %v916 = vsub.s32 0, %v915
  %v917 = vadd.s32 %v912, 1
  %vm918 = vcmp.gt.s32.totalorder %v917, 0
  %v919 = vsel %vm918, %v917, 0
  %v920 = vshrl.u32 %v919, 5
  %v921 = vand.u32 %v919, 31
  %v922 = vsub.s32 32, %v921
  %v923 = vshrl.u32 683565275, %v922
  %v924 = vshll.u32 683565275, %v921
  %v925 = vshrl.u32 2475754826, %v922
  %v926 = vor.u32 %v924, %v925
  %v927 = vshll.u32 2475754826, %v921
  %v928 = vshrl.u32 2131351028, %v922
  %v929 = vor.u32 %v927, %v928
  %v930 = vshll.u32 2131351028, %v921
  %v931 = vshrl.u32 2102212464, %v922
  %v932 = vor.u32 %v930, %v931
  %v933 = vshll.u32 2102212464, %v921
  %v934 = vshrl.u32 920167782, %v922
  %v935 = vor.u32 %v933, %v934
  %v936 = vshll.u32 920167782, %v921
  %v937 = vshrl.u32 1326507024, %v922
  %v938 = vor.u32 %v936, %v937
  %vm939 = vcmp.lt.s32.totalorder %v920, 1
  %vm940 = vcmp.lt.s32.totalorder %v920, 2
  %vm941 = vcmp.lt.s32.totalorder %v920, 3
  %vm942 = vcmp.lt.s32.totalorder %v920, 4
  %v943 = vsel %vm939, %v923, %v926
  %v944 = vsel %vm942, %v932, 2102212464
  %v945 = vsel %vm941, %v929, %v944
  %v946 = vsel %vm940, %v943, %v945
  %v947 = vsel %vm939, %v926, %v929
  %v948 = vsel %vm942, %v935, 920167782
  %v949 = vsel %vm941, %v932, %v948
  %v950 = vsel %vm940, %v947, %v949
  %v951 = vsel %vm939, %v929, %v932
  %v952 = vsel %vm942, %v938, 1326507024
  %v953 = vsel %vm941, %v935, %v952
  %v954 = vsel %vm940, %v951, %v953
  %v955 = vshll.u32 %v915, 8
  %v956 = vmul.u32.u64.compose %v955, %v954
  %v957 = vextract.low.u32 %v956
  %v958 = vextract.high.u32 %v956
  %v959 = vmul.u32.u64.compose %v955, %v950
  %v960 = vextract.low.u32 %v959
  %v961 = vextract.high.u32 %v959
  %v962 = vmul.u32 %v955, %v946
  %v963 = vadd.s32 %v958, %v960
  %vm964 = vc.u32 %v958, %v960
  %v965 = vadd.s32 %v961, 1
  %v966 = vsel %vm964, %v965, %v961
  %v967 = vadd.s32 %v962, %v966
  %v968 = vadd.s32 %v967, 536870912
  %v969 = vshrl.u32 %v968, 30
  %v970 = vshll.u32 %v969, 30
  %v971 = vsub.s32 %v967, %v970
  %vm972 = vcmp.lt.s32.totalorder %v971, 0
  %v973 = vsub.s32 0, %v971
  %v974 = vsel %vm972, %v973, %v971
  %v975 = vclz %v974
  %v976 = vsub.s32 %v975, 2
  %vm977 = vcmp.gt.s32.totalorder 0, %v976
  %v978 = vsel %vm977, 0, %v976
  %v979 = vsub.s32 32, %v978
  %v980 = vshll.u32 %v971, %v978
  %v981 = vshrl.u32 %v963, %v979
  %v982 = vor.u32 %v980, %v981
  %v983 = vsub.s32 4294967266, %v978
  %v984 = vadd.s32 %v983, 127
  %v985 = vshll.u32 %v984, 23
  %v986 = vor.u32 4788187, %v985
  %v987 = vand.u32 2147483647, %v986
  %v989 = vcvt.s32.f32 %v982
  %v990 = vmul.f32 %v989, %v987
  %v991 = vxor.u32 %v990, 2147483648
  %v992 = vsel %vm909, %v991, %v990
  %v993 = vsub.s32 4, %v969
  %v994 = vsel %vm909, %v993, %v969
  %v995 = vsel %vm908, %v59, %v992
  %v996 = vsel %vm908, 0, %v994
  %v997 = vcosq.f32.pop %v995
  %v998 = vsinq.f32.pop %v995
  %vm999 = vweird.f32 %v59
  %v1000 = vand.u32 %v996, 3
  %vm1001 = vcmp.lt.s32.totalorder %v1000, 2
  %vm1002 = vcmp.eq.s32.totalorder %v1000, 0
  %v1003 = vxor.u32 %v998, 2147483648
  %v1004 = vsel %vm1002, %v997, %v1003
  %vm1005 = vcmp.eq.s32.totalorder %v1000, 2
  %v1006 = vxor.u32 %v997, 2147483648
  %v1007 = vsel %vm1005, %v1006, %v998
  %v1008 = vsel %vm1001, %v1004, %v1007
  %v1009 = vsel %vm999, nan, %v1008
  %v1010 = vand.u32 2147483647, %v60
  %vm1011 = vcmp.le.f32.partialorder %v1010, 0.7853982
  %vm1012 = vcmp.lt.s32.totalorder %v60, 0
  %v1013 = vand.u32 %v60, 2139095040
  %v1014 = vshrl.u32 %v1013, 23
  %v1015 = vsub.s32 %v1014, 127
  %v1016 = vand.u32 2147483647, %v60
  %v1017 = vand.u32 %v1016, 8388607
  %v1018 = vor.u32 %v1017, 8388608
  %v1019 = vsub.s32 0, %v1018
  %v1020 = vadd.s32 %v1015, 1
  %vm1021 = vcmp.gt.s32.totalorder %v1020, 0
  %v1022 = vsel %vm1021, %v1020, 0
  %v1023 = vshrl.u32 %v1022, 5
  %v1024 = vand.u32 %v1022, 31
  %v1025 = vsub.s32 32, %v1024
  %v1026 = vshrl.u32 683565275, %v1025
  %v1027 = vshll.u32 683565275, %v1024
  %v1028 = vshrl.u32 2475754826, %v1025
  %v1029 = vor.u32 %v1027, %v1028
  %v1030 = vshll.u32 2475754826, %v1024
  %v1031 = vshrl.u32 2131351028, %v1025
  %v1032 = vor.u32 %v1030, %v1031
  %v1033 = vshll.u32 2131351028, %v1024
  %v1034 = vshrl.u32 2102212464, %v1025
  %v1035 = vor.u32 %v1033, %v1034
  %v1036 = vshll.u32 2102212464, %v1024
  %v1037 = vshrl.u32 920167782, %v1025
  %v1038 = vor.u32 %v1036, %v1037
  %v1039 = vshll.u32 920167782, %v1024
  %v1040 = vshrl.u32 1326507024, %v1025
  %v1041 = vor.u32 %v1039, %v1040
  %vm1042 = vcmp.lt.s32.totalorder %v1023, 1
  %vm1043 = vcmp.lt.s32.totalorder %v1023, 2
  %vm1044 = vcmp.lt.s32.totalorder %v1023, 3
  %vm1045 = vcmp.lt.s32.totalorder %v1023, 4
  %v1046 = vsel %vm1042, %v1026, %v1029
  %v1047 = vsel %vm1045, %v1035, 2102212464
  %v1048 = vsel %vm1044, %v1032, %v1047
  %v1049 = vsel %vm1043, %v1046, %v1048
  %v1050 = vsel %vm1042, %v1029, %v1032
  %v1051 = vsel %vm1045, %v1038, 920167782
  %v1052 = vsel %vm1044, %v1035, %v1051
  %v1053 = vsel %vm1043, %v1050, %v1052
  %v1054 = vsel %vm1042, %v1032, %v1035
  %v1055 = vsel %vm1045, %v1041, 1326507024
  %v1056 = vsel %vm1044, %v1038, %v1055
  %v1057 = vsel %vm1043, %v1054, %v1056
  %v1058 = vshll.u32 %v1018, 8
  %v1059 = vmul.u32.u64.compose %v1058, %v1057
  %v1060 = vextract.low.u32 %v1059
  %v1061 = vextract.high.u32 %v1059
  %v1062 = vmul.u32.u64.compose %v1058, %v1053
  %v1063 = vextract.low.u32 %v1062
  %v1064 = vextract.high.u32 %v1062
  %v1065 = vmul.u32 %v1058, %v1049
  %v1066 = vadd.s32 %v1061, %v1063
  %vm1067 = vc.u32 %v1061, %v1063
  %v1068 = vadd.s32 %v1064, 1
  %v1069 = vsel %vm1067, %v1068, %v1064
  %v1070 = vadd.s32 %v1065, %v1069
  %v1071 = vadd.s32 %v1070, 536870912
  %v1072 = vshrl.u32 %v1071, 30
  %v1073 = vshll.u32 %v1072, 30
  %v1074 = vsub.s32 %v1070, %v1073
  %vm1075 = vcmp.lt.s32.totalorder %v1074, 0
  %v1076 = vsub.s32 0, %v1074
  %v1077 = vsel %vm1075, %v1076, %v1074
  %v1078 = vclz %v1077
  %v1079 = vsub.s32 %v1078, 2
  %vm1080 = vcmp.gt.s32.totalorder 0, %v1079
  %v1081 = vsel %vm1080, 0, %v1079
  %v1082 = vsub.s32 32, %v1081
  %v1083 = vshll.u32 %v1074, %v1081
  %v1084 = vshrl.u32 %v1066, %v1082
  %v1085 = vor.u32 %v1083, %v1084
  %v1086 = vsub.s32 4294967266, %v1081
  %v1087 = vadd.s32 %v1086, 127
  %v1088 = vshll.u32 %v1087, 23
  %v1089 = vor.u32 4788187, %v1088
  %v1090 = vand.u32 2147483647, %v1089
  %v1092 = vcvt.s32.f32 %v1085
  %v1093 = vmul.f32 %v1092, %v1090
  %v1094 = vxor.u32 %v1093, 2147483648
  %v1095 = vsel %vm1012, %v1094, %v1093
  %v1096 = vsub.s32 4, %v1072
  %v1097 = vsel %vm1012, %v1096, %v1072
  %v1098 = vsel %vm1011, %v60, %v1095
  %v1099 = vsel %vm1011, 0, %v1097
  %v1100 = vcosq.f32.pop %v1098
  %v1101 = vsinq.f32.pop %v1098
  %vm1102 = vweird.f32 %v60
  %v1103 = vand.u32 %v1099, 3
  %vm1104 = vcmp.lt.s32.totalorder %v1103, 2
  %vm1105 = vcmp.eq.s32.totalorder %v1103, 0
  %v1106 = vxor.u32 %v1101, 2147483648
  %v1107 = vsel %vm1105, %v1100, %v1106
  %vm1108 = vcmp.eq.s32.totalorder %v1103, 2
  %v1109 = vxor.u32 %v1100, 2147483648
  %v1110 = vsel %vm1108, %v1109, %v1101
  %v1111 = vsel %vm1104, %v1107, %v1110
  %v1112 = vsel %vm1102, nan, %v1111
  %v1113 = vand.u32 2147483647, %v61
  %vm1114 = vcmp.le.f32.partialorder %v1113, 0.7853982
  %vm1115 = vcmp.lt.s32.totalorder %v61, 0
  %v1116 = vand.u32 %v61, 2139095040
  %v1117 = vshrl.u32 %v1116, 23
  %v1118 = vsub.s32 %v1117, 127
  %v1119 = vand.u32 2147483647, %v61
  %v1120 = vand.u32 %v1119, 8388607
  %v1121 = vor.u32 %v1120, 8388608
  %v1122 = vsub.s32 0, %v1121
  %v1123 = vadd.s32 %v1118, 1
  %vm1124 = vcmp.gt.s32.totalorder %v1123, 0
  %v1125 = vsel %vm1124, %v1123, 0
  %v1126 = vshrl.u32 %v1125, 5
  %v1127 = vand.u32 %v1125, 31
  %v1128 = vsub.s32 32, %v1127
  %v1129 = vshrl.u32 683565275, %v1128
  %v1130 = vshll.u32 683565275, %v1127
  %v1131 = vshrl.u32 2475754826, %v1128
  %v1132 = vor.u32 %v1130, %v1131
  %v1133 = vshll.u32 2475754826, %v1127
  %v1134 = vshrl.u32 2131351028, %v1128
  %v1135 = vor.u32 %v1133, %v1134
  %v1136 = vshll.u32 2131351028, %v1127
  %v1137 = vshrl.u32 2102212464, %v1128
  %v1138 = vor.u32 %v1136, %v1137
  %v1139 = vshll.u32 2102212464, %v1127
  %v1140 = vshrl.u32 920167782, %v1128
  %v1141 = vor.u32 %v1139, %v1140
  %v1142 = vshll.u32 920167782, %v1127
  %v1143 = vshrl.u32 1326507024, %v1128
  %v1144 = vor.u32 %v1142, %v1143
  %vm1145 = vcmp.lt.s32.totalorder %v1126, 1
  %vm1146 = vcmp.lt.s32.totalorder %v1126, 2
  %vm1147 = vcmp.lt.s32.totalorder %v1126, 3
  %vm1148 = vcmp.lt.s32.totalorder %v1126, 4
  %v1149 = vsel %vm1145, %v1129, %v1132
  %v1150 = vsel %vm1148, %v1138, 2102212464
  %v1151 = vsel %vm1147, %v1135, %v1150
  %v1152 = vsel %vm1146, %v1149, %v1151
  %v1153 = vsel %vm1145, %v1132, %v1135
  %v1154 = vsel %vm1148, %v1141, 920167782
  %v1155 = vsel %vm1147, %v1138, %v1154
  %v1156 = vsel %vm1146, %v1153, %v1155
  %v1157 = vsel %vm1145, %v1135, %v1138
  %v1158 = vsel %vm1148, %v1144, 1326507024
  %v1159 = vsel %vm1147, %v1141, %v1158
  %v1160 = vsel %vm1146, %v1157, %v1159
  %v1161 = vshll.u32 %v1121, 8
  %v1162 = vmul.u32.u64.compose %v1161, %v1160
  %v1163 = vextract.low.u32 %v1162
  %v1164 = vextract.high.u32 %v1162
  %v1165 = vmul.u32.u64.compose %v1161, %v1156
  %v1166 = vextract.low.u32 %v1165
  %v1167 = vextract.high.u32 %v1165
  %v1168 = vmul.u32 %v1161, %v1152
  %v1169 = vadd.s32 %v1164, %v1166
  %vm1170 = vc.u32 %v1164, %v1166
  %v1171 = vadd.s32 %v1167, 1
  %v1172 = vsel %vm1170, %v1171, %v1167
  %v1173 = vadd.s32 %v1168, %v1172
  %v1174 = vadd.s32 %v1173, 536870912
  %v1175 = vshrl.u32 %v1174, 30
  %v1176 = vshll.u32 %v1175, 30
  %v1177 = vsub.s32 %v1173, %v1176
  %vm1178 = vcmp.lt.s32.totalorder %v1177, 0
  %v1179 = vsub.s32 0, %v1177
  %v1180 = vsel %vm1178, %v1179, %v1177
  %v1181 = vclz %v1180
  %v1182 = vsub.s32 %v1181, 2
  %vm1183 = vcmp.gt.s32.totalorder 0, %v1182
  %v1184 = vsel %vm1183, 0, %v1182
  %v1185 = vsub.s32 32, %v1184
  %v1186 = vshll.u32 %v1177, %v1184
  %v1187 = vshrl.u32 %v1169, %v1185
  %v1188 = vor.u32 %v1186, %v1187
  %v1189 = vsub.s32 4294967266, %v1184
  %v1190 = vadd.s32 %v1189, 127
  %v1191 = vshll.u32 %v1190, 23
  %v1192 = vor.u32 4788187, %v1191
  %v1193 = vand.u32 2147483647, %v1192
  %v1195 = vcvt.s32.f32 %v1188
  %v1196 = vmul.f32 %v1195, %v1193
  %v1197 = vxor.u32 %v1196, 2147483648
  %v1198 = vsel %vm1115, %v1197, %v1196
  %v1199 = vsub.s32 4, %v1175
  %v1200 = vsel %vm1115, %v1199, %v1175
  %v1201 = vsel %vm1114, %v61, %v1198
  %v1202 = vsel %vm1114, 0, %v1200
  %v1203 = vcosq.f32.pop %v1201
  %v1204 = vsinq.f32.pop %v1201
  %vm1205 = vweird.f32 %v61
  %v1206 = vand.u32 %v1202, 3
  %vm1207 = vcmp.lt.s32.totalorder %v1206, 2
  %vm1208 = vcmp.eq.s32.totalorder %v1206, 0
  %v1209 = vxor.u32 %v1204, 2147483648
  %v1210 = vsel %vm1208, %v1203, %v1209
  %vm1211 = vcmp.eq.s32.totalorder %v1206, 2
  %v1212 = vxor.u32 %v1203, 2147483648
  %v1213 = vsel %vm1211, %v1212, %v1204
  %v1214 = vsel %vm1207, %v1210, %v1213
  %v1215 = vsel %vm1205, nan, %v1214
  %v1216 = vand.u32 2147483647, %v62
  %vm1217 = vcmp.le.f32.partialorder %v1216, 0.7853982
  %vm1218 = vcmp.lt.s32.totalorder %v62, 0
  %v1219 = vand.u32 %v62, 2139095040
  %v1220 = vshrl.u32 %v1219, 23
  %v1221 = vsub.s32 %v1220, 127
  %v1222 = vand.u32 2147483647, %v62
  %v1223 = vand.u32 %v1222, 8388607
  %v1224 = vor.u32 %v1223, 8388608
  %v1225 = vsub.s32 0, %v1224
  %v1226 = vadd.s32 %v1221, 1
  %vm1227 = vcmp.gt.s32.totalorder %v1226, 0
  %v1228 = vsel %vm1227, %v1226, 0
  %v1229 = vshrl.u32 %v1228, 5
  %v1230 = vand.u32 %v1228, 31
  %v1231 = vsub.s32 32, %v1230
  %v1232 = vshrl.u32 683565275, %v1231
  %v1233 = vshll.u32 683565275, %v1230
  %v1234 = vshrl.u32 2475754826, %v1231
  %v1235 = vor.u32 %v1233, %v1234
  %v1236 = vshll.u32 2475754826, %v1230
  %v1237 = vshrl.u32 2131351028, %v1231
  %v1238 = vor.u32 %v1236, %v1237
  %v1239 = vshll.u32 2131351028, %v1230
  %v1240 = vshrl.u32 2102212464, %v1231
  %v1241 = vor.u32 %v1239, %v1240
  %v1242 = vshll.u32 2102212464, %v1230
  %v1243 = vshrl.u32 920167782, %v1231
  %v1244 = vor.u32 %v1242, %v1243
  %v1245 = vshll.u32 920167782, %v1230
  %v1246 = vshrl.u32 1326507024, %v1231
  %v1247 = vor.u32 %v1245, %v1246
  %vm1248 = vcmp.lt.s32.totalorder %v1229, 1
  %vm1249 = vcmp.lt.s32.totalorder %v1229, 2
  %vm1250 = vcmp.lt.s32.totalorder %v1229, 3
  %vm1251 = vcmp.lt.s32.totalorder %v1229, 4
  %v1252 = vsel %vm1248, %v1232, %v1235
  %v1253 = vsel %vm1251, %v1241, 2102212464
  %v1254 = vsel %vm1250, %v1238, %v1253
  %v1255 = vsel %vm1249, %v1252, %v1254
  %v1256 = vsel %vm1248, %v1235, %v1238
  %v1257 = vsel %vm1251, %v1244, 920167782
  %v1258 = vsel %vm1250, %v1241, %v1257
  %v1259 = vsel %vm1249, %v1256, %v1258
  %v1260 = vsel %vm1248, %v1238, %v1241
  %v1261 = vsel %vm1251, %v1247, 1326507024
  %v1262 = vsel %vm1250, %v1244, %v1261
  %v1263 = vsel %vm1249, %v1260, %v1262
  %v1264 = vshll.u32 %v1224, 8
  %v1265 = vmul.u32.u64.compose %v1264, %v1263
  %v1266 = vextract.low.u32 %v1265
  %v1267 = vextract.high.u32 %v1265
  %v1268 = vmul.u32.u64.compose %v1264, %v1259
  %v1269 = vextract.low.u32 %v1268
  %v1270 = vextract.high.u32 %v1268
  %v1271 = vmul.u32 %v1264, %v1255
  %v1272 = vadd.s32 %v1267, %v1269
  %vm1273 = vc.u32 %v1267, %v1269
  %v1274 = vadd.s32 %v1270, 1
  %v1275 = vsel %vm1273, %v1274, %v1270
  %v1276 = vadd.s32 %v1271, %v1275
  %v1277 = vadd.s32 %v1276, 536870912
  %v1278 = vshrl.u32 %v1277, 30
  %v1279 = vshll.u32 %v1278, 30
  %v1280 = vsub.s32 %v1276, %v1279
  %vm1281 = vcmp.lt.s32.totalorder %v1280, 0
  %v1282 = vsub.s32 0, %v1280
  %v1283 = vsel %vm1281, %v1282, %v1280
  %v1284 = vclz %v1283
  %v1285 = vsub.s32 %v1284, 2
  %vm1286 = vcmp.gt.s32.totalorder 0, %v1285
  %v1287 = vsel %vm1286, 0, %v1285
  %v1288 = vsub.s32 32, %v1287
  %v1289 = vshll.u32 %v1280, %v1287
  %v1290 = vshrl.u32 %v1272, %v1288
  %v1291 = vor.u32 %v1289, %v1290
  %v1292 = vsub.s32 4294967266, %v1287
  %v1293 = vadd.s32 %v1292, 127
  %v1294 = vshll.u32 %v1293, 23
  %v1295 = vor.u32 4788187, %v1294
  %v1296 = vand.u32 2147483647, %v1295
  %v1298 = vcvt.s32.f32 %v1291
  %v1299 = vmul.f32 %v1298, %v1296
  %v1300 = vxor.u32 %v1299, 2147483648
  %v1301 = vsel %vm1218, %v1300, %v1299
  %v1302 = vsub.s32 4, %v1278
  %v1303 = vsel %vm1218, %v1302, %v1278
  %v1304 = vsel %vm1217, %v62, %v1301
  %v1305 = vsel %vm1217, 0, %v1303
  %v1306 = vcosq.f32.pop %v1304
  %v1307 = vsinq.f32.pop %v1304
  %vm1308 = vweird.f32 %v62
  %v1309 = vand.u32 %v1305, 3
  %vm1310 = vcmp.lt.s32.totalorder %v1309, 2
  %vm1311 = vcmp.eq.s32.totalorder %v1309, 0
  %v1312 = vxor.u32 %v1307, 2147483648
  %v1313 = vsel %vm1311, %v1306, %v1312
  %vm1314 = vcmp.eq.s32.totalorder %v1309, 2
  %v1315 = vxor.u32 %v1306, 2147483648
  %v1316 = vsel %vm1314, %v1315, %v1307
  %v1317 = vsel %vm1310, %v1313, %v1316
  %v1318 = vsel %vm1308, nan, %v1317
  %v1319 = vand.u32 2147483647, %v63
  %vm1320 = vcmp.le.f32.partialorder %v1319, 0.7853982
  %vm1321 = vcmp.lt.s32.totalorder %v63, 0
  %v1322 = vand.u32 %v63, 2139095040
  %v1323 = vshrl.u32 %v1322, 23
  %v1324 = vsub.s32 %v1323, 127
  %v1325 = vand.u32 2147483647, %v63
  %v1326 = vand.u32 %v1325, 8388607
  %v1327 = vor.u32 %v1326, 8388608
  %v1328 = vsub.s32 0, %v1327
  %v1329 = vadd.s32 %v1324, 1
  %vm1330 = vcmp.gt.s32.totalorder %v1329, 0
  %v1331 = vsel %vm1330, %v1329, 0
  %v1332 = vshrl.u32 %v1331, 5
  %v1333 = vand.u32 %v1331, 31
  %v1334 = vsub.s32 32, %v1333
  %v1335 = vshrl.u32 683565275, %v1334
  %v1336 = vshll.u32 683565275, %v1333
  %v1337 = vshrl.u32 2475754826, %v1334
  %v1338 = vor.u32 %v1336, %v1337
  %v1339 = vshll.u32 2475754826, %v1333
  %v1340 = vshrl.u32 2131351028, %v1334
  %v1341 = vor.u32 %v1339, %v1340
  %v1342 = vshll.u32 2131351028, %v1333
  %v1343 = vshrl.u32 2102212464, %v1334
  %v1344 = vor.u32 %v1342, %v1343
  %v1345 = vshll.u32 2102212464, %v1333
  %v1346 = vshrl.u32 920167782, %v1334
  %v1347 = vor.u32 %v1345, %v1346
  %v1348 = vshll.u32 920167782, %v1333
  %v1349 = vshrl.u32 1326507024, %v1334
  %v1350 = vor.u32 %v1348, %v1349
  %vm1351 = vcmp.lt.s32.totalorder %v1332, 1
  %vm1352 = vcmp.lt.s32.totalorder %v1332, 2
  %vm1353 = vcmp.lt.s32.totalorder %v1332, 3
  %vm1354 = vcmp.lt.s32.totalorder %v1332, 4
  %v1355 = vsel %vm1351, %v1335, %v1338
  %v1356 = vsel %vm1354, %v1344, 2102212464
  %v1357 = vsel %vm1353, %v1341, %v1356
  %v1358 = vsel %vm1352, %v1355, %v1357
  %v1359 = vsel %vm1351, %v1338, %v1341
  %v1360 = vsel %vm1354, %v1347, 920167782
  %v1361 = vsel %vm1353, %v1344, %v1360
  %v1362 = vsel %vm1352, %v1359, %v1361
  %v1363 = vsel %vm1351, %v1341, %v1344
  %v1364 = vsel %vm1354, %v1350, 1326507024
  %v1365 = vsel %vm1353, %v1347, %v1364
  %v1366 = vsel %vm1352, %v1363, %v1365
  %v1367 = vshll.u32 %v1327, 8
  %v1368 = vmul.u32.u64.compose %v1367, %v1366
  %v1369 = vextract.low.u32 %v1368
  %v1370 = vextract.high.u32 %v1368
  %v1371 = vmul.u32.u64.compose %v1367, %v1362
  %v1372 = vextract.low.u32 %v1371
  %v1373 = vextract.high.u32 %v1371
  %v1374 = vmul.u32 %v1367, %v1358
  %v1375 = vadd.s32 %v1370, %v1372
  %vm1376 = vc.u32 %v1370, %v1372
  %v1377 = vadd.s32 %v1373, 1
  %v1378 = vsel %vm1376, %v1377, %v1373
  %v1379 = vadd.s32 %v1374, %v1378
  %v1380 = vadd.s32 %v1379, 536870912
  %v1381 = vshrl.u32 %v1380, 30
  %v1382 = vshll.u32 %v1381, 30
  %v1383 = vsub.s32 %v1379, %v1382
  %vm1384 = vcmp.lt.s32.totalorder %v1383, 0
  %v1385 = vsub.s32 0, %v1383
  %v1386 = vsel %vm1384, %v1385, %v1383
  %v1387 = vclz %v1386
  %v1388 = vsub.s32 %v1387, 2
  %vm1389 = vcmp.gt.s32.totalorder 0, %v1388
  %v1390 = vsel %vm1389, 0, %v1388
  %v1391 = vsub.s32 32, %v1390
  %v1392 = vshll.u32 %v1383, %v1390
  %v1393 = vshrl.u32 %v1375, %v1391
  %v1394 = vor.u32 %v1392, %v1393
  %v1395 = vsub.s32 4294967266, %v1390
  %v1396 = vadd.s32 %v1395, 127
  %v1397 = vshll.u32 %v1396, 23
  %v1398 = vor.u32 4788187, %v1397
  %v1399 = vand.u32 2147483647, %v1398
  %v1401 = vcvt.s32.f32 %v1394
  %v1402 = vmul.f32 %v1401, %v1399
  %v1403 = vxor.u32 %v1402, 2147483648
  %v1404 = vsel %vm1321, %v1403, %v1402
  %v1405 = vsub.s32 4, %v1381
  %v1406 = vsel %vm1321, %v1405, %v1381
  %v1407 = vsel %vm1320, %v63, %v1404
  %v1408 = vsel %vm1320, 0, %v1406
  %v1409 = vcosq.f32.pop %v1407
  %v1410 = vsinq.f32.pop %v1407
  %vm1411 = vweird.f32 %v63
  %v1412 = vand.u32 %v1408, 3
  %vm1413 = vcmp.lt.s32.totalorder %v1412, 2
  %vm1414 = vcmp.eq.s32.totalorder %v1412, 0
  %v1415 = vxor.u32 %v1410, 2147483648
  %v1416 = vsel %vm1414, %v1409, %v1415
  %vm1417 = vcmp.eq.s32.totalorder %v1412, 2
  %v1418 = vxor.u32 %v1409, 2147483648
  %v1419 = vsel %vm1417, %v1418, %v1410
  %v1420 = vsel %vm1413, %v1416, %v1419
  %v1421 = vsel %vm1411, nan, %v1420
  %v1422 = vand.u32 2147483647, %v64
  %vm1423 = vcmp.le.f32.partialorder %v1422, 0.7853982
  %vm1424 = vcmp.lt.s32.totalorder %v64, 0
  %v1425 = vand.u32 %v64, 2139095040
  %v1426 = vshrl.u32 %v1425, 23
  %v1427 = vsub.s32 %v1426, 127
  %v1428 = vand.u32 2147483647, %v64
  %v1429 = vand.u32 %v1428, 8388607
  %v1430 = vor.u32 %v1429, 8388608
  %v1431 = vsub.s32 0, %v1430
  %v1432 = vadd.s32 %v1427, 1
  %vm1433 = vcmp.gt.s32.totalorder %v1432, 0
  %v1434 = vsel %vm1433, %v1432, 0
  %v1435 = vshrl.u32 %v1434, 5
  %v1436 = vand.u32 %v1434, 31
  %v1437 = vsub.s32 32, %v1436
  %v1438 = vshrl.u32 683565275, %v1437
  %v1439 = vshll.u32 683565275, %v1436
  %v1440 = vshrl.u32 2475754826, %v1437
  %v1441 = vor.u32 %v1439, %v1440
  %v1442 = vshll.u32 2475754826, %v1436
  %v1443 = vshrl.u32 2131351028, %v1437
  %v1444 = vor.u32 %v1442, %v1443
  %v1445 = vshll.u32 2131351028, %v1436
  %v1446 = vshrl.u32 2102212464, %v1437
  %v1447 = vor.u32 %v1445, %v1446
  %v1448 = vshll.u32 2102212464, %v1436
  %v1449 = vshrl.u32 920167782, %v1437
  %v1450 = vor.u32 %v1448, %v1449
  %v1451 = vshll.u32 920167782, %v1436
  %v1452 = vshrl.u32 1326507024, %v1437
  %v1453 = vor.u32 %v1451, %v1452
  %vm1454 = vcmp.lt.s32.totalorder %v1435, 1
  %vm1455 = vcmp.lt.s32.totalorder %v1435, 2
  %vm1456 = vcmp.lt.s32.totalorder %v1435, 3
  %vm1457 = vcmp.lt.s32.totalorder %v1435, 4
  %v1458 = vsel %vm1454, %v1438, %v1441
  %v1459 = vsel %vm1457, %v1447, 2102212464
  %v1460 = vsel %vm1456, %v1444, %v1459
  %v1461 = vsel %vm1455, %v1458, %v1460
  %v1462 = vsel %vm1454, %v1441, %v1444
  %v1463 = vsel %vm1457, %v1450, 920167782
  %v1464 = vsel %vm1456, %v1447, %v1463
  %v1465 = vsel %vm1455, %v1462, %v1464
  %v1466 = vsel %vm1454, %v1444, %v1447
  %v1467 = vsel %vm1457, %v1453, 1326507024
  %v1468 = vsel %vm1456, %v1450, %v1467
  %v1469 = vsel %vm1455, %v1466, %v1468
  %v1470 = vshll.u32 %v1430, 8
  %v1471 = vmul.u32.u64.compose %v1470, %v1469
  %v1472 = vextract.low.u32 %v1471
  %v1473 = vextract.high.u32 %v1471
  %v1474 = vmul.u32.u64.compose %v1470, %v1465
  %v1475 = vextract.low.u32 %v1474
  %v1476 = vextract.high.u32 %v1474
  %v1477 = vmul.u32 %v1470, %v1461
  %v1478 = vadd.s32 %v1473, %v1475
  %vm1479 = vc.u32 %v1473, %v1475
  %v1480 = vadd.s32 %v1476, 1
  %v1481 = vsel %vm1479, %v1480, %v1476
  %v1482 = vadd.s32 %v1477, %v1481
  %v1483 = vadd.s32 %v1482, 536870912
  %v1484 = vshrl.u32 %v1483, 30
  %v1485 = vshll.u32 %v1484, 30
  %v1486 = vsub.s32 %v1482, %v1485
  %vm1487 = vcmp.lt.s32.totalorder %v1486, 0
  %v1488 = vsub.s32 0, %v1486
  %v1489 = vsel %vm1487, %v1488, %v1486
  %v1490 = vclz %v1489
  %v1491 = vsub.s32 %v1490, 2
  %vm1492 = vcmp.gt.s32.totalorder 0, %v1491
  %v1493 = vsel %vm1492, 0, %v1491
  %v1494 = vsub.s32 32, %v1493
  %v1495 = vshll.u32 %v1486, %v1493
  %v1496 = vshrl.u32 %v1478, %v1494
  %v1497 = vor.u32 %v1495, %v1496
  %v1498 = vsub.s32 4294967266, %v1493
  %v1499 = vadd.s32 %v1498, 127
  %v1500 = vshll.u32 %v1499, 23
  %v1501 = vor.u32 4788187, %v1500
  %v1502 = vand.u32 2147483647, %v1501
  %v1504 = vcvt.s32.f32 %v1497
  %v1505 = vmul.f32 %v1504, %v1502
  %v1506 = vxor.u32 %v1505, 2147483648
  %v1507 = vsel %vm1424, %v1506, %v1505
  %v1508 = vsub.s32 4, %v1484
  %v1509 = vsel %vm1424, %v1508, %v1484
  %v1510 = vsel %vm1423, %v64, %v1507
  %v1511 = vsel %vm1423, 0, %v1509
  %v1512 = vcosq.f32.pop %v1510
  %v1513 = vsinq.f32.pop %v1510
  %vm1514 = vweird.f32 %v64
  %v1515 = vand.u32 %v1511, 3
  %vm1516 = vcmp.lt.s32.totalorder %v1515, 2
  %vm1517 = vcmp.eq.s32.totalorder %v1515, 0
  %v1518 = vxor.u32 %v1513, 2147483648
  %v1519 = vsel %vm1517, %v1512, %v1518
  %vm1520 = vcmp.eq.s32.totalorder %v1515, 2
  %v1521 = vxor.u32 %v1512, 2147483648
  %v1522 = vsel %vm1520, %v1521, %v1513
  %v1523 = vsel %vm1516, %v1519, %v1522
  %v1524 = vsel %vm1514, nan, %v1523
  %v1525 = vand.u32 2147483647, %v65
  %vm1526 = vcmp.le.f32.partialorder %v1525, 0.7853982
  %vm1527 = vcmp.lt.s32.totalorder %v65, 0
  %v1528 = vand.u32 %v65, 2139095040
  %v1529 = vshrl.u32 %v1528, 23
  %v1530 = vsub.s32 %v1529, 127
  %v1531 = vand.u32 2147483647, %v65
  %v1532 = vand.u32 %v1531, 8388607
  %v1533 = vor.u32 %v1532, 8388608
  %v1534 = vsub.s32 0, %v1533
  %v1535 = vadd.s32 %v1530, 1
  %vm1536 = vcmp.gt.s32.totalorder %v1535, 0
  %v1537 = vsel %vm1536, %v1535, 0
  %v1538 = vshrl.u32 %v1537, 5
  %v1539 = vand.u32 %v1537, 31
  %v1540 = vsub.s32 32, %v1539
  %v1541 = vshrl.u32 683565275, %v1540
  %v1542 = vshll.u32 683565275, %v1539
  %v1543 = vshrl.u32 2475754826, %v1540
  %v1544 = vor.u32 %v1542, %v1543
  %v1545 = vshll.u32 2475754826, %v1539
  %v1546 = vshrl.u32 2131351028, %v1540
  %v1547 = vor.u32 %v1545, %v1546
  %v1548 = vshll.u32 2131351028, %v1539
  %v1549 = vshrl.u32 2102212464, %v1540
  %v1550 = vor.u32 %v1548, %v1549
  %v1551 = vshll.u32 2102212464, %v1539
  %v1552 = vshrl.u32 920167782, %v1540
  %v1553 = vor.u32 %v1551, %v1552
  %v1554 = vshll.u32 920167782, %v1539
  %v1555 = vshrl.u32 1326507024, %v1540
  %v1556 = vor.u32 %v1554, %v1555
  %vm1557 = vcmp.lt.s32.totalorder %v1538, 1
  %vm1558 = vcmp.lt.s32.totalorder %v1538, 2
  %vm1559 = vcmp.lt.s32.totalorder %v1538, 3
  %vm1560 = vcmp.lt.s32.totalorder %v1538, 4
  %v1561 = vsel %vm1557, %v1541, %v1544
  %v1562 = vsel %vm1560, %v1550, 2102212464
  %v1563 = vsel %vm1559, %v1547, %v1562
  %v1564 = vsel %vm1558, %v1561, %v1563
  %v1565 = vsel %vm1557, %v1544, %v1547
  %v1566 = vsel %vm1560, %v1553, 920167782
  %v1567 = vsel %vm1559, %v1550, %v1566
  %v1568 = vsel %vm1558, %v1565, %v1567
  %v1569 = vsel %vm1557, %v1547, %v1550
  %v1570 = vsel %vm1560, %v1556, 1326507024
  %v1571 = vsel %vm1559, %v1553, %v1570
  %v1572 = vsel %vm1558, %v1569, %v1571
  %v1573 = vshll.u32 %v1533, 8
  %v1574 = vmul.u32.u64.compose %v1573, %v1572
  %v1575 = vextract.low.u32 %v1574
  %v1576 = vextract.high.u32 %v1574
  %v1577 = vmul.u32.u64.compose %v1573, %v1568
  %v1578 = vextract.low.u32 %v1577
  %v1579 = vextract.high.u32 %v1577
  %v1580 = vmul.u32 %v1573, %v1564
  %v1581 = vadd.s32 %v1576, %v1578
  %vm1582 = vc.u32 %v1576, %v1578
  %v1583 = vadd.s32 %v1579, 1
  %v1584 = vsel %vm1582, %v1583, %v1579
  %v1585 = vadd.s32 %v1580, %v1584
  %v1586 = vadd.s32 %v1585, 536870912
  %v1587 = vshrl.u32 %v1586, 30
  %v1588 = vshll.u32 %v1587, 30
  %v1589 = vsub.s32 %v1585, %v1588
  %vm1590 = vcmp.lt.s32.totalorder %v1589, 0
  %v1591 = vsub.s32 0, %v1589
  %v1592 = vsel %vm1590, %v1591, %v1589
  %v1593 = vclz %v1592
  %v1594 = vsub.s32 %v1593, 2
  %vm1595 = vcmp.gt.s32.totalorder 0, %v1594
  %v1596 = vsel %vm1595, 0, %v1594
  %v1597 = vsub.s32 32, %v1596
  %v1598 = vshll.u32 %v1589, %v1596
  %v1599 = vshrl.u32 %v1581, %v1597
  %v1600 = vor.u32 %v1598, %v1599
  %v1601 = vsub.s32 4294967266, %v1596
  %v1602 = vadd.s32 %v1601, 127
  %v1603 = vshll.u32 %v1602, 23
  %v1604 = vor.u32 4788187, %v1603
  %v1605 = vand.u32 2147483647, %v1604
  %v1607 = vcvt.s32.f32 %v1600
  %v1608 = vmul.f32 %v1607, %v1605
  %v1609 = vxor.u32 %v1608, 2147483648
  %v1610 = vsel %vm1527, %v1609, %v1608
  %v1611 = vsub.s32 4, %v1587
  %v1612 = vsel %vm1527, %v1611, %v1587
  %v1613 = vsel %vm1526, %v65, %v1610
  %v1614 = vsel %vm1526, 0, %v1612
  %v1615 = vcosq.f32.pop %v1613
  %v1616 = vsinq.f32.pop %v1613
  %vm1617 = vweird.f32 %v65
  %v1618 = vand.u32 %v1614, 3
  %vm1619 = vcmp.lt.s32.totalorder %v1618, 2
  %vm1620 = vcmp.eq.s32.totalorder %v1618, 0
  %v1621 = vxor.u32 %v1616, 2147483648
  %v1622 = vsel %vm1620, %v1615, %v1621
  %vm1623 = vcmp.eq.s32.totalorder %v1618, 2
  %v1624 = vxor.u32 %v1615, 2147483648
  %v1625 = vsel %vm1623, %v1624, %v1616
  %v1626 = vsel %vm1619, %v1622, %v1625
  %v1627 = vsel %vm1617, nan, %v1626
  %v1628 = vand.u32 2147483647, %v66
  %vm1629 = vcmp.le.f32.partialorder %v1628, 0.7853982
  %vm1630 = vcmp.lt.s32.totalorder %v66, 0
  %v1631 = vand.u32 %v66, 2139095040
  %v1632 = vshrl.u32 %v1631, 23
  %v1633 = vsub.s32 %v1632, 127
  %v1634 = vand.u32 2147483647, %v66
  %v1635 = vand.u32 %v1634, 8388607
  %v1636 = vor.u32 %v1635, 8388608
  %v1637 = vsub.s32 0, %v1636
  %v1638 = vadd.s32 %v1633, 1
  %vm1639 = vcmp.gt.s32.totalorder %v1638, 0
  %v1640 = vsel %vm1639, %v1638, 0
  %v1641 = vshrl.u32 %v1640, 5
  %v1642 = vand.u32 %v1640, 31
  %v1643 = vsub.s32 32, %v1642
  %v1644 = vshrl.u32 683565275, %v1643
  %v1645 = vshll.u32 683565275, %v1642
  %v1646 = vshrl.u32 2475754826, %v1643
  %v1647 = vor.u32 %v1645, %v1646
  %v1648 = vshll.u32 2475754826, %v1642
  %v1649 = vshrl.u32 2131351028, %v1643
  %v1650 = vor.u32 %v1648, %v1649
  %v1651 = vshll.u32 2131351028, %v1642
  %v1652 = vshrl.u32 2102212464, %v1643
  %v1653 = vor.u32 %v1651, %v1652
  %v1654 = vshll.u32 2102212464, %v1642
  %v1655 = vshrl.u32 920167782, %v1643
  %v1656 = vor.u32 %v1654, %v1655
  %v1657 = vshll.u32 920167782, %v1642
  %v1658 = vshrl.u32 1326507024, %v1643
  %v1659 = vor.u32 %v1657, %v1658
  %vm1660 = vcmp.lt.s32.totalorder %v1641, 1
  %vm1661 = vcmp.lt.s32.totalorder %v1641, 2
  %vm1662 = vcmp.lt.s32.totalorder %v1641, 3
  %vm1663 = vcmp.lt.s32.totalorder %v1641, 4
  %v1664 = vsel %vm1660, %v1644, %v1647
  %v1665 = vsel %vm1663, %v1653, 2102212464
  %v1666 = vsel %vm1662, %v1650, %v1665
  %v1667 = vsel %vm1661, %v1664, %v1666
  %v1668 = vsel %vm1660, %v1647, %v1650
  %v1669 = vsel %vm1663, %v1656, 920167782
  %v1670 = vsel %vm1662, %v1653, %v1669
  %v1671 = vsel %vm1661, %v1668, %v1670
  %v1672 = vsel %vm1660, %v1650, %v1653
  %v1673 = vsel %vm1663, %v1659, 1326507024
  %v1674 = vsel %vm1662, %v1656, %v1673
  %v1675 = vsel %vm1661, %v1672, %v1674
  %v1676 = vshll.u32 %v1636, 8
  %v1677 = vmul.u32.u64.compose %v1676, %v1675
  %v1678 = vextract.low.u32 %v1677
  %v1679 = vextract.high.u32 %v1677
  %v1680 = vmul.u32.u64.compose %v1676, %v1671
  %v1681 = vextract.low.u32 %v1680
  %v1682 = vextract.high.u32 %v1680
  %v1683 = vmul.u32 %v1676, %v1667
  %v1684 = vadd.s32 %v1679, %v1681
  %vm1685 = vc.u32 %v1679, %v1681
  %v1686 = vadd.s32 %v1682, 1
  %v1687 = vsel %vm1685, %v1686, %v1682
  %v1688 = vadd.s32 %v1683, %v1687
  %v1689 = vadd.s32 %v1688, 536870912
  %v1690 = vshrl.u32 %v1689, 30
  %v1691 = vshll.u32 %v1690, 30
  %v1692 = vsub.s32 %v1688, %v1691
  %vm1693 = vcmp.lt.s32.totalorder %v1692, 0
  %v1694 = vsub.s32 0, %v1692
  %v1695 = vsel %vm1693, %v1694, %v1692
  %v1696 = vclz %v1695
  %v1697 = vsub.s32 %v1696, 2
  %vm1698 = vcmp.gt.s32.totalorder 0, %v1697
  %v1699 = vsel %vm1698, 0, %v1697
  %v1700 = vsub.s32 32, %v1699
  %v1701 = vshll.u32 %v1692, %v1699
  %v1702 = vshrl.u32 %v1684, %v1700
  %v1703 = vor.u32 %v1701, %v1702
  %v1704 = vsub.s32 4294967266, %v1699
  %v1705 = vadd.s32 %v1704, 127
  %v1706 = vshll.u32 %v1705, 23
  %v1707 = vor.u32 4788187, %v1706
  %v1708 = vand.u32 2147483647, %v1707
  %v1710 = vcvt.s32.f32 %v1703
  %v1711 = vmul.f32 %v1710, %v1708
  %v1712 = vxor.u32 %v1711, 2147483648
  %v1713 = vsel %vm1630, %v1712, %v1711
  %v1714 = vsub.s32 4, %v1690
  %v1715 = vsel %vm1630, %v1714, %v1690
  %v1716 = vsel %vm1629, %v66, %v1713
  %v1717 = vsel %vm1629, 0, %v1715
  %v1718 = vcosq.f32.pop %v1716
  %v1719 = vsinq.f32.pop %v1716
  %vm1720 = vweird.f32 %v66
  %v1721 = vand.u32 %v1717, 3
  %vm1722 = vcmp.lt.s32.totalorder %v1721, 2
  %vm1723 = vcmp.eq.s32.totalorder %v1721, 0
  %v1724 = vxor.u32 %v1719, 2147483648
  %v1725 = vsel %vm1723, %v1718, %v1724
  %vm1726 = vcmp.eq.s32.totalorder %v1721, 2
  %v1727 = vxor.u32 %v1718, 2147483648
  %v1728 = vsel %vm1726, %v1727, %v1719
  %v1729 = vsel %vm1722, %v1725, %v1728
  %v1730 = vsel %vm1720, nan, %v1729
  %v1731 = vand.u32 2147483647, %v51
  %vm1732 = vcmp.le.f32.partialorder %v1731, 0.7853982
  %vm1733 = vcmp.lt.s32.totalorder %v51, 0
  %v1734 = vand.u32 %v51, 2139095040
  %v1735 = vshrl.u32 %v1734, 23
  %v1736 = vsub.s32 %v1735, 127
  %v1737 = vand.u32 2147483647, %v51
  %v1738 = vand.u32 %v1737, 8388607
  %v1739 = vor.u32 %v1738, 8388608
  %v1740 = vsub.s32 0, %v1739
  %v1741 = vadd.s32 %v1736, 1
  %vm1742 = vcmp.gt.s32.totalorder %v1741, 0
  %v1743 = vsel %vm1742, %v1741, 0
  %v1744 = vshrl.u32 %v1743, 5
  %v1745 = vand.u32 %v1743, 31
  %v1746 = vsub.s32 32, %v1745
  %v1747 = vshrl.u32 683565275, %v1746
  %v1748 = vshll.u32 683565275, %v1745
  %v1749 = vshrl.u32 2475754826, %v1746
  %v1750 = vor.u32 %v1748, %v1749
  %v1751 = vshll.u32 2475754826, %v1745
  %v1752 = vshrl.u32 2131351028, %v1746
  %v1753 = vor.u32 %v1751, %v1752
  %v1754 = vshll.u32 2131351028, %v1745
  %v1755 = vshrl.u32 2102212464, %v1746
  %v1756 = vor.u32 %v1754, %v1755
  %v1757 = vshll.u32 2102212464, %v1745
  %v1758 = vshrl.u32 920167782, %v1746
  %v1759 = vor.u32 %v1757, %v1758
  %v1760 = vshll.u32 920167782, %v1745
  %v1761 = vshrl.u32 1326507024, %v1746
  %v1762 = vor.u32 %v1760, %v1761
  %vm1763 = vcmp.lt.s32.totalorder %v1744, 1
  %vm1764 = vcmp.lt.s32.totalorder %v1744, 2
  %vm1765 = vcmp.lt.s32.totalorder %v1744, 3
  %vm1766 = vcmp.lt.s32.totalorder %v1744, 4
  %v1767 = vsel %vm1763, %v1747, %v1750
  %v1768 = vsel %vm1766, %v1756, 2102212464
  %v1769 = vsel %vm1765, %v1753, %v1768
  %v1770 = vsel %vm1764, %v1767, %v1769
  %v1771 = vsel %vm1763, %v1750, %v1753
  %v1772 = vsel %vm1766, %v1759, 920167782
  %v1773 = vsel %vm1765, %v1756, %v1772
  %v1774 = vsel %vm1764, %v1771, %v1773
  %v1775 = vsel %vm1763, %v1753, %v1756
  %v1776 = vsel %vm1766, %v1762, 1326507024
  %v1777 = vsel %vm1765, %v1759, %v1776
  %v1778 = vsel %vm1764, %v1775, %v1777
  %v1779 = vshll.u32 %v1739, 8
  %v1780 = vmul.u32.u64.compose %v1779, %v1778
  %v1781 = vextract.low.u32 %v1780
  %v1782 = vextract.high.u32 %v1780
  %v1783 = vmul.u32.u64.compose %v1779, %v1774
  %v1784 = vextract.low.u32 %v1783
  %v1785 = vextract.high.u32 %v1783
  %v1786 = vmul.u32 %v1779, %v1770
  %v1787 = vadd.s32 %v1782, %v1784
  %vm1788 = vc.u32 %v1782, %v1784
  %v1789 = vadd.s32 %v1785, 1
  %v1790 = vsel %vm1788, %v1789, %v1785
  %v1791 = vadd.s32 %v1786, %v1790
  %v1792 = vadd.s32 %v1791, 536870912
  %v1793 = vshrl.u32 %v1792, 30
  %v1794 = vshll.u32 %v1793, 30
  %v1795 = vsub.s32 %v1791, %v1794
  %vm1796 = vcmp.lt.s32.totalorder %v1795, 0
  %v1797 = vsub.s32 0, %v1795
  %v1798 = vsel %vm1796, %v1797, %v1795
  %v1799 = vclz %v1798
  %v1800 = vsub.s32 %v1799, 2
  %vm1801 = vcmp.gt.s32.totalorder 0, %v1800
  %v1802 = vsel %vm1801, 0, %v1800
  %v1803 = vsub.s32 32, %v1802
  %v1804 = vshll.u32 %v1795, %v1802
  %v1805 = vshrl.u32 %v1787, %v1803
  %v1806 = vor.u32 %v1804, %v1805
  %v1807 = vsub.s32 4294967266, %v1802
  %v1808 = vadd.s32 %v1807, 127
  %v1809 = vshll.u32 %v1808, 23
  %v1810 = vor.u32 4788187, %v1809
  %v1811 = vand.u32 2147483647, %v1810
  %v1813 = vcvt.s32.f32 %v1806
  %v1814 = vmul.f32 %v1813, %v1811
  %v1815 = vxor.u32 %v1814, 2147483648
  %v1816 = vsel %vm1733, %v1815, %v1814
  %v1817 = vsub.s32 4, %v1793
  %v1818 = vsel %vm1733, %v1817, %v1793
  %v1819 = vsel %vm1732, %v51, %v1816
  %v1820 = vsel %vm1732, 0, %v1818
  %v1821 = vcosq.f32.pop %v1819
  %v1822 = vsinq.f32.pop %v1819
  %vm1823 = vweird.f32 %v51
  %v1824 = vadd.s32 %v1820, 3
  %v1825 = vand.u32 %v1824, 3
  %vm1826 = vcmp.lt.s32.totalorder %v1825, 2
  %vm1827 = vcmp.eq.s32.totalorder %v1825, 0
  %v1828 = vxor.u32 %v1822, 2147483648
  %v1829 = vsel %vm1827, %v1821, %v1828
  %vm1830 = vcmp.eq.s32.totalorder %v1825, 2
  %v1831 = vxor.u32 %v1821, 2147483648
  %v1832 = vsel %vm1830, %v1831, %v1822
  %v1833 = vsel %vm1826, %v1829, %v1832
  %v1834 = vsel %vm1823, nan, %v1833
  %v1835 = vand.u32 2147483647, %v52
  %vm1836 = vcmp.le.f32.partialorder %v1835, 0.7853982
  %vm1837 = vcmp.lt.s32.totalorder %v52, 0
  %v1838 = vand.u32 %v52, 2139095040
  %v1839 = vshrl.u32 %v1838, 23
  %v1840 = vsub.s32 %v1839, 127
  %v1841 = vand.u32 2147483647, %v52
  %v1842 = vand.u32 %v1841, 8388607
  %v1843 = vor.u32 %v1842, 8388608
  %v1844 = vsub.s32 0, %v1843
  %v1845 = vadd.s32 %v1840, 1
  %vm1846 = vcmp.gt.s32.totalorder %v1845, 0
  %v1847 = vsel %vm1846, %v1845, 0
  %v1848 = vshrl.u32 %v1847, 5
  %v1849 = vand.u32 %v1847, 31
  %v1850 = vsub.s32 32, %v1849
  %v1851 = vshrl.u32 683565275, %v1850
  %v1852 = vshll.u32 683565275, %v1849
  %v1853 = vshrl.u32 2475754826, %v1850
  %v1854 = vor.u32 %v1852, %v1853
  %v1855 = vshll.u32 2475754826, %v1849
  %v1856 = vshrl.u32 2131351028, %v1850
  %v1857 = vor.u32 %v1855, %v1856
  %v1858 = vshll.u32 2131351028, %v1849
  %v1859 = vshrl.u32 2102212464, %v1850
  %v1860 = vor.u32 %v1858, %v1859
  %v1861 = vshll.u32 2102212464, %v1849
  %v1862 = vshrl.u32 920167782, %v1850
  %v1863 = vor.u32 %v1861, %v1862
  %v1864 = vshll.u32 920167782, %v1849
  %v1865 = vshrl.u32 1326507024, %v1850
  %v1866 = vor.u32 %v1864, %v1865
  %vm1867 = vcmp.lt.s32.totalorder %v1848, 1
  %vm1868 = vcmp.lt.s32.totalorder %v1848, 2
  %vm1869 = vcmp.lt.s32.totalorder %v1848, 3
  %vm1870 = vcmp.lt.s32.totalorder %v1848, 4
  %v1871 = vsel %vm1867, %v1851, %v1854
  %v1872 = vsel %vm1870, %v1860, 2102212464
  %v1873 = vsel %vm1869, %v1857, %v1872
  %v1874 = vsel %vm1868, %v1871, %v1873
  %v1875 = vsel %vm1867, %v1854, %v1857
  %v1876 = vsel %vm1870, %v1863, 920167782
  %v1877 = vsel %vm1869, %v1860, %v1876
  %v1878 = vsel %vm1868, %v1875, %v1877
  %v1879 = vsel %vm1867, %v1857, %v1860
  %v1880 = vsel %vm1870, %v1866, 1326507024
  %v1881 = vsel %vm1869, %v1863, %v1880
  %v1882 = vsel %vm1868, %v1879, %v1881
  %v1883 = vshll.u32 %v1843, 8
  %v1884 = vmul.u32.u64.compose %v1883, %v1882
  %v1885 = vextract.low.u32 %v1884
  %v1886 = vextract.high.u32 %v1884
  %v1887 = vmul.u32.u64.compose %v1883, %v1878
  %v1888 = vextract.low.u32 %v1887
  %v1889 = vextract.high.u32 %v1887
  %v1890 = vmul.u32 %v1883, %v1874
  %v1891 = vadd.s32 %v1886, %v1888
  %vm1892 = vc.u32 %v1886, %v1888
  %v1893 = vadd.s32 %v1889, 1
  %v1894 = vsel %vm1892, %v1893, %v1889
  %v1895 = vadd.s32 %v1890, %v1894
  %v1896 = vadd.s32 %v1895, 536870912
  %v1897 = vshrl.u32 %v1896, 30
  %v1898 = vshll.u32 %v1897, 30
  %v1899 = vsub.s32 %v1895, %v1898
  %vm1900 = vcmp.lt.s32.totalorder %v1899, 0
  %v1901 = vsub.s32 0, %v1899
  %v1902 = vsel %vm1900, %v1901, %v1899
  %v1903 = vclz %v1902
  %v1904 = vsub.s32 %v1903, 2
  %vm1905 = vcmp.gt.s32.totalorder 0, %v1904
  %v1906 = vsel %vm1905, 0, %v1904
  %v1907 = vsub.s32 32, %v1906
  %v1908 = vshll.u32 %v1899, %v1906
  %v1909 = vshrl.u32 %v1891, %v1907
  %v1910 = vor.u32 %v1908, %v1909
  %v1911 = vsub.s32 4294967266, %v1906
  %v1912 = vadd.s32 %v1911, 127
  %v1913 = vshll.u32 %v1912, 23
  %v1914 = vor.u32 4788187, %v1913
  %v1915 = vand.u32 2147483647, %v1914
  %v1917 = vcvt.s32.f32 %v1910
  %v1918 = vmul.f32 %v1917, %v1915
  %v1919 = vxor.u32 %v1918, 2147483648
  %v1920 = vsel %vm1837, %v1919, %v1918
  %v1921 = vsub.s32 4, %v1897
  %v1922 = vsel %vm1837, %v1921, %v1897
  %v1923 = vsel %vm1836, %v52, %v1920
  %v1924 = vsel %vm1836, 0, %v1922
  %v1925 = vcosq.f32.pop %v1923
  %v1926 = vsinq.f32.pop %v1923
  %vm1927 = vweird.f32 %v52
  %v1928 = vadd.s32 %v1924, 3
  %v1929 = vand.u32 %v1928, 3
  %vm1930 = vcmp.lt.s32.totalorder %v1929, 2
  %vm1931 = vcmp.eq.s32.totalorder %v1929, 0
  %v1932 = vxor.u32 %v1926, 2147483648
  %v1933 = vsel %vm1931, %v1925, %v1932
  %vm1934 = vcmp.eq.s32.totalorder %v1929, 2
  %v1935 = vxor.u32 %v1925, 2147483648
  %v1936 = vsel %vm1934, %v1935, %v1926
  %v1937 = vsel %vm1930, %v1933, %v1936
  %v1938 = vsel %vm1927, nan, %v1937
  %v1939 = vand.u32 2147483647, %v53
  %vm1940 = vcmp.le.f32.partialorder %v1939, 0.7853982
  %vm1941 = vcmp.lt.s32.totalorder %v53, 0
  %v1942 = vand.u32 %v53, 2139095040
  %v1943 = vshrl.u32 %v1942, 23
  %v1944 = vsub.s32 %v1943, 127
  %v1945 = vand.u32 2147483647, %v53
  %v1946 = vand.u32 %v1945, 8388607
  %v1947 = vor.u32 %v1946, 8388608
  %v1948 = vsub.s32 0, %v1947
  %v1949 = vadd.s32 %v1944, 1
  %vm1950 = vcmp.gt.s32.totalorder %v1949, 0
  %v1951 = vsel %vm1950, %v1949, 0
  %v1952 = vshrl.u32 %v1951, 5
  %v1953 = vand.u32 %v1951, 31
  %v1954 = vsub.s32 32, %v1953
  %v1955 = vshrl.u32 683565275, %v1954
  %v1956 = vshll.u32 683565275, %v1953
  %v1957 = vshrl.u32 2475754826, %v1954
  %v1958 = vor.u32 %v1956, %v1957
  %v1959 = vshll.u32 2475754826, %v1953
  %v1960 = vshrl.u32 2131351028, %v1954
  %v1961 = vor.u32 %v1959, %v1960
  %v1962 = vshll.u32 2131351028, %v1953
  %v1963 = vshrl.u32 2102212464, %v1954
  %v1964 = vor.u32 %v1962, %v1963
  %v1965 = vshll.u32 2102212464, %v1953
  %v1966 = vshrl.u32 920167782, %v1954
  %v1967 = vor.u32 %v1965, %v1966
  %v1968 = vshll.u32 920167782, %v1953
  %v1969 = vshrl.u32 1326507024, %v1954
  %v1970 = vor.u32 %v1968, %v1969
  %vm1971 = vcmp.lt.s32.totalorder %v1952, 1
  %vm1972 = vcmp.lt.s32.totalorder %v1952, 2
  %vm1973 = vcmp.lt.s32.totalorder %v1952, 3
  %vm1974 = vcmp.lt.s32.totalorder %v1952, 4
  %v1975 = vsel %vm1971, %v1955, %v1958
  %v1976 = vsel %vm1974, %v1964, 2102212464
  %v1977 = vsel %vm1973, %v1961, %v1976
  %v1978 = vsel %vm1972, %v1975, %v1977
  %v1979 = vsel %vm1971, %v1958, %v1961
  %v1980 = vsel %vm1974, %v1967, 920167782
  %v1981 = vsel %vm1973, %v1964, %v1980
  %v1982 = vsel %vm1972, %v1979, %v1981
  %v1983 = vsel %vm1971, %v1961, %v1964
  %v1984 = vsel %vm1974, %v1970, 1326507024
  %v1985 = vsel %vm1973, %v1967, %v1984
  %v1986 = vsel %vm1972, %v1983, %v1985
  %v1987 = vshll.u32 %v1947, 8
  %v1988 = vmul.u32.u64.compose %v1987, %v1986
  %v1989 = vextract.low.u32 %v1988
  %v1990 = vextract.high.u32 %v1988
  %v1991 = vmul.u32.u64.compose %v1987, %v1982
  %v1992 = vextract.low.u32 %v1991
  %v1993 = vextract.high.u32 %v1991
  %v1994 = vmul.u32 %v1987, %v1978
  %v1995 = vadd.s32 %v1990, %v1992
  %vm1996 = vc.u32 %v1990, %v1992
  %v1997 = vadd.s32 %v1993, 1
  %v1998 = vsel %vm1996, %v1997, %v1993
  %v1999 = vadd.s32 %v1994, %v1998
  %v2000 = vadd.s32 %v1999, 536870912
  %v2001 = vshrl.u32 %v2000, 30
  %v2002 = vshll.u32 %v2001, 30
  %v2003 = vsub.s32 %v1999, %v2002
  %vm2004 = vcmp.lt.s32.totalorder %v2003, 0
  %v2005 = vsub.s32 0, %v2003
  %v2006 = vsel %vm2004, %v2005, %v2003
  %v2007 = vclz %v2006
  %v2008 = vsub.s32 %v2007, 2
  %vm2009 = vcmp.gt.s32.totalorder 0, %v2008
  %v2010 = vsel %vm2009, 0, %v2008
  %v2011 = vsub.s32 32, %v2010
  %v2012 = vshll.u32 %v2003, %v2010
  %v2013 = vshrl.u32 %v1995, %v2011
  %v2014 = vor.u32 %v2012, %v2013
  %v2015 = vsub.s32 4294967266, %v2010
  %v2016 = vadd.s32 %v2015, 127
  %v2017 = vshll.u32 %v2016, 23
  %v2018 = vor.u32 4788187, %v2017
  %v2019 = vand.u32 2147483647, %v2018
  %v2021 = vcvt.s32.f32 %v2014
  %v2022 = vmul.f32 %v2021, %v2019
  %v2023 = vxor.u32 %v2022, 2147483648
  %v2024 = vsel %vm1941, %v2023, %v2022
  %v2025 = vsub.s32 4, %v2001
  %v2026 = vsel %vm1941, %v2025, %v2001
  %v2027 = vsel %vm1940, %v53, %v2024
  %v2028 = vsel %vm1940, 0, %v2026
  %v2029 = vcosq.f32.pop %v2027
  %v2030 = vsinq.f32.pop %v2027
  %vm2031 = vweird.f32 %v53
  %v2032 = vadd.s32 %v2028, 3
  %v2033 = vand.u32 %v2032, 3
  %vm2034 = vcmp.lt.s32.totalorder %v2033, 2
  %vm2035 = vcmp.eq.s32.totalorder %v2033, 0
  %v2036 = vxor.u32 %v2030, 2147483648
  %v2037 = vsel %vm2035, %v2029, %v2036
  %vm2038 = vcmp.eq.s32.totalorder %v2033, 2
  %v2039 = vxor.u32 %v2029, 2147483648
  %v2040 = vsel %vm2038, %v2039, %v2030
  %v2041 = vsel %vm2034, %v2037, %v2040
  %v2042 = vsel %vm2031, nan, %v2041
  %v2043 = vand.u32 2147483647, %v54
  %vm2044 = vcmp.le.f32.partialorder %v2043, 0.7853982
  %vm2045 = vcmp.lt.s32.totalorder %v54, 0
  %v2046 = vand.u32 %v54, 2139095040
  %v2047 = vshrl.u32 %v2046, 23
  %v2048 = vsub.s32 %v2047, 127
  %v2049 = vand.u32 2147483647, %v54
  %v2050 = vand.u32 %v2049, 8388607
  %v2051 = vor.u32 %v2050, 8388608
  %v2052 = vsub.s32 0, %v2051
  %v2053 = vadd.s32 %v2048, 1
  %vm2054 = vcmp.gt.s32.totalorder %v2053, 0
  %v2055 = vsel %vm2054, %v2053, 0
  %v2056 = vshrl.u32 %v2055, 5
  %v2057 = vand.u32 %v2055, 31
  %v2058 = vsub.s32 32, %v2057
  %v2059 = vshrl.u32 683565275, %v2058
  %v2060 = vshll.u32 683565275, %v2057
  %v2061 = vshrl.u32 2475754826, %v2058
  %v2062 = vor.u32 %v2060, %v2061
  %v2063 = vshll.u32 2475754826, %v2057
  %v2064 = vshrl.u32 2131351028, %v2058
  %v2065 = vor.u32 %v2063, %v2064
  %v2066 = vshll.u32 2131351028, %v2057
  %v2067 = vshrl.u32 2102212464, %v2058
  %v2068 = vor.u32 %v2066, %v2067
  %v2069 = vshll.u32 2102212464, %v2057
  %v2070 = vshrl.u32 920167782, %v2058
  %v2071 = vor.u32 %v2069, %v2070
  %v2072 = vshll.u32 920167782, %v2057
  %v2073 = vshrl.u32 1326507024, %v2058
  %v2074 = vor.u32 %v2072, %v2073
  %vm2075 = vcmp.lt.s32.totalorder %v2056, 1
  %vm2076 = vcmp.lt.s32.totalorder %v2056, 2
  %vm2077 = vcmp.lt.s32.totalorder %v2056, 3
  %vm2078 = vcmp.lt.s32.totalorder %v2056, 4
  %v2079 = vsel %vm2075, %v2059, %v2062
  %v2080 = vsel %vm2078, %v2068, 2102212464
  %v2081 = vsel %vm2077, %v2065, %v2080
  %v2082 = vsel %vm2076, %v2079, %v2081
  %v2083 = vsel %vm2075, %v2062, %v2065
  %v2084 = vsel %vm2078, %v2071, 920167782
  %v2085 = vsel %vm2077, %v2068, %v2084
  %v2086 = vsel %vm2076, %v2083, %v2085
  %v2087 = vsel %vm2075, %v2065, %v2068
  %v2088 = vsel %vm2078, %v2074, 1326507024
  %v2089 = vsel %vm2077, %v2071, %v2088
  %v2090 = vsel %vm2076, %v2087, %v2089
  %v2091 = vshll.u32 %v2051, 8
  %v2092 = vmul.u32.u64.compose %v2091, %v2090
  %v2093 = vextract.low.u32 %v2092
  %v2094 = vextract.high.u32 %v2092
  %v2095 = vmul.u32.u64.compose %v2091, %v2086
  %v2096 = vextract.low.u32 %v2095
  %v2097 = vextract.high.u32 %v2095
  %v2098 = vmul.u32 %v2091, %v2082
  %v2099 = vadd.s32 %v2094, %v2096
  %vm2100 = vc.u32 %v2094, %v2096
  %v2101 = vadd.s32 %v2097, 1
  %v2102 = vsel %vm2100, %v2101, %v2097
  %v2103 = vadd.s32 %v2098, %v2102
  %v2104 = vadd.s32 %v2103, 536870912
  %v2105 = vshrl.u32 %v2104, 30
  %v2106 = vshll.u32 %v2105, 30
  %v2107 = vsub.s32 %v2103, %v2106
  %vm2108 = vcmp.lt.s32.totalorder %v2107, 0
  %v2109 = vsub.s32 0, %v2107
  %v2110 = vsel %vm2108, %v2109, %v2107
  %v2111 = vclz %v2110
  %v2112 = vsub.s32 %v2111, 2
  %vm2113 = vcmp.gt.s32.totalorder 0, %v2112
  %v2114 = vsel %vm2113, 0, %v2112
  %v2115 = vsub.s32 32, %v2114
  %v2116 = vshll.u32 %v2107, %v2114
  %v2117 = vshrl.u32 %v2099, %v2115
  %v2118 = vor.u32 %v2116, %v2117
  %v2119 = vsub.s32 4294967266, %v2114
  %v2120 = vadd.s32 %v2119, 127
  %v2121 = vshll.u32 %v2120, 23
  %v2122 = vor.u32 4788187, %v2121
  %v2123 = vand.u32 2147483647, %v2122
  %v2125 = vcvt.s32.f32 %v2118
  %v2126 = vmul.f32 %v2125, %v2123
  %v2127 = vxor.u32 %v2126, 2147483648
  %v2128 = vsel %vm2045, %v2127, %v2126
  %v2129 = vsub.s32 4, %v2105
  %v2130 = vsel %vm2045, %v2129, %v2105
  %v2131 = vsel %vm2044, %v54, %v2128
  %v2132 = vsel %vm2044, 0, %v2130
  %v2133 = vcosq.f32.pop %v2131
  %v2134 = vsinq.f32.pop %v2131
  %vm2135 = vweird.f32 %v54
  %v2136 = vadd.s32 %v2132, 3
  %v2137 = vand.u32 %v2136, 3
  %vm2138 = vcmp.lt.s32.totalorder %v2137, 2
  %vm2139 = vcmp.eq.s32.totalorder %v2137, 0
  %v2140 = vxor.u32 %v2134, 2147483648
  %v2141 = vsel %vm2139, %v2133, %v2140
  %vm2142 = vcmp.eq.s32.totalorder %v2137, 2
  %v2143 = vxor.u32 %v2133, 2147483648
  %v2144 = vsel %vm2142, %v2143, %v2134
  %v2145 = vsel %vm2138, %v2141, %v2144
  %v2146 = vsel %vm2135, nan, %v2145
  %v2147 = vand.u32 2147483647, %v55
  %vm2148 = vcmp.le.f32.partialorder %v2147, 0.7853982
  %vm2149 = vcmp.lt.s32.totalorder %v55, 0
  %v2150 = vand.u32 %v55, 2139095040
  %v2151 = vshrl.u32 %v2150, 23
  %v2152 = vsub.s32 %v2151, 127
  %v2153 = vand.u32 2147483647, %v55
  %v2154 = vand.u32 %v2153, 8388607
  %v2155 = vor.u32 %v2154, 8388608
  %v2156 = vsub.s32 0, %v2155
  %v2157 = vadd.s32 %v2152, 1
  %vm2158 = vcmp.gt.s32.totalorder %v2157, 0
  %v2159 = vsel %vm2158, %v2157, 0
  %v2160 = vshrl.u32 %v2159, 5
  %v2161 = vand.u32 %v2159, 31
  %v2162 = vsub.s32 32, %v2161
  %v2163 = vshrl.u32 683565275, %v2162
  %v2164 = vshll.u32 683565275, %v2161
  %v2165 = vshrl.u32 2475754826, %v2162
  %v2166 = vor.u32 %v2164, %v2165
  %v2167 = vshll.u32 2475754826, %v2161
  %v2168 = vshrl.u32 2131351028, %v2162
  %v2169 = vor.u32 %v2167, %v2168
  %v2170 = vshll.u32 2131351028, %v2161
  %v2171 = vshrl.u32 2102212464, %v2162
  %v2172 = vor.u32 %v2170, %v2171
  %v2173 = vshll.u32 2102212464, %v2161
  %v2174 = vshrl.u32 920167782, %v2162
  %v2175 = vor.u32 %v2173, %v2174
  %v2176 = vshll.u32 920167782, %v2161
  %v2177 = vshrl.u32 1326507024, %v2162
  %v2178 = vor.u32 %v2176, %v2177
  %vm2179 = vcmp.lt.s32.totalorder %v2160, 1
  %vm2180 = vcmp.lt.s32.totalorder %v2160, 2
  %vm2181 = vcmp.lt.s32.totalorder %v2160, 3
  %vm2182 = vcmp.lt.s32.totalorder %v2160, 4
  %v2183 = vsel %vm2179, %v2163, %v2166
  %v2184 = vsel %vm2182, %v2172, 2102212464
  %v2185 = vsel %vm2181, %v2169, %v2184
  %v2186 = vsel %vm2180, %v2183, %v2185
  %v2187 = vsel %vm2179, %v2166, %v2169
  %v2188 = vsel %vm2182, %v2175, 920167782
  %v2189 = vsel %vm2181, %v2172, %v2188
  %v2190 = vsel %vm2180, %v2187, %v2189
  %v2191 = vsel %vm2179, %v2169, %v2172
  %v2192 = vsel %vm2182, %v2178, 1326507024
  %v2193 = vsel %vm2181, %v2175, %v2192
  %v2194 = vsel %vm2180, %v2191, %v2193
  %v2195 = vshll.u32 %v2155, 8
  %v2196 = vmul.u32.u64.compose %v2195, %v2194
  %v2197 = vextract.low.u32 %v2196
  %v2198 = vextract.high.u32 %v2196
  %v2199 = vmul.u32.u64.compose %v2195, %v2190
  %v2200 = vextract.low.u32 %v2199
  %v2201 = vextract.high.u32 %v2199
  %v2202 = vmul.u32 %v2195, %v2186
  %v2203 = vadd.s32 %v2198, %v2200
  %vm2204 = vc.u32 %v2198, %v2200
  %v2205 = vadd.s32 %v2201, 1
  %v2206 = vsel %vm2204, %v2205, %v2201
  %v2207 = vadd.s32 %v2202, %v2206
  %v2208 = vadd.s32 %v2207, 536870912
  %v2209 = vshrl.u32 %v2208, 30
  %v2210 = vshll.u32 %v2209, 30
  %v2211 = vsub.s32 %v2207, %v2210
  %vm2212 = vcmp.lt.s32.totalorder %v2211, 0
  %v2213 = vsub.s32 0, %v2211
  %v2214 = vsel %vm2212, %v2213, %v2211
  %v2215 = vclz %v2214
  %v2216 = vsub.s32 %v2215, 2
  %vm2217 = vcmp.gt.s32.totalorder 0, %v2216
  %v2218 = vsel %vm2217, 0, %v2216
  %v2219 = vsub.s32 32, %v2218
  %v2220 = vshll.u32 %v2211, %v2218
  %v2221 = vshrl.u32 %v2203, %v2219
  %v2222 = vor.u32 %v2220, %v2221
  %v2223 = vsub.s32 4294967266, %v2218
  %v2224 = vadd.s32 %v2223, 127
  %v2225 = vshll.u32 %v2224, 23
  %v2226 = vor.u32 4788187, %v2225
  %v2227 = vand.u32 2147483647, %v2226
  %v2229 = vcvt.s32.f32 %v2222
  %v2230 = vmul.f32 %v2229, %v2227
  %v2231 = vxor.u32 %v2230, 2147483648
  %v2232 = vsel %vm2149, %v2231, %v2230
  %v2233 = vsub.s32 4, %v2209
  %v2234 = vsel %vm2149, %v2233, %v2209
  %v2235 = vsel %vm2148, %v55, %v2232
  %v2236 = vsel %vm2148, 0, %v2234
  %v2237 = vcosq.f32.pop %v2235
  %v2238 = vsinq.f32.pop %v2235
  %vm2239 = vweird.f32 %v55
  %v2240 = vadd.s32 %v2236, 3
  %v2241 = vand.u32 %v2240, 3
  %vm2242 = vcmp.lt.s32.totalorder %v2241, 2
  %vm2243 = vcmp.eq.s32.totalorder %v2241, 0
  %v2244 = vxor.u32 %v2238, 2147483648
  %v2245 = vsel %vm2243, %v2237, %v2244
  %vm2246 = vcmp.eq.s32.totalorder %v2241, 2
  %v2247 = vxor.u32 %v2237, 2147483648
  %v2248 = vsel %vm2246, %v2247, %v2238
  %v2249 = vsel %vm2242, %v2245, %v2248
  %v2250 = vsel %vm2239, nan, %v2249
  %v2251 = vand.u32 2147483647, %v56
  %vm2252 = vcmp.le.f32.partialorder %v2251, 0.7853982
  %vm2253 = vcmp.lt.s32.totalorder %v56, 0
  %v2254 = vand.u32 %v56, 2139095040
  %v2255 = vshrl.u32 %v2254, 23
  %v2256 = vsub.s32 %v2255, 127
  %v2257 = vand.u32 2147483647, %v56
  %v2258 = vand.u32 %v2257, 8388607
  %v2259 = vor.u32 %v2258, 8388608
  %v2260 = vsub.s32 0, %v2259
  %v2261 = vadd.s32 %v2256, 1
  %vm2262 = vcmp.gt.s32.totalorder %v2261, 0
  %v2263 = vsel %vm2262, %v2261, 0
  %v2264 = vshrl.u32 %v2263, 5
  %v2265 = vand.u32 %v2263, 31
  %v2266 = vsub.s32 32, %v2265
  %v2267 = vshrl.u32 683565275, %v2266
  %v2268 = vshll.u32 683565275, %v2265
  %v2269 = vshrl.u32 2475754826, %v2266
  %v2270 = vor.u32 %v2268, %v2269
  %v2271 = vshll.u32 2475754826, %v2265
  %v2272 = vshrl.u32 2131351028, %v2266
  %v2273 = vor.u32 %v2271, %v2272
  %v2274 = vshll.u32 2131351028, %v2265
  %v2275 = vshrl.u32 2102212464, %v2266
  %v2276 = vor.u32 %v2274, %v2275
  %v2277 = vshll.u32 2102212464, %v2265
  %v2278 = vshrl.u32 920167782, %v2266
  %v2279 = vor.u32 %v2277, %v2278
  %v2280 = vshll.u32 920167782, %v2265
  %v2281 = vshrl.u32 1326507024, %v2266
  %v2282 = vor.u32 %v2280, %v2281
  %vm2283 = vcmp.lt.s32.totalorder %v2264, 1
  %vm2284 = vcmp.lt.s32.totalorder %v2264, 2
  %vm2285 = vcmp.lt.s32.totalorder %v2264, 3
  %vm2286 = vcmp.lt.s32.totalorder %v2264, 4
  %v2287 = vsel %vm2283, %v2267, %v2270
  %v2288 = vsel %vm2286, %v2276, 2102212464
  %v2289 = vsel %vm2285, %v2273, %v2288
  %v2290 = vsel %vm2284, %v2287, %v2289
  %v2291 = vsel %vm2283, %v2270, %v2273
  %v2292 = vsel %vm2286, %v2279, 920167782
  %v2293 = vsel %vm2285, %v2276, %v2292
  %v2294 = vsel %vm2284, %v2291, %v2293
  %v2295 = vsel %vm2283, %v2273, %v2276
  %v2296 = vsel %vm2286, %v2282, 1326507024
  %v2297 = vsel %vm2285, %v2279, %v2296
  %v2298 = vsel %vm2284, %v2295, %v2297
  %v2299 = vshll.u32 %v2259, 8
  %v2300 = vmul.u32.u64.compose %v2299, %v2298
  %v2301 = vextract.low.u32 %v2300
  %v2302 = vextract.high.u32 %v2300
  %v2303 = vmul.u32.u64.compose %v2299, %v2294
  %v2304 = vextract.low.u32 %v2303
  %v2305 = vextract.high.u32 %v2303
  %v2306 = vmul.u32 %v2299, %v2290
  %v2307 = vadd.s32 %v2302, %v2304
  %vm2308 = vc.u32 %v2302, %v2304
  %v2309 = vadd.s32 %v2305, 1
  %v2310 = vsel %vm2308, %v2309, %v2305
  %v2311 = vadd.s32 %v2306, %v2310
  %v2312 = vadd.s32 %v2311, 536870912
  %v2313 = vshrl.u32 %v2312, 30
  %v2314 = vshll.u32 %v2313, 30
  %v2315 = vsub.s32 %v2311, %v2314
  %vm2316 = vcmp.lt.s32.totalorder %v2315, 0
  %v2317 = vsub.s32 0, %v2315
  %v2318 = vsel %vm2316, %v2317, %v2315
  %v2319 = vclz %v2318
  %v2320 = vsub.s32 %v2319, 2
  %vm2321 = vcmp.gt.s32.totalorder 0, %v2320
  %v2322 = vsel %vm2321, 0, %v2320
  %v2323 = vsub.s32 32, %v2322
  %v2324 = vshll.u32 %v2315, %v2322
  %v2325 = vshrl.u32 %v2307, %v2323
  %v2326 = vor.u32 %v2324, %v2325
  %v2327 = vsub.s32 4294967266, %v2322
  %v2328 = vadd.s32 %v2327, 127
  %v2329 = vshll.u32 %v2328, 23
  %v2330 = vor.u32 4788187, %v2329
  %v2331 = vand.u32 2147483647, %v2330
  %v2333 = vcvt.s32.f32 %v2326
  %v2334 = vmul.f32 %v2333, %v2331
  %v2335 = vxor.u32 %v2334, 2147483648
  %v2336 = vsel %vm2253, %v2335, %v2334
  %v2337 = vsub.s32 4, %v2313
  %v2338 = vsel %vm2253, %v2337, %v2313
  %v2339 = vsel %vm2252, %v56, %v2336
  %v2340 = vsel %vm2252, 0, %v2338
  %v2341 = vcosq.f32.pop %v2339
  %v2342 = vsinq.f32.pop %v2339
  %vm2343 = vweird.f32 %v56
  %v2344 = vadd.s32 %v2340, 3
  %v2345 = vand.u32 %v2344, 3
  %vm2346 = vcmp.lt.s32.totalorder %v2345, 2
  %vm2347 = vcmp.eq.s32.totalorder %v2345, 0
  %v2348 = vxor.u32 %v2342, 2147483648
  %v2349 = vsel %vm2347, %v2341, %v2348
  %vm2350 = vcmp.eq.s32.totalorder %v2345, 2
  %v2351 = vxor.u32 %v2341, 2147483648
  %v2352 = vsel %vm2350, %v2351, %v2342
  %v2353 = vsel %vm2346, %v2349, %v2352
  %v2354 = vsel %vm2343, nan, %v2353
  %v2355 = vand.u32 2147483647, %v57
  %vm2356 = vcmp.le.f32.partialorder %v2355, 0.7853982
  %vm2357 = vcmp.lt.s32.totalorder %v57, 0
  %v2358 = vand.u32 %v57, 2139095040
  %v2359 = vshrl.u32 %v2358, 23
  %v2360 = vsub.s32 %v2359, 127
  %v2361 = vand.u32 2147483647, %v57
  %v2362 = vand.u32 %v2361, 8388607
  %v2363 = vor.u32 %v2362, 8388608
  %v2364 = vsub.s32 0, %v2363
  %v2365 = vadd.s32 %v2360, 1
  %vm2366 = vcmp.gt.s32.totalorder %v2365, 0
  %v2367 = vsel %vm2366, %v2365, 0
  %v2368 = vshrl.u32 %v2367, 5
  %v2369 = vand.u32 %v2367, 31
  %v2370 = vsub.s32 32, %v2369
  %v2371 = vshrl.u32 683565275, %v2370
  %v2372 = vshll.u32 683565275, %v2369
  %v2373 = vshrl.u32 2475754826, %v2370
  %v2374 = vor.u32 %v2372, %v2373
  %v2375 = vshll.u32 2475754826, %v2369
  %v2376 = vshrl.u32 2131351028, %v2370
  %v2377 = vor.u32 %v2375, %v2376
  %v2378 = vshll.u32 2131351028, %v2369
  %v2379 = vshrl.u32 2102212464, %v2370
  %v2380 = vor.u32 %v2378, %v2379
  %v2381 = vshll.u32 2102212464, %v2369
  %v2382 = vshrl.u32 920167782, %v2370
  %v2383 = vor.u32 %v2381, %v2382
  %v2384 = vshll.u32 920167782, %v2369
  %v2385 = vshrl.u32 1326507024, %v2370
  %v2386 = vor.u32 %v2384, %v2385
  %vm2387 = vcmp.lt.s32.totalorder %v2368, 1
  %vm2388 = vcmp.lt.s32.totalorder %v2368, 2
  %vm2389 = vcmp.lt.s32.totalorder %v2368, 3
  %vm2390 = vcmp.lt.s32.totalorder %v2368, 4
  %v2391 = vsel %vm2387, %v2371, %v2374
  %v2392 = vsel %vm2390, %v2380, 2102212464
  %v2393 = vsel %vm2389, %v2377, %v2392
  %v2394 = vsel %vm2388, %v2391, %v2393
  %v2395 = vsel %vm2387, %v2374, %v2377
  %v2396 = vsel %vm2390, %v2383, 920167782
  %v2397 = vsel %vm2389, %v2380, %v2396
  %v2398 = vsel %vm2388, %v2395, %v2397
  %v2399 = vsel %vm2387, %v2377, %v2380
  %v2400 = vsel %vm2390, %v2386, 1326507024
  %v2401 = vsel %vm2389, %v2383, %v2400
  %v2402 = vsel %vm2388, %v2399, %v2401
  %v2403 = vshll.u32 %v2363, 8
  %v2404 = vmul.u32.u64.compose %v2403, %v2402
  %v2405 = vextract.low.u32 %v2404
  %v2406 = vextract.high.u32 %v2404
  %v2407 = vmul.u32.u64.compose %v2403, %v2398
  %v2408 = vextract.low.u32 %v2407
  %v2409 = vextract.high.u32 %v2407
  %v2410 = vmul.u32 %v2403, %v2394
  %v2411 = vadd.s32 %v2406, %v2408
  %vm2412 = vc.u32 %v2406, %v2408
  %v2413 = vadd.s32 %v2409, 1
  %v2414 = vsel %vm2412, %v2413, %v2409
  %v2415 = vadd.s32 %v2410, %v2414
  %v2416 = vadd.s32 %v2415, 536870912
  %v2417 = vshrl.u32 %v2416, 30
  %v2418 = vshll.u32 %v2417, 30
  %v2419 = vsub.s32 %v2415, %v2418
  %vm2420 = vcmp.lt.s32.totalorder %v2419, 0
  %v2421 = vsub.s32 0, %v2419
  %v2422 = vsel %vm2420, %v2421, %v2419
  %v2423 = vclz %v2422
  %v2424 = vsub.s32 %v2423, 2
  %vm2425 = vcmp.gt.s32.totalorder 0, %v2424
  %v2426 = vsel %vm2425, 0, %v2424
  %v2427 = vsub.s32 32, %v2426
  %v2428 = vshll.u32 %v2419, %v2426
  %v2429 = vshrl.u32 %v2411, %v2427
  %v2430 = vor.u32 %v2428, %v2429
  %v2431 = vsub.s32 4294967266, %v2426
  %v2432 = vadd.s32 %v2431, 127
  %v2433 = vshll.u32 %v2432, 23
  %v2434 = vor.u32 4788187, %v2433
  %v2435 = vand.u32 2147483647, %v2434
  %v2437 = vcvt.s32.f32 %v2430
  %v2438 = vmul.f32 %v2437, %v2435
  %v2439 = vxor.u32 %v2438, 2147483648
  %v2440 = vsel %vm2357, %v2439, %v2438
  %v2441 = vsub.s32 4, %v2417
  %v2442 = vsel %vm2357, %v2441, %v2417
  %v2443 = vsel %vm2356, %v57, %v2440
  %v2444 = vsel %vm2356, 0, %v2442
  %v2445 = vcosq.f32.pop %v2443
  %v2446 = vsinq.f32.pop %v2443
  %vm2447 = vweird.f32 %v57
  %v2448 = vadd.s32 %v2444, 3
  %v2449 = vand.u32 %v2448, 3
  %vm2450 = vcmp.lt.s32.totalorder %v2449, 2
  %vm2451 = vcmp.eq.s32.totalorder %v2449, 0
  %v2452 = vxor.u32 %v2446, 2147483648
  %v2453 = vsel %vm2451, %v2445, %v2452
  %vm2454 = vcmp.eq.s32.totalorder %v2449, 2
  %v2455 = vxor.u32 %v2445, 2147483648
  %v2456 = vsel %vm2454, %v2455, %v2446
  %v2457 = vsel %vm2450, %v2453, %v2456
  %v2458 = vsel %vm2447, nan, %v2457
  %v2459 = vand.u32 2147483647, %v58
  %vm2460 = vcmp.le.f32.partialorder %v2459, 0.7853982
  %vm2461 = vcmp.lt.s32.totalorder %v58, 0
  %v2462 = vand.u32 %v58, 2139095040
  %v2463 = vshrl.u32 %v2462, 23
  %v2464 = vsub.s32 %v2463, 127
  %v2465 = vand.u32 2147483647, %v58
  %v2466 = vand.u32 %v2465, 8388607
  %v2467 = vor.u32 %v2466, 8388608
  %v2468 = vsub.s32 0, %v2467
  %v2469 = vadd.s32 %v2464, 1
  %vm2470 = vcmp.gt.s32.totalorder %v2469, 0
  %v2471 = vsel %vm2470, %v2469, 0
  %v2472 = vshrl.u32 %v2471, 5
  %v2473 = vand.u32 %v2471, 31
  %v2474 = vsub.s32 32, %v2473
  %v2475 = vshrl.u32 683565275, %v2474
  %v2476 = vshll.u32 683565275, %v2473
  %v2477 = vshrl.u32 2475754826, %v2474
  %v2478 = vor.u32 %v2476, %v2477
  %v2479 = vshll.u32 2475754826, %v2473
  %v2480 = vshrl.u32 2131351028, %v2474
  %v2481 = vor.u32 %v2479, %v2480
  %v2482 = vshll.u32 2131351028, %v2473
  %v2483 = vshrl.u32 2102212464, %v2474
  %v2484 = vor.u32 %v2482, %v2483
  %v2485 = vshll.u32 2102212464, %v2473
  %v2486 = vshrl.u32 920167782, %v2474
  %v2487 = vor.u32 %v2485, %v2486
  %v2488 = vshll.u32 920167782, %v2473
  %v2489 = vshrl.u32 1326507024, %v2474
  %v2490 = vor.u32 %v2488, %v2489
  %vm2491 = vcmp.lt.s32.totalorder %v2472, 1
  %vm2492 = vcmp.lt.s32.totalorder %v2472, 2
  %vm2493 = vcmp.lt.s32.totalorder %v2472, 3
  %vm2494 = vcmp.lt.s32.totalorder %v2472, 4
  %v2495 = vsel %vm2491, %v2475, %v2478
  %v2496 = vsel %vm2494, %v2484, 2102212464
  %v2497 = vsel %vm2493, %v2481, %v2496
  %v2498 = vsel %vm2492, %v2495, %v2497
  %v2499 = vsel %vm2491, %v2478, %v2481
  %v2500 = vsel %vm2494, %v2487, 920167782
  %v2501 = vsel %vm2493, %v2484, %v2500
  %v2502 = vsel %vm2492, %v2499, %v2501
  %v2503 = vsel %vm2491, %v2481, %v2484
  %v2504 = vsel %vm2494, %v2490, 1326507024
  %v2505 = vsel %vm2493, %v2487, %v2504
  %v2506 = vsel %vm2492, %v2503, %v2505
  %v2507 = vshll.u32 %v2467, 8
  %v2508 = vmul.u32.u64.compose %v2507, %v2506
  %v2509 = vextract.low.u32 %v2508
  %v2510 = vextract.high.u32 %v2508
  %v2511 = vmul.u32.u64.compose %v2507, %v2502
  %v2512 = vextract.low.u32 %v2511
  %v2513 = vextract.high.u32 %v2511
  %v2514 = vmul.u32 %v2507, %v2498
  %v2515 = vadd.s32 %v2510, %v2512
  %vm2516 = vc.u32 %v2510, %v2512
  %v2517 = vadd.s32 %v2513, 1
  %v2518 = vsel %vm2516, %v2517, %v2513
  %v2519 = vadd.s32 %v2514, %v2518
  %v2520 = vadd.s32 %v2519, 536870912
  %v2521 = vshrl.u32 %v2520, 30
  %v2522 = vshll.u32 %v2521, 30
  %v2523 = vsub.s32 %v2519, %v2522
  %vm2524 = vcmp.lt.s32.totalorder %v2523, 0
  %v2525 = vsub.s32 0, %v2523
  %v2526 = vsel %vm2524, %v2525, %v2523
  %v2527 = vclz %v2526
  %v2528 = vsub.s32 %v2527, 2
  %vm2529 = vcmp.gt.s32.totalorder 0, %v2528
  %v2530 = vsel %vm2529, 0, %v2528
  %v2531 = vsub.s32 32, %v2530
  %v2532 = vshll.u32 %v2523, %v2530
  %v2533 = vshrl.u32 %v2515, %v2531
  %v2534 = vor.u32 %v2532, %v2533
  %v2535 = vsub.s32 4294967266, %v2530
  %v2536 = vadd.s32 %v2535, 127
  %v2537 = vshll.u32 %v2536, 23
  %v2538 = vor.u32 4788187, %v2537
  %v2539 = vand.u32 2147483647, %v2538
  %v2541 = vcvt.s32.f32 %v2534
  %v2542 = vmul.f32 %v2541, %v2539
  %v2543 = vxor.u32 %v2542, 2147483648
  %v2544 = vsel %vm2461, %v2543, %v2542
  %v2545 = vsub.s32 4, %v2521
  %v2546 = vsel %vm2461, %v2545, %v2521
  %v2547 = vsel %vm2460, %v58, %v2544
  %v2548 = vsel %vm2460, 0, %v2546
  %v2549 = vcosq.f32.pop %v2547
  %v2550 = vsinq.f32.pop %v2547
  %vm2551 = vweird.f32 %v58
  %v2552 = vadd.s32 %v2548, 3
  %v2553 = vand.u32 %v2552, 3
  %vm2554 = vcmp.lt.s32.totalorder %v2553, 2
  %vm2555 = vcmp.eq.s32.totalorder %v2553, 0
  %v2556 = vxor.u32 %v2550, 2147483648
  %v2557 = vsel %vm2555, %v2549, %v2556
  %vm2558 = vcmp.eq.s32.totalorder %v2553, 2
  %v2559 = vxor.u32 %v2549, 2147483648
  %v2560 = vsel %vm2558, %v2559, %v2550
  %v2561 = vsel %vm2554, %v2557, %v2560
  %v2562 = vsel %vm2551, nan, %v2561
  %v2563 = vand.u32 2147483647, %v59
  %vm2564 = vcmp.le.f32.partialorder %v2563, 0.7853982
  %vm2565 = vcmp.lt.s32.totalorder %v59, 0
  %v2566 = vand.u32 %v59, 2139095040
  %v2567 = vshrl.u32 %v2566, 23
  %v2568 = vsub.s32 %v2567, 127
  %v2569 = vand.u32 2147483647, %v59
  %v2570 = vand.u32 %v2569, 8388607
  %v2571 = vor.u32 %v2570, 8388608
  %v2572 = vsub.s32 0, %v2571
  %v2573 = vadd.s32 %v2568, 1
  %vm2574 = vcmp.gt.s32.totalorder %v2573, 0
  %v2575 = vsel %vm2574, %v2573, 0
  %v2576 = vshrl.u32 %v2575, 5
  %v2577 = vand.u32 %v2575, 31
  %v2578 = vsub.s32 32, %v2577
  %v2579 = vshrl.u32 683565275, %v2578
  %v2580 = vshll.u32 683565275, %v2577
  %v2581 = vshrl.u32 2475754826, %v2578
  %v2582 = vor.u32 %v2580, %v2581
  %v2583 = vshll.u32 2475754826, %v2577
  %v2584 = vshrl.u32 2131351028, %v2578
  %v2585 = vor.u32 %v2583, %v2584
  %v2586 = vshll.u32 2131351028, %v2577
  %v2587 = vshrl.u32 2102212464, %v2578
  %v2588 = vor.u32 %v2586, %v2587
  %v2589 = vshll.u32 2102212464, %v2577
  %v2590 = vshrl.u32 920167782, %v2578
  %v2591 = vor.u32 %v2589, %v2590
  %v2592 = vshll.u32 920167782, %v2577
  %v2593 = vshrl.u32 1326507024, %v2578
  %v2594 = vor.u32 %v2592, %v2593
  %vm2595 = vcmp.lt.s32.totalorder %v2576, 1
  %vm2596 = vcmp.lt.s32.totalorder %v2576, 2
  %vm2597 = vcmp.lt.s32.totalorder %v2576, 3
  %vm2598 = vcmp.lt.s32.totalorder %v2576, 4
  %v2599 = vsel %vm2595, %v2579, %v2582
  %v2600 = vsel %vm2598, %v2588, 2102212464
  %v2601 = vsel %vm2597, %v2585, %v2600
  %v2602 = vsel %vm2596, %v2599, %v2601
  %v2603 = vsel %vm2595, %v2582, %v2585
  %v2604 = vsel %vm2598, %v2591, 920167782
  %v2605 = vsel %vm2597, %v2588, %v2604
  %v2606 = vsel %vm2596, %v2603, %v2605
  %v2607 = vsel %vm2595, %v2585, %v2588
  %v2608 = vsel %vm2598, %v2594, 1326507024
  %v2609 = vsel %vm2597, %v2591, %v2608
  %v2610 = vsel %vm2596, %v2607, %v2609
  %v2611 = vshll.u32 %v2571, 8
  %v2612 = vmul.u32.u64.compose %v2611, %v2610
  %v2613 = vextract.low.u32 %v2612
  %v2614 = vextract.high.u32 %v2612
  %v2615 = vmul.u32.u64.compose %v2611, %v2606
  %v2616 = vextract.low.u32 %v2615
  %v2617 = vextract.high.u32 %v2615
  %v2618 = vmul.u32 %v2611, %v2602
  %v2619 = vadd.s32 %v2614, %v2616
  %vm2620 = vc.u32 %v2614, %v2616
  %v2621 = vadd.s32 %v2617, 1
  %v2622 = vsel %vm2620, %v2621, %v2617
  %v2623 = vadd.s32 %v2618, %v2622
  %v2624 = vadd.s32 %v2623, 536870912
  %v2625 = vshrl.u32 %v2624, 30
  %v2626 = vshll.u32 %v2625, 30
  %v2627 = vsub.s32 %v2623, %v2626
  %vm2628 = vcmp.lt.s32.totalorder %v2627, 0
  %v2629 = vsub.s32 0, %v2627
  %v2630 = vsel %vm2628, %v2629, %v2627
  %v2631 = vclz %v2630
  %v2632 = vsub.s32 %v2631, 2
  %vm2633 = vcmp.gt.s32.totalorder 0, %v2632
  %v2634 = vsel %vm2633, 0, %v2632
  %v2635 = vsub.s32 32, %v2634
  %v2636 = vshll.u32 %v2627, %v2634
  %v2637 = vshrl.u32 %v2619, %v2635
  %v2638 = vor.u32 %v2636, %v2637
  %v2639 = vsub.s32 4294967266, %v2634
  %v2640 = vadd.s32 %v2639, 127
  %v2641 = vshll.u32 %v2640, 23
  %v2642 = vor.u32 4788187, %v2641
  %v2643 = vand.u32 2147483647, %v2642
  %v2645 = vcvt.s32.f32 %v2638
  %v2646 = vmul.f32 %v2645, %v2643
  %v2647 = vxor.u32 %v2646, 2147483648
  %v2648 = vsel %vm2565, %v2647, %v2646
  %v2649 = vsub.s32 4, %v2625
  %v2650 = vsel %vm2565, %v2649, %v2625
  %v2651 = vsel %vm2564, %v59, %v2648
  %v2652 = vsel %vm2564, 0, %v2650
  %v2653 = vcosq.f32.pop %v2651
  %v2654 = vsinq.f32.pop %v2651
  %vm2655 = vweird.f32 %v59
  %v2656 = vadd.s32 %v2652, 3
  %v2657 = vand.u32 %v2656, 3
  %vm2658 = vcmp.lt.s32.totalorder %v2657, 2
  %vm2659 = vcmp.eq.s32.totalorder %v2657, 0
  %v2660 = vxor.u32 %v2654, 2147483648
  %v2661 = vsel %vm2659, %v2653, %v2660
  %vm2662 = vcmp.eq.s32.totalorder %v2657, 2
  %v2663 = vxor.u32 %v2653, 2147483648
  %v2664 = vsel %vm2662, %v2663, %v2654
  %v2665 = vsel %vm2658, %v2661, %v2664
  %v2666 = vsel %vm2655, nan, %v2665
  %v2667 = vand.u32 2147483647, %v60
  %vm2668 = vcmp.le.f32.partialorder %v2667, 0.7853982
  %vm2669 = vcmp.lt.s32.totalorder %v60, 0
  %v2670 = vand.u32 %v60, 2139095040
  %v2671 = vshrl.u32 %v2670, 23
  %v2672 = vsub.s32 %v2671, 127
  %v2673 = vand.u32 2147483647, %v60
  %v2674 = vand.u32 %v2673, 8388607
  %v2675 = vor.u32 %v2674, 8388608
  %v2676 = vsub.s32 0, %v2675
  %v2677 = vadd.s32 %v2672, 1
  %vm2678 = vcmp.gt.s32.totalorder %v2677, 0
  %v2679 = vsel %vm2678, %v2677, 0
  %v2680 = vshrl.u32 %v2679, 5
  %v2681 = vand.u32 %v2679, 31
  %v2682 = vsub.s32 32, %v2681
  %v2683 = vshrl.u32 683565275, %v2682
  %v2684 = vshll.u32 683565275, %v2681
  %v2685 = vshrl.u32 2475754826, %v2682
  %v2686 = vor.u32 %v2684, %v2685
  %v2687 = vshll.u32 2475754826, %v2681
  %v2688 = vshrl.u32 2131351028, %v2682
  %v2689 = vor.u32 %v2687, %v2688
  %v2690 = vshll.u32 2131351028, %v2681
  %v2691 = vshrl.u32 2102212464, %v2682
  %v2692 = vor.u32 %v2690, %v2691
  %v2693 = vshll.u32 2102212464, %v2681
  %v2694 = vshrl.u32 920167782, %v2682
  %v2695 = vor.u32 %v2693, %v2694
  %v2696 = vshll.u32 920167782, %v2681
  %v2697 = vshrl.u32 1326507024, %v2682
  %v2698 = vor.u32 %v2696, %v2697
  %vm2699 = vcmp.lt.s32.totalorder %v2680, 1
  %vm2700 = vcmp.lt.s32.totalorder %v2680, 2
  %vm2701 = vcmp.lt.s32.totalorder %v2680, 3
  %vm2702 = vcmp.lt.s32.totalorder %v2680, 4
  %v2703 = vsel %vm2699, %v2683, %v2686
  %v2704 = vsel %vm2702, %v2692, 2102212464
  %v2705 = vsel %vm2701, %v2689, %v2704
  %v2706 = vsel %vm2700, %v2703, %v2705
  %v2707 = vsel %vm2699, %v2686, %v2689
  %v2708 = vsel %vm2702, %v2695, 920167782
  %v2709 = vsel %vm2701, %v2692, %v2708
  %v2710 = vsel %vm2700, %v2707, %v2709
  %v2711 = vsel %vm2699, %v2689, %v2692
  %v2712 = vsel %vm2702, %v2698, 1326507024
  %v2713 = vsel %vm2701, %v2695, %v2712
  %v2714 = vsel %vm2700, %v2711, %v2713
  %v2715 = vshll.u32 %v2675, 8
  %v2716 = vmul.u32.u64.compose %v2715, %v2714
  %v2717 = vextract.low.u32 %v2716
  %v2718 = vextract.high.u32 %v2716
  %v2719 = vmul.u32.u64.compose %v2715, %v2710
  %v2720 = vextract.low.u32 %v2719
  %v2721 = vextract.high.u32 %v2719
  %v2722 = vmul.u32 %v2715, %v2706
  %v2723 = vadd.s32 %v2718, %v2720
  %vm2724 = vc.u32 %v2718, %v2720
  %v2725 = vadd.s32 %v2721, 1
  %v2726 = vsel %vm2724, %v2725, %v2721
  %v2727 = vadd.s32 %v2722, %v2726
  %v2728 = vadd.s32 %v2727, 536870912
  %v2729 = vshrl.u32 %v2728, 30
  %v2730 = vshll.u32 %v2729, 30
  %v2731 = vsub.s32 %v2727, %v2730
  %vm2732 = vcmp.lt.s32.totalorder %v2731, 0
  %v2733 = vsub.s32 0, %v2731
  %v2734 = vsel %vm2732, %v2733, %v2731
  %v2735 = vclz %v2734
  %v2736 = vsub.s32 %v2735, 2
  %vm2737 = vcmp.gt.s32.totalorder 0, %v2736
  %v2738 = vsel %vm2737, 0, %v2736
  %v2739 = vsub.s32 32, %v2738
  %v2740 = vshll.u32 %v2731, %v2738
  %v2741 = vshrl.u32 %v2723, %v2739
  %v2742 = vor.u32 %v2740, %v2741
  %v2743 = vsub.s32 4294967266, %v2738
  %v2744 = vadd.s32 %v2743, 127
  %v2745 = vshll.u32 %v2744, 23
  %v2746 = vor.u32 4788187, %v2745
  %v2747 = vand.u32 2147483647, %v2746
  %v2749 = vcvt.s32.f32 %v2742
  %v2750 = vmul.f32 %v2749, %v2747
  %v2751 = vxor.u32 %v2750, 2147483648
  %v2752 = vsel %vm2669, %v2751, %v2750
  %v2753 = vsub.s32 4, %v2729
  %v2754 = vsel %vm2669, %v2753, %v2729
  %v2755 = vsel %vm2668, %v60, %v2752
  %v2756 = vsel %vm2668, 0, %v2754
  %v2757 = vcosq.f32.pop %v2755
  %v2758 = vsinq.f32.pop %v2755
  %vm2759 = vweird.f32 %v60
  %v2760 = vadd.s32 %v2756, 3
  %v2761 = vand.u32 %v2760, 3
  %vm2762 = vcmp.lt.s32.totalorder %v2761, 2
  %vm2763 = vcmp.eq.s32.totalorder %v2761, 0
  %v2764 = vxor.u32 %v2758, 2147483648
  %v2765 = vsel %vm2763, %v2757, %v2764
  %vm2766 = vcmp.eq.s32.totalorder %v2761, 2
  %v2767 = vxor.u32 %v2757, 2147483648
  %v2768 = vsel %vm2766, %v2767, %v2758
  %v2769 = vsel %vm2762, %v2765, %v2768
  %v2770 = vsel %vm2759, nan, %v2769
  %v2771 = vand.u32 2147483647, %v61
  %vm2772 = vcmp.le.f32.partialorder %v2771, 0.7853982
  %vm2773 = vcmp.lt.s32.totalorder %v61, 0
  %v2774 = vand.u32 %v61, 2139095040
  %v2775 = vshrl.u32 %v2774, 23
  %v2776 = vsub.s32 %v2775, 127
  %v2777 = vand.u32 2147483647, %v61
  %v2778 = vand.u32 %v2777, 8388607
  %v2779 = vor.u32 %v2778, 8388608
  %v2780 = vsub.s32 0, %v2779
  %v2781 = vadd.s32 %v2776, 1
  %vm2782 = vcmp.gt.s32.totalorder %v2781, 0
  %v2783 = vsel %vm2782, %v2781, 0
  %v2784 = vshrl.u32 %v2783, 5
  %v2785 = vand.u32 %v2783, 31
  %v2786 = vsub.s32 32, %v2785
  %v2787 = vshrl.u32 683565275, %v2786
  %v2788 = vshll.u32 683565275, %v2785
  %v2789 = vshrl.u32 2475754826, %v2786
  %v2790 = vor.u32 %v2788, %v2789
  %v2791 = vshll.u32 2475754826, %v2785
  %v2792 = vshrl.u32 2131351028, %v2786
  %v2793 = vor.u32 %v2791, %v2792
  %v2794 = vshll.u32 2131351028, %v2785
  %v2795 = vshrl.u32 2102212464, %v2786
  %v2796 = vor.u32 %v2794, %v2795
  %v2797 = vshll.u32 2102212464, %v2785
  %v2798 = vshrl.u32 920167782, %v2786
  %v2799 = vor.u32 %v2797, %v2798
  %v2800 = vshll.u32 920167782, %v2785
  %v2801 = vshrl.u32 1326507024, %v2786
  %v2802 = vor.u32 %v2800, %v2801
  %vm2803 = vcmp.lt.s32.totalorder %v2784, 1
  %vm2804 = vcmp.lt.s32.totalorder %v2784, 2
  %vm2805 = vcmp.lt.s32.totalorder %v2784, 3
  %vm2806 = vcmp.lt.s32.totalorder %v2784, 4
  %v2807 = vsel %vm2803, %v2787, %v2790
  %v2808 = vsel %vm2806, %v2796, 2102212464
  %v2809 = vsel %vm2805, %v2793, %v2808
  %v2810 = vsel %vm2804, %v2807, %v2809
  %v2811 = vsel %vm2803, %v2790, %v2793
  %v2812 = vsel %vm2806, %v2799, 920167782
  %v2813 = vsel %vm2805, %v2796, %v2812
  %v2814 = vsel %vm2804, %v2811, %v2813
  %v2815 = vsel %vm2803, %v2793, %v2796
  %v2816 = vsel %vm2806, %v2802, 1326507024
  %v2817 = vsel %vm2805, %v2799, %v2816
  %v2818 = vsel %vm2804, %v2815, %v2817
  %v2819 = vshll.u32 %v2779, 8
  %v2820 = vmul.u32.u64.compose %v2819, %v2818
  %v2821 = vextract.low.u32 %v2820
  %v2822 = vextract.high.u32 %v2820
  %v2823 = vmul.u32.u64.compose %v2819, %v2814
  %v2824 = vextract.low.u32 %v2823
  %v2825 = vextract.high.u32 %v2823
  %v2826 = vmul.u32 %v2819, %v2810
  %v2827 = vadd.s32 %v2822, %v2824
  %vm2828 = vc.u32 %v2822, %v2824
  %v2829 = vadd.s32 %v2825, 1
  %v2830 = vsel %vm2828, %v2829, %v2825
  %v2831 = vadd.s32 %v2826, %v2830
  %v2832 = vadd.s32 %v2831, 536870912
  %v2833 = vshrl.u32 %v2832, 30
  %v2834 = vshll.u32 %v2833, 30
  %v2835 = vsub.s32 %v2831, %v2834
  %vm2836 = vcmp.lt.s32.totalorder %v2835, 0
  %v2837 = vsub.s32 0, %v2835
  %v2838 = vsel %vm2836, %v2837, %v2835
  %v2839 = vclz %v2838
  %v2840 = vsub.s32 %v2839, 2
  %vm2841 = vcmp.gt.s32.totalorder 0, %v2840
  %v2842 = vsel %vm2841, 0, %v2840
  %v2843 = vsub.s32 32, %v2842
  %v2844 = vshll.u32 %v2835, %v2842
  %v2845 = vshrl.u32 %v2827, %v2843
  %v2846 = vor.u32 %v2844, %v2845
  %v2847 = vsub.s32 4294967266, %v2842
  %v2848 = vadd.s32 %v2847, 127
  %v2849 = vshll.u32 %v2848, 23
  %v2850 = vor.u32 4788187, %v2849
  %v2851 = vand.u32 2147483647, %v2850
  %v2853 = vcvt.s32.f32 %v2846
  %v2854 = vmul.f32 %v2853, %v2851
  %v2855 = vxor.u32 %v2854, 2147483648
  %v2856 = vsel %vm2773, %v2855, %v2854
  %v2857 = vsub.s32 4, %v2833
  %v2858 = vsel %vm2773, %v2857, %v2833
  %v2859 = vsel %vm2772, %v61, %v2856
  %v2860 = vsel %vm2772, 0, %v2858
  %v2861 = vcosq.f32.pop %v2859
  %v2862 = vsinq.f32.pop %v2859
  %vm2863 = vweird.f32 %v61
  %v2864 = vadd.s32 %v2860, 3
  %v2865 = vand.u32 %v2864, 3
  %vm2866 = vcmp.lt.s32.totalorder %v2865, 2
  %vm2867 = vcmp.eq.s32.totalorder %v2865, 0
  %v2868 = vxor.u32 %v2862, 2147483648
  %v2869 = vsel %vm2867, %v2861, %v2868
  %vm2870 = vcmp.eq.s32.totalorder %v2865, 2
  %v2871 = vxor.u32 %v2861, 2147483648
  %v2872 = vsel %vm2870, %v2871, %v2862
  %v2873 = vsel %vm2866, %v2869, %v2872
  %v2874 = vsel %vm2863, nan, %v2873
  %v2875 = vand.u32 2147483647, %v62
  %vm2876 = vcmp.le.f32.partialorder %v2875, 0.7853982
  %vm2877 = vcmp.lt.s32.totalorder %v62, 0
  %v2878 = vand.u32 %v62, 2139095040
  %v2879 = vshrl.u32 %v2878, 23
  %v2880 = vsub.s32 %v2879, 127
  %v2881 = vand.u32 2147483647, %v62
  %v2882 = vand.u32 %v2881, 8388607
  %v2883 = vor.u32 %v2882, 8388608
  %v2884 = vsub.s32 0, %v2883
  %v2885 = vadd.s32 %v2880, 1
  %vm2886 = vcmp.gt.s32.totalorder %v2885, 0
  %v2887 = vsel %vm2886, %v2885, 0
  %v2888 = vshrl.u32 %v2887, 5
  %v2889 = vand.u32 %v2887, 31
  %v2890 = vsub.s32 32, %v2889
  %v2891 = vshrl.u32 683565275, %v2890
  %v2892 = vshll.u32 683565275, %v2889
  %v2893 = vshrl.u32 2475754826, %v2890
  %v2894 = vor.u32 %v2892, %v2893
  %v2895 = vshll.u32 2475754826, %v2889
  %v2896 = vshrl.u32 2131351028, %v2890
  %v2897 = vor.u32 %v2895, %v2896
  %v2898 = vshll.u32 2131351028, %v2889
  %v2899 = vshrl.u32 2102212464, %v2890
  %v2900 = vor.u32 %v2898, %v2899
  %v2901 = vshll.u32 2102212464, %v2889
  %v2902 = vshrl.u32 920167782, %v2890
  %v2903 = vor.u32 %v2901, %v2902
  %v2904 = vshll.u32 920167782, %v2889
  %v2905 = vshrl.u32 1326507024, %v2890
  %v2906 = vor.u32 %v2904, %v2905
  %vm2907 = vcmp.lt.s32.totalorder %v2888, 1
  %vm2908 = vcmp.lt.s32.totalorder %v2888, 2
  %vm2909 = vcmp.lt.s32.totalorder %v2888, 3
  %vm2910 = vcmp.lt.s32.totalorder %v2888, 4
  %v2911 = vsel %vm2907, %v2891, %v2894
  %v2912 = vsel %vm2910, %v2900, 2102212464
  %v2913 = vsel %vm2909, %v2897, %v2912
  %v2914 = vsel %vm2908, %v2911, %v2913
  %v2915 = vsel %vm2907, %v2894, %v2897
  %v2916 = vsel %vm2910, %v2903, 920167782
  %v2917 = vsel %vm2909, %v2900, %v2916
  %v2918 = vsel %vm2908, %v2915, %v2917
  %v2919 = vsel %vm2907, %v2897, %v2900
  %v2920 = vsel %vm2910, %v2906, 1326507024
  %v2921 = vsel %vm2909, %v2903, %v2920
  %v2922 = vsel %vm2908, %v2919, %v2921
  %v2923 = vshll.u32 %v2883, 8
  %v2924 = vmul.u32.u64.compose %v2923, %v2922
  %v2925 = vextract.low.u32 %v2924
  %v2926 = vextract.high.u32 %v2924
  %v2927 = vmul.u32.u64.compose %v2923, %v2918
  %v2928 = vextract.low.u32 %v2927
  %v2929 = vextract.high.u32 %v2927
  %v2930 = vmul.u32 %v2923, %v2914
  %v2931 = vadd.s32 %v2926, %v2928
  %vm2932 = vc.u32 %v2926, %v2928
  %v2933 = vadd.s32 %v2929, 1
  %v2934 = vsel %vm2932, %v2933, %v2929
  %v2935 = vadd.s32 %v2930, %v2934
  %v2936 = vadd.s32 %v2935, 536870912
  %v2937 = vshrl.u32 %v2936, 30
  %v2938 = vshll.u32 %v2937, 30
  %v2939 = vsub.s32 %v2935, %v2938
  %vm2940 = vcmp.lt.s32.totalorder %v2939, 0
  %v2941 = vsub.s32 0, %v2939
  %v2942 = vsel %vm2940, %v2941, %v2939
  %v2943 = vclz %v2942
  %v2944 = vsub.s32 %v2943, 2
  %vm2945 = vcmp.gt.s32.totalorder 0, %v2944
  %v2946 = vsel %vm2945, 0, %v2944
  %v2947 = vsub.s32 32, %v2946
  %v2948 = vshll.u32 %v2939, %v2946
  %v2949 = vshrl.u32 %v2931, %v2947
  %v2950 = vor.u32 %v2948, %v2949
  %v2951 = vsub.s32 4294967266, %v2946
  %v2952 = vadd.s32 %v2951, 127
  %v2953 = vshll.u32 %v2952, 23
  %v2954 = vor.u32 4788187, %v2953
  %v2955 = vand.u32 2147483647, %v2954
  %v2957 = vcvt.s32.f32 %v2950
  %v2958 = vmul.f32 %v2957, %v2955
  %v2959 = vxor.u32 %v2958, 2147483648
  %v2960 = vsel %vm2877, %v2959, %v2958
  %v2961 = vsub.s32 4, %v2937
  %v2962 = vsel %vm2877, %v2961, %v2937
  %v2963 = vsel %vm2876, %v62, %v2960
  %v2964 = vsel %vm2876, 0, %v2962
  %v2965 = vcosq.f32.pop %v2963
  %v2966 = vsinq.f32.pop %v2963
  %vm2967 = vweird.f32 %v62
  %v2968 = vadd.s32 %v2964, 3
  %v2969 = vand.u32 %v2968, 3
  %vm2970 = vcmp.lt.s32.totalorder %v2969, 2
  %vm2971 = vcmp.eq.s32.totalorder %v2969, 0
  %v2972 = vxor.u32 %v2966, 2147483648
  %v2973 = vsel %vm2971, %v2965, %v2972
  %vm2974 = vcmp.eq.s32.totalorder %v2969, 2
  %v2975 = vxor.u32 %v2965, 2147483648
  %v2976 = vsel %vm2974, %v2975, %v2966
  %v2977 = vsel %vm2970, %v2973, %v2976
  %v2978 = vsel %vm2967, nan, %v2977
  %v2979 = vand.u32 2147483647, %v63
  %vm2980 = vcmp.le.f32.partialorder %v2979, 0.7853982
  %vm2981 = vcmp.lt.s32.totalorder %v63, 0
  %v2982 = vand.u32 %v63, 2139095040
  %v2983 = vshrl.u32 %v2982, 23
  %v2984 = vsub.s32 %v2983, 127
  %v2985 = vand.u32 2147483647, %v63
  %v2986 = vand.u32 %v2985, 8388607
  %v2987 = vor.u32 %v2986, 8388608
  %v2988 = vsub.s32 0, %v2987
  %v2989 = vadd.s32 %v2984, 1
  %vm2990 = vcmp.gt.s32.totalorder %v2989, 0
  %v2991 = vsel %vm2990, %v2989, 0
  %v2992 = vshrl.u32 %v2991, 5
  %v2993 = vand.u32 %v2991, 31
  %v2994 = vsub.s32 32, %v2993
  %v2995 = vshrl.u32 683565275, %v2994
  %v2996 = vshll.u32 683565275, %v2993
  %v2997 = vshrl.u32 2475754826, %v2994
  %v2998 = vor.u32 %v2996, %v2997
  %v2999 = vshll.u32 2475754826, %v2993
  %v3000 = vshrl.u32 2131351028, %v2994
  %v3001 = vor.u32 %v2999, %v3000
  %v3002 = vshll.u32 2131351028, %v2993
  %v3003 = vshrl.u32 2102212464, %v2994
  %v3004 = vor.u32 %v3002, %v3003
  %v3005 = vshll.u32 2102212464, %v2993
  %v3006 = vshrl.u32 920167782, %v2994
  %v3007 = vor.u32 %v3005, %v3006
  %v3008 = vshll.u32 920167782, %v2993
  %v3009 = vshrl.u32 1326507024, %v2994
  %v3010 = vor.u32 %v3008, %v3009
  %vm3011 = vcmp.lt.s32.totalorder %v2992, 1
  %vm3012 = vcmp.lt.s32.totalorder %v2992, 2
  %vm3013 = vcmp.lt.s32.totalorder %v2992, 3
  %vm3014 = vcmp.lt.s32.totalorder %v2992, 4
  %v3015 = vsel %vm3011, %v2995, %v2998
  %v3016 = vsel %vm3014, %v3004, 2102212464
  %v3017 = vsel %vm3013, %v3001, %v3016
  %v3018 = vsel %vm3012, %v3015, %v3017
  %v3019 = vsel %vm3011, %v2998, %v3001
  %v3020 = vsel %vm3014, %v3007, 920167782
  %v3021 = vsel %vm3013, %v3004, %v3020
  %v3022 = vsel %vm3012, %v3019, %v3021
  %v3023 = vsel %vm3011, %v3001, %v3004
  %v3024 = vsel %vm3014, %v3010, 1326507024
  %v3025 = vsel %vm3013, %v3007, %v3024
  %v3026 = vsel %vm3012, %v3023, %v3025
  %v3027 = vshll.u32 %v2987, 8
  %v3028 = vmul.u32.u64.compose %v3027, %v3026
  %v3029 = vextract.low.u32 %v3028
  %v3030 = vextract.high.u32 %v3028
  %v3031 = vmul.u32.u64.compose %v3027, %v3022
  %v3032 = vextract.low.u32 %v3031
  %v3033 = vextract.high.u32 %v3031
  %v3034 = vmul.u32 %v3027, %v3018
  %v3035 = vadd.s32 %v3030, %v3032
  %vm3036 = vc.u32 %v3030, %v3032
  %v3037 = vadd.s32 %v3033, 1
  %v3038 = vsel %vm3036, %v3037, %v3033
  %v3039 = vadd.s32 %v3034, %v3038
  %v3040 = vadd.s32 %v3039, 536870912
  %v3041 = vshrl.u32 %v3040, 30
  %v3042 = vshll.u32 %v3041, 30
  %v3043 = vsub.s32 %v3039, %v3042
  %vm3044 = vcmp.lt.s32.totalorder %v3043, 0
  %v3045 = vsub.s32 0, %v3043
  %v3046 = vsel %vm3044, %v3045, %v3043
  %v3047 = vclz %v3046
  %v3048 = vsub.s32 %v3047, 2
  %vm3049 = vcmp.gt.s32.totalorder 0, %v3048
  %v3050 = vsel %vm3049, 0, %v3048
  %v3051 = vsub.s32 32, %v3050
  %v3052 = vshll.u32 %v3043, %v3050
  %v3053 = vshrl.u32 %v3035, %v3051
  %v3054 = vor.u32 %v3052, %v3053
  %v3055 = vsub.s32 4294967266, %v3050
  %v3056 = vadd.s32 %v3055, 127
  %v3057 = vshll.u32 %v3056, 23
  %v3058 = vor.u32 4788187, %v3057
  %v3059 = vand.u32 2147483647, %v3058
  %v3061 = vcvt.s32.f32 %v3054
  %v3062 = vmul.f32 %v3061, %v3059
  %v3063 = vxor.u32 %v3062, 2147483648
  %v3064 = vsel %vm2981, %v3063, %v3062
  %v3065 = vsub.s32 4, %v3041
  %v3066 = vsel %vm2981, %v3065, %v3041
  %v3067 = vsel %vm2980, %v63, %v3064
  %v3068 = vsel %vm2980, 0, %v3066
  %v3069 = vcosq.f32.pop %v3067
  %v3070 = vsinq.f32.pop %v3067
  %vm3071 = vweird.f32 %v63
  %v3072 = vadd.s32 %v3068, 3
  %v3073 = vand.u32 %v3072, 3
  %vm3074 = vcmp.lt.s32.totalorder %v3073, 2
  %vm3075 = vcmp.eq.s32.totalorder %v3073, 0
  %v3076 = vxor.u32 %v3070, 2147483648
  %v3077 = vsel %vm3075, %v3069, %v3076
  %vm3078 = vcmp.eq.s32.totalorder %v3073, 2
  %v3079 = vxor.u32 %v3069, 2147483648
  %v3080 = vsel %vm3078, %v3079, %v3070
  %v3081 = vsel %vm3074, %v3077, %v3080
  %v3082 = vsel %vm3071, nan, %v3081
  %v3083 = vand.u32 2147483647, %v64
  %vm3084 = vcmp.le.f32.partialorder %v3083, 0.7853982
  %vm3085 = vcmp.lt.s32.totalorder %v64, 0
  %v3086 = vand.u32 %v64, 2139095040
  %v3087 = vshrl.u32 %v3086, 23
  %v3088 = vsub.s32 %v3087, 127
  %v3089 = vand.u32 2147483647, %v64
  %v3090 = vand.u32 %v3089, 8388607
  %v3091 = vor.u32 %v3090, 8388608
  %v3092 = vsub.s32 0, %v3091
  %v3093 = vadd.s32 %v3088, 1
  %vm3094 = vcmp.gt.s32.totalorder %v3093, 0
  %v3095 = vsel %vm3094, %v3093, 0
  %v3096 = vshrl.u32 %v3095, 5
  %v3097 = vand.u32 %v3095, 31
  %v3098 = vsub.s32 32, %v3097
  %v3099 = vshrl.u32 683565275, %v3098
  %v3100 = vshll.u32 683565275, %v3097
  %v3101 = vshrl.u32 2475754826, %v3098
  %v3102 = vor.u32 %v3100, %v3101
  %v3103 = vshll.u32 2475754826, %v3097
  %v3104 = vshrl.u32 2131351028, %v3098
  %v3105 = vor.u32 %v3103, %v3104
  %v3106 = vshll.u32 2131351028, %v3097
  %v3107 = vshrl.u32 2102212464, %v3098
  %v3108 = vor.u32 %v3106, %v3107
  %v3109 = vshll.u32 2102212464, %v3097
  %v3110 = vshrl.u32 920167782, %v3098
  %v3111 = vor.u32 %v3109, %v3110
  %v3112 = vshll.u32 920167782, %v3097
  %v3113 = vshrl.u32 1326507024, %v3098
  %v3114 = vor.u32 %v3112, %v3113
  %vm3115 = vcmp.lt.s32.totalorder %v3096, 1
  %vm3116 = vcmp.lt.s32.totalorder %v3096, 2
  %vm3117 = vcmp.lt.s32.totalorder %v3096, 3
  %vm3118 = vcmp.lt.s32.totalorder %v3096, 4
  %v3119 = vsel %vm3115, %v3099, %v3102
  %v3120 = vsel %vm3118, %v3108, 2102212464
  %v3121 = vsel %vm3117, %v3105, %v3120
  %v3122 = vsel %vm3116, %v3119, %v3121
  %v3123 = vsel %vm3115, %v3102, %v3105
  %v3124 = vsel %vm3118, %v3111, 920167782
  %v3125 = vsel %vm3117, %v3108, %v3124
  %v3126 = vsel %vm3116, %v3123, %v3125
  %v3127 = vsel %vm3115, %v3105, %v3108
  %v3128 = vsel %vm3118, %v3114, 1326507024
  %v3129 = vsel %vm3117, %v3111, %v3128
  %v3130 = vsel %vm3116, %v3127, %v3129
  %v3131 = vshll.u32 %v3091, 8
  %v3132 = vmul.u32.u64.compose %v3131, %v3130
  %v3133 = vextract.low.u32 %v3132
  %v3134 = vextract.high.u32 %v3132
  %v3135 = vmul.u32.u64.compose %v3131, %v3126
  %v3136 = vextract.low.u32 %v3135
  %v3137 = vextract.high.u32 %v3135
  %v3138 = vmul.u32 %v3131, %v3122
  %v3139 = vadd.s32 %v3134, %v3136
  %vm3140 = vc.u32 %v3134, %v3136
  %v3141 = vadd.s32 %v3137, 1
  %v3142 = vsel %vm3140, %v3141, %v3137
  %v3143 = vadd.s32 %v3138, %v3142
  %v3144 = vadd.s32 %v3143, 536870912
  %v3145 = vshrl.u32 %v3144, 30
  %v3146 = vshll.u32 %v3145, 30
  %v3147 = vsub.s32 %v3143, %v3146
  %vm3148 = vcmp.lt.s32.totalorder %v3147, 0
  %v3149 = vsub.s32 0, %v3147
  %v3150 = vsel %vm3148, %v3149, %v3147
  %v3151 = vclz %v3150
  %v3152 = vsub.s32 %v3151, 2
  %vm3153 = vcmp.gt.s32.totalorder 0, %v3152
  %v3154 = vsel %vm3153, 0, %v3152
  %v3155 = vsub.s32 32, %v3154
  %v3156 = vshll.u32 %v3147, %v3154
  %v3157 = vshrl.u32 %v3139, %v3155
  %v3158 = vor.u32 %v3156, %v3157
  %v3159 = vsub.s32 4294967266, %v3154
  %v3160 = vadd.s32 %v3159, 127
  %v3161 = vshll.u32 %v3160, 23
  %v3162 = vor.u32 4788187, %v3161
  %v3163 = vand.u32 2147483647, %v3162
  %v3165 = vcvt.s32.f32 %v3158
  %v3166 = vmul.f32 %v3165, %v3163
  %v3167 = vxor.u32 %v3166, 2147483648
  %v3168 = vsel %vm3085, %v3167, %v3166
  %v3169 = vsub.s32 4, %v3145
  %v3170 = vsel %vm3085, %v3169, %v3145
  %v3171 = vsel %vm3084, %v64, %v3168
  %v3172 = vsel %vm3084, 0, %v3170
  %v3173 = vcosq.f32.pop %v3171
  %v3174 = vsinq.f32.pop %v3171
  %vm3175 = vweird.f32 %v64
  %v3176 = vadd.s32 %v3172, 3
  %v3177 = vand.u32 %v3176, 3
  %vm3178 = vcmp.lt.s32.totalorder %v3177, 2
  %vm3179 = vcmp.eq.s32.totalorder %v3177, 0
  %v3180 = vxor.u32 %v3174, 2147483648
  %v3181 = vsel %vm3179, %v3173, %v3180
  %vm3182 = vcmp.eq.s32.totalorder %v3177, 2
  %v3183 = vxor.u32 %v3173, 2147483648
  %v3184 = vsel %vm3182, %v3183, %v3174
  %v3185 = vsel %vm3178, %v3181, %v3184
  %v3186 = vsel %vm3175, nan, %v3185
  %v3187 = vand.u32 2147483647, %v65
  %vm3188 = vcmp.le.f32.partialorder %v3187, 0.7853982
  %vm3189 = vcmp.lt.s32.totalorder %v65, 0
  %v3190 = vand.u32 %v65, 2139095040
  %v3191 = vshrl.u32 %v3190, 23
  %v3192 = vsub.s32 %v3191, 127
  %v3193 = vand.u32 2147483647, %v65
  %v3194 = vand.u32 %v3193, 8388607
  %v3195 = vor.u32 %v3194, 8388608
  %v3196 = vsub.s32 0, %v3195
  %v3197 = vadd.s32 %v3192, 1
  %vm3198 = vcmp.gt.s32.totalorder %v3197, 0
  %v3199 = vsel %vm3198, %v3197, 0
  %v3200 = vshrl.u32 %v3199, 5
  %v3201 = vand.u32 %v3199, 31
  %v3202 = vsub.s32 32, %v3201
  %v3203 = vshrl.u32 683565275, %v3202
  %v3204 = vshll.u32 683565275, %v3201
  %v3205 = vshrl.u32 2475754826, %v3202
  %v3206 = vor.u32 %v3204, %v3205
  %v3207 = vshll.u32 2475754826, %v3201
  %v3208 = vshrl.u32 2131351028, %v3202
  %v3209 = vor.u32 %v3207, %v3208
  %v3210 = vshll.u32 2131351028, %v3201
  %v3211 = vshrl.u32 2102212464, %v3202
  %v3212 = vor.u32 %v3210, %v3211
  %v3213 = vshll.u32 2102212464, %v3201
  %v3214 = vshrl.u32 920167782, %v3202
  %v3215 = vor.u32 %v3213, %v3214
  %v3216 = vshll.u32 920167782, %v3201
  %v3217 = vshrl.u32 1326507024, %v3202
  %v3218 = vor.u32 %v3216, %v3217
  %vm3219 = vcmp.lt.s32.totalorder %v3200, 1
  %vm3220 = vcmp.lt.s32.totalorder %v3200, 2
  %vm3221 = vcmp.lt.s32.totalorder %v3200, 3
  %vm3222 = vcmp.lt.s32.totalorder %v3200, 4
  %v3223 = vsel %vm3219, %v3203, %v3206
  %v3224 = vsel %vm3222, %v3212, 2102212464
  %v3225 = vsel %vm3221, %v3209, %v3224
  %v3226 = vsel %vm3220, %v3223, %v3225
  %v3227 = vsel %vm3219, %v3206, %v3209
  %v3228 = vsel %vm3222, %v3215, 920167782
  %v3229 = vsel %vm3221, %v3212, %v3228
  %v3230 = vsel %vm3220, %v3227, %v3229
  %v3231 = vsel %vm3219, %v3209, %v3212
  %v3232 = vsel %vm3222, %v3218, 1326507024
  %v3233 = vsel %vm3221, %v3215, %v3232
  %v3234 = vsel %vm3220, %v3231, %v3233
  %v3235 = vshll.u32 %v3195, 8
  %v3236 = vmul.u32.u64.compose %v3235, %v3234
  %v3237 = vextract.low.u32 %v3236
  %v3238 = vextract.high.u32 %v3236
  %v3239 = vmul.u32.u64.compose %v3235, %v3230
  %v3240 = vextract.low.u32 %v3239
  %v3241 = vextract.high.u32 %v3239
  %v3242 = vmul.u32 %v3235, %v3226
  %v3243 = vadd.s32 %v3238, %v3240
  %vm3244 = vc.u32 %v3238, %v3240
  %v3245 = vadd.s32 %v3241, 1
  %v3246 = vsel %vm3244, %v3245, %v3241
  %v3247 = vadd.s32 %v3242, %v3246
  %v3248 = vadd.s32 %v3247, 536870912
  %v3249 = vshrl.u32 %v3248, 30
  %v3250 = vshll.u32 %v3249, 30
  %v3251 = vsub.s32 %v3247, %v3250
  %vm3252 = vcmp.lt.s32.totalorder %v3251, 0
  %v3253 = vsub.s32 0, %v3251
  %v3254 = vsel %vm3252, %v3253, %v3251
  %v3255 = vclz %v3254
  %v3256 = vsub.s32 %v3255, 2
  %vm3257 = vcmp.gt.s32.totalorder 0, %v3256
  %v3258 = vsel %vm3257, 0, %v3256
  %v3259 = vsub.s32 32, %v3258
  %v3260 = vshll.u32 %v3251, %v3258
  %v3261 = vshrl.u32 %v3243, %v3259
  %v3262 = vor.u32 %v3260, %v3261
  %v3263 = vsub.s32 4294967266, %v3258
  %v3264 = vadd.s32 %v3263, 127
  %v3265 = vshll.u32 %v3264, 23
  %v3266 = vor.u32 4788187, %v3265
  %v3267 = vand.u32 2147483647, %v3266
  %v3269 = vcvt.s32.f32 %v3262
  %v3270 = vmul.f32 %v3269, %v3267
  %v3271 = vxor.u32 %v3270, 2147483648
  %v3272 = vsel %vm3189, %v3271, %v3270
  %v3273 = vsub.s32 4, %v3249
  %v3274 = vsel %vm3189, %v3273, %v3249
  %v3275 = vsel %vm3188, %v65, %v3272
  %v3276 = vsel %vm3188, 0, %v3274
  %v3277 = vcosq.f32.pop %v3275
  %v3278 = vsinq.f32.pop %v3275
  %vm3279 = vweird.f32 %v65
  %v3280 = vadd.s32 %v3276, 3
  %v3281 = vand.u32 %v3280, 3
  %vm3282 = vcmp.lt.s32.totalorder %v3281, 2
  %vm3283 = vcmp.eq.s32.totalorder %v3281, 0
  %v3284 = vxor.u32 %v3278, 2147483648
  %v3285 = vsel %vm3283, %v3277, %v3284
  %vm3286 = vcmp.eq.s32.totalorder %v3281, 2
  %v3287 = vxor.u32 %v3277, 2147483648
  %v3288 = vsel %vm3286, %v3287, %v3278
  %v3289 = vsel %vm3282, %v3285, %v3288
  %v3290 = vsel %vm3279, nan, %v3289
  %v3291 = vand.u32 2147483647, %v66
  %vm3292 = vcmp.le.f32.partialorder %v3291, 0.7853982
  %vm3293 = vcmp.lt.s32.totalorder %v66, 0
  %v3294 = vand.u32 %v66, 2139095040
  %v3295 = vshrl.u32 %v3294, 23
  %v3296 = vsub.s32 %v3295, 127
  %v3297 = vand.u32 2147483647, %v66
  %v3298 = vand.u32 %v3297, 8388607
  %v3299 = vor.u32 %v3298, 8388608
  %v3300 = vsub.s32 0, %v3299
  %v3301 = vadd.s32 %v3296, 1
  %vm3302 = vcmp.gt.s32.totalorder %v3301, 0
  %v3303 = vsel %vm3302, %v3301, 0
  %v3304 = vshrl.u32 %v3303, 5
  %v3305 = vand.u32 %v3303, 31
  %v3306 = vsub.s32 32, %v3305
  %v3307 = vshrl.u32 683565275, %v3306
  %v3308 = vshll.u32 683565275, %v3305
  %v3309 = vshrl.u32 2475754826, %v3306
  %v3310 = vor.u32 %v3308, %v3309
  %v3311 = vshll.u32 2475754826, %v3305
  %v3312 = vshrl.u32 2131351028, %v3306
  %v3313 = vor.u32 %v3311, %v3312
  %v3314 = vshll.u32 2131351028, %v3305
  %v3315 = vshrl.u32 2102212464, %v3306
  %v3316 = vor.u32 %v3314, %v3315
  %v3317 = vshll.u32 2102212464, %v3305
  %v3318 = vshrl.u32 920167782, %v3306
  %v3319 = vor.u32 %v3317, %v3318
  %v3320 = vshll.u32 920167782, %v3305
  %v3321 = vshrl.u32 1326507024, %v3306
  %v3322 = vor.u32 %v3320, %v3321
  %vm3323 = vcmp.lt.s32.totalorder %v3304, 1
  %vm3324 = vcmp.lt.s32.totalorder %v3304, 2
  %vm3325 = vcmp.lt.s32.totalorder %v3304, 3
  %vm3326 = vcmp.lt.s32.totalorder %v3304, 4
  %v3327 = vsel %vm3323, %v3307, %v3310
  %v3328 = vsel %vm3326, %v3316, 2102212464
  %v3329 = vsel %vm3325, %v3313, %v3328
  %v3330 = vsel %vm3324, %v3327, %v3329
  %v3331 = vsel %vm3323, %v3310, %v3313
  %v3332 = vsel %vm3326, %v3319, 920167782
  %v3333 = vsel %vm3325, %v3316, %v3332
  %v3334 = vsel %vm3324, %v3331, %v3333
  %v3335 = vsel %vm3323, %v3313, %v3316
  %v3336 = vsel %vm3326, %v3322, 1326507024
  %v3337 = vsel %vm3325, %v3319, %v3336
  %v3338 = vsel %vm3324, %v3335, %v3337
  %v3339 = vshll.u32 %v3299, 8
  %v3340 = vmul.u32.u64.compose %v3339, %v3338
  %v3341 = vextract.low.u32 %v3340
  %v3342 = vextract.high.u32 %v3340
  %v3343 = vmul.u32.u64.compose %v3339, %v3334
  %v3344 = vextract.low.u32 %v3343
  %v3345 = vextract.high.u32 %v3343
  %v3346 = vmul.u32 %v3339, %v3330
  %v3347 = vadd.s32 %v3342, %v3344
  %vm3348 = vc.u32 %v3342, %v3344
  %v3349 = vadd.s32 %v3345, 1
  %v3350 = vsel %vm3348, %v3349, %v3345
  %v3351 = vadd.s32 %v3346, %v3350
  %v3352 = vadd.s32 %v3351, 536870912
  %v3353 = vshrl.u32 %v3352, 30
  %v3354 = vshll.u32 %v3353, 30
  %v3355 = vsub.s32 %v3351, %v3354
  %vm3356 = vcmp.lt.s32.totalorder %v3355, 0
  %v3357 = vsub.s32 0, %v3355
  %v3358 = vsel %vm3356, %v3357, %v3355
  %v3359 = vclz %v3358
  %v3360 = vsub.s32 %v3359, 2
  %vm3361 = vcmp.gt.s32.totalorder 0, %v3360
  %v3362 = vsel %vm3361, 0, %v3360
  %v3363 = vsub.s32 32, %v3362
  %v3364 = vshll.u32 %v3355, %v3362
  %v3365 = vshrl.u32 %v3347, %v3363
  %v3366 = vor.u32 %v3364, %v3365
  %v3367 = vsub.s32 4294967266, %v3362
  %v3368 = vadd.s32 %v3367, 127
  %v3369 = vshll.u32 %v3368, 23
  %v3370 = vor.u32 4788187, %v3369
  %v3371 = vand.u32 2147483647, %v3370
  %v3373 = vcvt.s32.f32 %v3366
  %v3374 = vmul.f32 %v3373, %v3371
  %v3375 = vxor.u32 %v3374, 2147483648
  %v3376 = vsel %vm3293, %v3375, %v3374
  %v3377 = vsub.s32 4, %v3353
  %v3378 = vsel %vm3293, %v3377, %v3353
  %v3379 = vsel %vm3292, %v66, %v3376
  %v3380 = vsel %vm3292, 0, %v3378
  %v3381 = vcosq.f32.pop %v3379
  %v3382 = vsinq.f32.pop %v3379
  %vm3383 = vweird.f32 %v66
  %v3384 = vadd.s32 %v3380, 3
  %v3385 = vand.u32 %v3384, 3
  %vm3386 = vcmp.lt.s32.totalorder %v3385, 2
  %vm3387 = vcmp.eq.s32.totalorder %v3385, 0
  %v3388 = vxor.u32 %v3382, 2147483648
  %v3389 = vsel %vm3387, %v3381, %v3388
  %vm3390 = vcmp.eq.s32.totalorder %v3385, 2
  %v3391 = vxor.u32 %v3381, 2147483648
  %v3392 = vsel %vm3390, %v3391, %v3382
  %v3393 = vsel %vm3386, %v3389, %v3392
  %v3394 = vsel %vm3383, nan, %v3393
  %v3395 = vmul.f32 %v19, %v185
  %v3396 = vmul.f32 %v20, %v288
  %v3397 = vmul.f32 %v21, %v391
  %v3398 = vmul.f32 %v22, %v494
  %v3399 = vmul.f32 %v23, %v597
  %v3400 = vmul.f32 %v24, %v700
  %v3401 = vmul.f32 %v25, %v803
  %v3402 = vmul.f32 %v26, %v906
  %v3403 = vmul.f32 %v27, %v1009
  %v3404 = vmul.f32 %v28, %v1112
  %v3405 = vmul.f32 %v29, %v1215
  %v3406 = vmul.f32 %v30, %v1318
  %v3407 = vmul.f32 %v31, %v1421
  %v3408 = vmul.f32 %v32, %v1524
  %v3409 = vmul.f32 %v33, %v1627
  %v3410 = vmul.f32 %v34, %v1730
  %v3411 = vsub.f32 %v3395, %v67
  %v3412 = vsub.f32 %v3396, %v68
  %v3413 = vsub.f32 %v3397, %v69
  %v3414 = vsub.f32 %v3398, %v70
  %v3415 = vsub.f32 %v3399, %v71
  %v3416 = vsub.f32 %v3400, %v72
  %v3417 = vsub.f32 %v3401, %v73
  %v3418 = vsub.f32 %v3402, %v74
  %v3419 = vsub.f32 %v3403, %v75
  %v3420 = vsub.f32 %v3404, %v76
  %v3421 = vsub.f32 %v3405, %v77
  %v3422 = vsub.f32 %v3406, %v78
  %v3423 = vsub.f32 %v3407, %v79
  %v3424 = vsub.f32 %v3408, %v80
  %v3425 = vsub.f32 %v3409, %v81
  %v3426 = vsub.f32 %v3410, %v82
  %v3427 = vmul.f32 %v19, %v1834
  %v3428 = vmul.f32 %v20, %v1938
  %v3429 = vmul.f32 %v21, %v2042
  %v3430 = vmul.f32 %v22, %v2146
  %v3431 = vmul.f32 %v23, %v2250
  %v3432 = vmul.f32 %v24, %v2354
  %v3433 = vmul.f32 %v25, %v2458
  %v3434 = vmul.f32 %v26, %v2562
  %v3435 = vmul.f32 %v27, %v2666
  %v3436 = vmul.f32 %v28, %v2770
  %v3437 = vmul.f32 %v29, %v2874
  %v3438 = vmul.f32 %v30, %v2978
  %v3439 = vmul.f32 %v31, %v3082
  %v3440 = vmul.f32 %v32, %v3186
  %v3441 = vmul.f32 %v33, %v3290
  %v3442 = vmul.f32 %v34, %v3394
  %v3443 = vmul.f32 %v3411, %v3411
  %v3444 = vmul.f32 %v3412, %v3412
  %v3445 = vmul.f32 %v3413, %v3413
  %v3446 = vmul.f32 %v3414, %v3414
  %v3447 = vmul.f32 %v3415, %v3415
  %v3448 = vmul.f32 %v3416, %v3416
  %v3449 = vmul.f32 %v3417, %v3417
  %v3450 = vmul.f32 %v3418, %v3418
  %v3451 = vmul.f32 %v3419, %v3419
  %v3452 = vmul.f32 %v3420, %v3420
  %v3453 = vmul.f32 %v3421, %v3421
  %v3454 = vmul.f32 %v3422, %v3422
  %v3455 = vmul.f32 %v3423, %v3423
  %v3456 = vmul.f32 %v3424, %v3424
  %v3457 = vmul.f32 %v3425, %v3425
  %v3458 = vmul.f32 %v3426, %v3426
  %v3459 = vmul.f32 %v3427, %v3427
  %v3460 = vmul.f32 %v3428, %v3428
  %v3461 = vmul.f32 %v3429, %v3429
  %v3462 = vmul.f32 %v3430, %v3430
  %v3463 = vmul.f32 %v3431, %v3431
  %v3464 = vmul.f32 %v3432, %v3432
  %v3465 = vmul.f32 %v3433, %v3433
  %v3466 = vmul.f32 %v3434, %v3434
  %v3467 = vmul.f32 %v3435, %v3435
  %v3468 = vmul.f32 %v3436, %v3436
  %v3469 = vmul.f32 %v3437, %v3437
  %v3470 = vmul.f32 %v3438, %v3438
  %v3471 = vmul.f32 %v3439, %v3439
  %v3472 = vmul.f32 %v3440, %v3440
  %v3473 = vmul.f32 %v3441, %v3441
  %v3474 = vmul.f32 %v3442, %v3442
  %v3475 = vadd.f32 %v3443, %v3459
  %v3476 = vadd.f32 %v3444, %v3460
  %v3477 = vadd.f32 %v3445, %v3461
  %v3478 = vadd.f32 %v3446, %v3462
  %v3479 = vadd.f32 %v3447, %v3463
  %v3480 = vadd.f32 %v3448, %v3464
  %v3481 = vadd.f32 %v3449, %v3465
  %v3482 = vadd.f32 %v3450, %v3466
  %v3483 = vadd.f32 %v3451, %v3467
  %v3484 = vadd.f32 %v3452, %v3468
  %v3485 = vadd.f32 %v3453, %v3469
  %v3486 = vadd.f32 %v3454, %v3470
  %v3487 = vadd.f32 %v3455, %v3471
  %v3488 = vadd.f32 %v3456, %v3472
  %v3489 = vadd.f32 %v3457, %v3473
  %v3490 = vadd.f32 %v3458, %v3474
  %v3491 = vrsqrt.pop %v3475
  %v3492 = vmul.f32 %v3475, %v3491
  %vm3493 = vcmp.eq.f32.partialorder %v3475, inf
  %v3494 = vsel %vm3493, %v3475, %v3492
  %vm3495 = vcmp.eq.f32.partialorder %v3475, 0.0
  %v3496 = vand.u32 %v3475, 2147483648
  %v3497 = vsel %vm3495, %v3496, %v3494
  %v3498 = vrsqrt.pop %v3476
  %v3499 = vmul.f32 %v3476, %v3498
  %vm3500 = vcmp.eq.f32.partialorder %v3476, inf
  %v3501 = vsel %vm3500, %v3476, %v3499
  %vm3502 = vcmp.eq.f32.partialorder %v3476, 0.0
  %v3503 = vand.u32 %v3476, 2147483648
  %v3504 = vsel %vm3502, %v3503, %v3501
  %v3505 = vrsqrt.pop %v3477
  %v3506 = vmul.f32 %v3477, %v3505
  %vm3507 = vcmp.eq.f32.partialorder %v3477, inf
  %v3508 = vsel %vm3507, %v3477, %v3506
  %vm3509 = vcmp.eq.f32.partialorder %v3477, 0.0
  %v3510 = vand.u32 %v3477, 2147483648
  %v3511 = vsel %vm3509, %v3510, %v3508
  %v3512 = vrsqrt.pop %v3478
  %v3513 = vmul.f32 %v3478, %v3512
  %vm3514 = vcmp.eq.f32.partialorder %v3478, inf
  %v3515 = vsel %vm3514, %v3478, %v3513
  %vm3516 = vcmp.eq.f32.partialorder %v3478, 0.0
  %v3517 = vand.u32 %v3478, 2147483648
  %v3518 = vsel %vm3516, %v3517, %v3515
  %v3519 = vrsqrt.pop %v3479
  %v3520 = vmul.f32 %v3479, %v3519
  %vm3521 = vcmp.eq.f32.partialorder %v3479, inf
  %v3522 = vsel %vm3521, %v3479, %v3520
  %vm3523 = vcmp.eq.f32.partialorder %v3479, 0.0
  %v3524 = vand.u32 %v3479, 2147483648
  %v3525 = vsel %vm3523, %v3524, %v3522
  %v3526 = vrsqrt.pop %v3480
  %v3527 = vmul.f32 %v3480, %v3526
  %vm3528 = vcmp.eq.f32.partialorder %v3480, inf
  %v3529 = vsel %vm3528, %v3480, %v3527
  %vm3530 = vcmp.eq.f32.partialorder %v3480, 0.0
  %v3531 = vand.u32 %v3480, 2147483648
  %v3532 = vsel %vm3530, %v3531, %v3529
  %v3533 = vrsqrt.pop %v3481
  %v3534 = vmul.f32 %v3481, %v3533
  %vm3535 = vcmp.eq.f32.partialorder %v3481, inf
  %v3536 = vsel %vm3535, %v3481, %v3534
  %vm3537 = vcmp.eq.f32.partialorder %v3481, 0.0
  %v3538 = vand.u32 %v3481, 2147483648
  %v3539 = vsel %vm3537, %v3538, %v3536
  %v3540 = vrsqrt.pop %v3482
  %v3541 = vmul.f32 %v3482, %v3540
  %vm3542 = vcmp.eq.f32.partialorder %v3482, inf
  %v3543 = vsel %vm3542, %v3482, %v3541
  %vm3544 = vcmp.eq.f32.partialorder %v3482, 0.0
  %v3545 = vand.u32 %v3482, 2147483648
  %v3546 = vsel %vm3544, %v3545, %v3543
  %v3547 = vrsqrt.pop %v3483
  %v3548 = vmul.f32 %v3483, %v3547
  %vm3549 = vcmp.eq.f32.partialorder %v3483, inf
  %v3550 = vsel %vm3549, %v3483, %v3548
  %vm3551 = vcmp.eq.f32.partialorder %v3483, 0.0
  %v3552 = vand.u32 %v3483, 2147483648
  %v3553 = vsel %vm3551, %v3552, %v3550
  %v3554 = vrsqrt.pop %v3484
  %v3555 = vmul.f32 %v3484, %v3554
  %vm3556 = vcmp.eq.f32.partialorder %v3484, inf
  %v3557 = vsel %vm3556, %v3484, %v3555
  %vm3558 = vcmp.eq.f32.partialorder %v3484, 0.0
  %v3559 = vand.u32 %v3484, 2147483648
  %v3560 = vsel %vm3558, %v3559, %v3557
  %v3561 = vrsqrt.pop %v3485
  %v3562 = vmul.f32 %v3485, %v3561
  %vm3563 = vcmp.eq.f32.partialorder %v3485, inf
  %v3564 = vsel %vm3563, %v3485, %v3562
  %vm3565 = vcmp.eq.f32.partialorder %v3485, 0.0
  %v3566 = vand.u32 %v3485, 2147483648
  %v3567 = vsel %vm3565, %v3566, %v3564
  %v3568 = vrsqrt.pop %v3486
  %v3569 = vmul.f32 %v3486, %v3568
  %vm3570 = vcmp.eq.f32.partialorder %v3486, inf
  %v3571 = vsel %vm3570, %v3486, %v3569
  %vm3572 = vcmp.eq.f32.partialorder %v3486, 0.0
  %v3573 = vand.u32 %v3486, 2147483648
  %v3574 = vsel %vm3572, %v3573, %v3571
  %v3575 = vrsqrt.pop %v3487
  %v3576 = vmul.f32 %v3487, %v3575
  %vm3577 = vcmp.eq.f32.partialorder %v3487, inf
  %v3578 = vsel %vm3577, %v3487, %v3576
  %vm3579 = vcmp.eq.f32.partialorder %v3487, 0.0
  %v3580 = vand.u32 %v3487, 2147483648
  %v3581 = vsel %vm3579, %v3580, %v3578
  %v3582 = vrsqrt.pop %v3488
  %v3583 = vmul.f32 %v3488, %v3582
  %vm3584 = vcmp.eq.f32.partialorder %v3488, inf
  %v3585 = vsel %vm3584, %v3488, %v3583
  %vm3586 = vcmp.eq.f32.partialorder %v3488, 0.0
  %v3587 = vand.u32 %v3488, 2147483648
  %v3588 = vsel %vm3586, %v3587, %v3585
  %v3589 = vrsqrt.pop %v3489
  %v3590 = vmul.f32 %v3489, %v3589
  %vm3591 = vcmp.eq.f32.partialorder %v3489, inf
  %v3592 = vsel %vm3591, %v3489, %v3590
  %vm3593 = vcmp.eq.f32.partialorder %v3489, 0.0
  %v3594 = vand.u32 %v3489, 2147483648
  %v3595 = vsel %vm3593, %v3594, %v3592
  %v3596 = vrsqrt.pop %v3490
  %v3597 = vmul.f32 %v3490, %v3596
  %vm3598 = vcmp.eq.f32.partialorder %v3490, inf
  %v3599 = vsel %vm3598, %v3490, %v3597
  %vm3600 = vcmp.eq.f32.partialorder %v3490, 0.0
  %v3601 = vand.u32 %v3490, 2147483648
  %v3602 = vsel %vm3600, %v3601, %v3599
  %v3603 = vld [vmem:[#allocation2] sm:$0x1]
  %vm3604 = vcmask 523264
  %v3605 = vsel %vm3604, %v3497, 0.0
  %3606 = vadd.xlane.f32.xlu0 %v3605
  %v3607 = vpop.xlane.xlu0 %3606
  %v3608 = vsel %vm3604, %v3504, 0.0
  %3609 = vadd.xlane.f32.xlu0 %v3608
  %v3610 = vpop.xlane.xlu0 %3609
  %v3611 = vsel %vm3604, %v3511, 0.0
  %3612 = vadd.xlane.f32.xlu0 %v3611
  %v3613 = vpop.xlane.xlu0 %3612
  %v3614 = vsel %vm3604, %v3518, 0.0
  %3615 = vadd.xlane.f32.xlu0 %v3614
  %v3616 = vpop.xlane.xlu0 %3615
  %v3617 = vsel %vm3604, %v3525, 0.0
  %3618 = vadd.xlane.f32.xlu0 %v3617
  %v3619 = vpop.xlane.xlu0 %3618
  %v3620 = vsel %vm3604, %v3532, 0.0
  %3621 = vadd.xlane.f32.xlu0 %v3620
  %v3622 = vpop.xlane.xlu0 %3621
  %v3623 = vsel %vm3604, %v3539, 0.0
  %3624 = vadd.xlane.f32.xlu0 %v3623
  %v3625 = vpop.xlane.xlu0 %3624
  %v3626 = vsel %vm3604, %v3546, 0.0
  %3627 = vadd.xlane.f32.xlu0 %v3626
  %v3628 = vpop.xlane.xlu0 %3627
  %v3629 = vsel %vm3604, %v3553, 0.0
  %3630 = vadd.xlane.f32.xlu0 %v3629
  %v3631 = vpop.xlane.xlu0 %3630
  %v3632 = vsel %vm3604, %v3560, 0.0
  %3633 = vadd.xlane.f32.xlu0 %v3632
  %v3634 = vpop.xlane.xlu0 %3633
  %v3635 = vsel %vm3604, %v3567, 0.0
  %3636 = vadd.xlane.f32.xlu0 %v3635
  %v3637 = vpop.xlane.xlu0 %3636
  %v3638 = vsel %vm3604, %v3574, 0.0
  %3639 = vadd.xlane.f32.xlu0 %v3638
  %v3640 = vpop.xlane.xlu0 %3639
  %v3641 = vsel %vm3604, %v3581, 0.0
  %3642 = vadd.xlane.f32.xlu0 %v3641
  %v3643 = vpop.xlane.xlu0 %3642
  %v3644 = vsel %vm3604, %v3588, 0.0
  %3645 = vadd.xlane.f32.xlu0 %v3644
  %v3646 = vpop.xlane.xlu0 %3645
  %v3647 = vsel %vm3604, %v3595, 0.0
  %3648 = vadd.xlane.f32.xlu0 %v3647
  %v3649 = vpop.xlane.xlu0 %3648
  %v3650 = vsel %vm3604, %v3602, 0.0
  %3651 = vadd.xlane.f32.xlu0 %v3650
  %v3652 = vpop.xlane.xlu0 %3651
  %v3669 = vlaneseq
  %v3670 = vshrl.u32 %v3669, 7
  %v3671 = vsub.s32 0, %v3670
  %v3672 = vrot.slane %v3607, %v3671
  %v3673 = vlaneseq
  %v3674 = vshrl.u32 %v3673, 7
  %v3675 = vsub.s32 1, %v3674
  %v3676 = vrot.slane %v3607, %v3675
  %v3677 = vlaneseq
  %v3678 = vshrl.u32 %v3677, 7
  %v3679 = vsub.s32 2, %v3678
  %v3680 = vrot.slane %v3607, %v3679
  %v3681 = vlaneseq
  %v3682 = vshrl.u32 %v3681, 7
  %v3683 = vsub.s32 3, %v3682
  %v3684 = vrot.slane %v3607, %v3683
  %v3685 = vlaneseq
  %v3686 = vshrl.u32 %v3685, 7
  %v3687 = vsub.s32 4, %v3686
  %v3688 = vrot.slane %v3607, %v3687
  %v3689 = vlaneseq
  %v3690 = vshrl.u32 %v3689, 7
  %v3691 = vsub.s32 5, %v3690
  %v3692 = vrot.slane %v3607, %v3691
  %v3693 = vlaneseq
  %v3694 = vshrl.u32 %v3693, 7
  %v3695 = vsub.s32 6, %v3694
  %v3696 = vrot.slane %v3607, %v3695
  %v3697 = vlaneseq
  %v3698 = vshrl.u32 %v3697, 7
  %v3699 = vsub.s32 7, %v3698
  %v3700 = vrot.slane %v3607, %v3699
  %v3701 = vlaneseq
  %v3702 = vshrl.u32 %v3701, 7
  %v3703 = vsub.s32 0, %v3702
  %v3704 = vrot.slane %v3610, %v3703
  %v3705 = vlaneseq
  %v3706 = vshrl.u32 %v3705, 7
  %v3707 = vsub.s32 1, %v3706
  %v3708 = vrot.slane %v3610, %v3707
  %v3709 = vlaneseq
  %v3710 = vshrl.u32 %v3709, 7
  %v3711 = vsub.s32 2, %v3710
  %v3712 = vrot.slane %v3610, %v3711
  %v3713 = vlaneseq
  %v3714 = vshrl.u32 %v3713, 7
  %v3715 = vsub.s32 3, %v3714
  %v3716 = vrot.slane %v3610, %v3715
  %v3717 = vlaneseq
  %v3718 = vshrl.u32 %v3717, 7
  %v3719 = vsub.s32 4, %v3718
  %v3720 = vrot.slane %v3610, %v3719
  %v3721 = vlaneseq
  %v3722 = vshrl.u32 %v3721, 7
  %v3723 = vsub.s32 5, %v3722
  %v3724 = vrot.slane %v3610, %v3723
  %v3725 = vlaneseq
  %v3726 = vshrl.u32 %v3725, 7
  %v3727 = vsub.s32 6, %v3726
  %v3728 = vrot.slane %v3610, %v3727
  %v3729 = vlaneseq
  %v3730 = vshrl.u32 %v3729, 7
  %v3731 = vsub.s32 7, %v3730
  %v3732 = vrot.slane %v3610, %v3731
  %v3733 = vlaneseq
  %v3734 = vshrl.u32 %v3733, 7
  %v3735 = vsub.s32 0, %v3734
  %v3736 = vrot.slane %v3613, %v3735
  %v3737 = vlaneseq
  %v3738 = vshrl.u32 %v3737, 7
  %v3739 = vsub.s32 1, %v3738
  %v3740 = vrot.slane %v3613, %v3739
  %v3741 = vlaneseq
  %v3742 = vshrl.u32 %v3741, 7
  %v3743 = vsub.s32 2, %v3742
  %v3744 = vrot.slane %v3613, %v3743
  %v3745 = vlaneseq
  %v3746 = vshrl.u32 %v3745, 7
  %v3747 = vsub.s32 3, %v3746
  %v3748 = vrot.slane %v3613, %v3747
  %v3749 = vlaneseq
  %v3750 = vshrl.u32 %v3749, 7
  %v3751 = vsub.s32 4, %v3750
  %v3752 = vrot.slane %v3613, %v3751
  %v3753 = vlaneseq
  %v3754 = vshrl.u32 %v3753, 7
  %v3755 = vsub.s32 5, %v3754
  %v3756 = vrot.slane %v3613, %v3755
  %v3757 = vlaneseq
  %v3758 = vshrl.u32 %v3757, 7
  %v3759 = vsub.s32 6, %v3758
  %v3760 = vrot.slane %v3613, %v3759
  %v3761 = vlaneseq
  %v3762 = vshrl.u32 %v3761, 7
  %v3763 = vsub.s32 7, %v3762
  %v3764 = vrot.slane %v3613, %v3763
  %v3765 = vlaneseq
  %v3766 = vshrl.u32 %v3765, 7
  %v3767 = vsub.s32 0, %v3766
  %v3768 = vrot.slane %v3616, %v3767
  %v3769 = vlaneseq
  %v3770 = vshrl.u32 %v3769, 7
  %v3771 = vsub.s32 1, %v3770
  %v3772 = vrot.slane %v3616, %v3771
  %v3773 = vlaneseq
  %v3774 = vshrl.u32 %v3773, 7
  %v3775 = vsub.s32 2, %v3774
  %v3776 = vrot.slane %v3616, %v3775
  %v3777 = vlaneseq
  %v3778 = vshrl.u32 %v3777, 7
  %v3779 = vsub.s32 3, %v3778
  %v3780 = vrot.slane %v3616, %v3779
  %v3781 = vlaneseq
  %v3782 = vshrl.u32 %v3781, 7
  %v3783 = vsub.s32 4, %v3782
  %v3784 = vrot.slane %v3616, %v3783
  %v3785 = vlaneseq
  %v3786 = vshrl.u32 %v3785, 7
  %v3787 = vsub.s32 5, %v3786
  %v3788 = vrot.slane %v3616, %v3787
  %v3789 = vlaneseq
  %v3790 = vshrl.u32 %v3789, 7
  %v3791 = vsub.s32 6, %v3790
  %v3792 = vrot.slane %v3616, %v3791
  %v3793 = vlaneseq
  %v3794 = vshrl.u32 %v3793, 7
  %v3795 = vsub.s32 7, %v3794
  %v3796 = vrot.slane %v3616, %v3795
  %v3797 = vlaneseq
  %v3798 = vshrl.u32 %v3797, 7
  %v3799 = vsub.s32 0, %v3798
  %v3800 = vrot.slane %v3619, %v3799
  %v3801 = vlaneseq
  %v3802 = vshrl.u32 %v3801, 7
  %v3803 = vsub.s32 1, %v3802
  %v3804 = vrot.slane %v3619, %v3803
  %v3805 = vlaneseq
  %v3806 = vshrl.u32 %v3805, 7
  %v3807 = vsub.s32 2, %v3806
  %v3808 = vrot.slane %v3619, %v3807
  %v3809 = vlaneseq
  %v3810 = vshrl.u32 %v3809, 7
  %v3811 = vsub.s32 3, %v3810
  %v3812 = vrot.slane %v3619, %v3811
  %v3813 = vlaneseq
  %v3814 = vshrl.u32 %v3813, 7
  %v3815 = vsub.s32 4, %v3814
  %v3816 = vrot.slane %v3619, %v3815
  %v3817 = vlaneseq
  %v3818 = vshrl.u32 %v3817, 7
  %v3819 = vsub.s32 5, %v3818
  %v3820 = vrot.slane %v3619, %v3819
  %v3821 = vlaneseq
  %v3822 = vshrl.u32 %v3821, 7
  %v3823 = vsub.s32 6, %v3822
  %v3824 = vrot.slane %v3619, %v3823
  %v3825 = vlaneseq
  %v3826 = vshrl.u32 %v3825, 7
  %v3827 = vsub.s32 7, %v3826
  %v3828 = vrot.slane %v3619, %v3827
  %v3829 = vlaneseq
  %v3830 = vshrl.u32 %v3829, 7
  %v3831 = vsub.s32 0, %v3830
  %v3832 = vrot.slane %v3622, %v3831
  %v3833 = vlaneseq
  %v3834 = vshrl.u32 %v3833, 7
  %v3835 = vsub.s32 1, %v3834
  %v3836 = vrot.slane %v3622, %v3835
  %v3837 = vlaneseq
  %v3838 = vshrl.u32 %v3837, 7
  %v3839 = vsub.s32 2, %v3838
  %v3840 = vrot.slane %v3622, %v3839
  %v3841 = vlaneseq
  %v3842 = vshrl.u32 %v3841, 7
  %v3843 = vsub.s32 3, %v3842
  %v3844 = vrot.slane %v3622, %v3843
  %v3845 = vlaneseq
  %v3846 = vshrl.u32 %v3845, 7
  %v3847 = vsub.s32 4, %v3846
  %v3848 = vrot.slane %v3622, %v3847
  %v3849 = vlaneseq
  %v3850 = vshrl.u32 %v3849, 7
  %v3851 = vsub.s32 5, %v3850
  %v3852 = vrot.slane %v3622, %v3851
  %v3853 = vlaneseq
  %v3854 = vshrl.u32 %v3853, 7
  %v3855 = vsub.s32 6, %v3854
  %v3856 = vrot.slane %v3622, %v3855
  %v3857 = vlaneseq
  %v3858 = vshrl.u32 %v3857, 7
  %v3859 = vsub.s32 7, %v3858
  %v3860 = vrot.slane %v3622, %v3859
  %v3861 = vlaneseq
  %v3862 = vshrl.u32 %v3861, 7
  %v3863 = vsub.s32 0, %v3862
  %v3864 = vrot.slane %v3625, %v3863
  %v3865 = vlaneseq
  %v3866 = vshrl.u32 %v3865, 7
  %v3867 = vsub.s32 1, %v3866
  %v3868 = vrot.slane %v3625, %v3867
  %v3869 = vlaneseq
  %v3870 = vshrl.u32 %v3869, 7
  %v3871 = vsub.s32 2, %v3870
  %v3872 = vrot.slane %v3625, %v3871
  %v3873 = vlaneseq
  %v3874 = vshrl.u32 %v3873, 7
  %v3875 = vsub.s32 3, %v3874
  %v3876 = vrot.slane %v3625, %v3875
  %v3877 = vlaneseq
  %v3878 = vshrl.u32 %v3877, 7
  %v3879 = vsub.s32 4, %v3878
  %v3880 = vrot.slane %v3625, %v3879
  %v3881 = vlaneseq
  %v3882 = vshrl.u32 %v3881, 7
  %v3883 = vsub.s32 5, %v3882
  %v3884 = vrot.slane %v3625, %v3883
  %v3885 = vlaneseq
  %v3886 = vshrl.u32 %v3885, 7
  %v3887 = vsub.s32 6, %v3886
  %v3888 = vrot.slane %v3625, %v3887
  %v3889 = vlaneseq
  %v3890 = vshrl.u32 %v3889, 7
  %v3891 = vsub.s32 7, %v3890
  %v3892 = vrot.slane %v3625, %v3891
  %v3893 = vlaneseq
  %v3894 = vshrl.u32 %v3893, 7
  %v3895 = vsub.s32 0, %v3894
  %v3896 = vrot.slane %v3628, %v3895
  %v3897 = vlaneseq
  %v3898 = vshrl.u32 %v3897, 7
  %v3899 = vsub.s32 1, %v3898
  %v3900 = vrot.slane %v3628, %v3899
  %v3901 = vlaneseq
  %v3902 = vshrl.u32 %v3901, 7
  %v3903 = vsub.s32 2, %v3902
  %v3904 = vrot.slane %v3628, %v3903
  %v3905 = vlaneseq
  %v3906 = vshrl.u32 %v3905, 7
  %v3907 = vsub.s32 3, %v3906
  %v3908 = vrot.slane %v3628, %v3907
  %v3909 = vlaneseq
  %v3910 = vshrl.u32 %v3909, 7
  %v3911 = vsub.s32 4, %v3910
  %v3912 = vrot.slane %v3628, %v3911
  %v3913 = vlaneseq
  %v3914 = vshrl.u32 %v3913, 7
  %v3915 = vsub.s32 5, %v3914
  %v3916 = vrot.slane %v3628, %v3915
  %v3917 = vlaneseq
  %v3918 = vshrl.u32 %v3917, 7
  %v3919 = vsub.s32 6, %v3918
  %v3920 = vrot.slane %v3628, %v3919
  %v3921 = vlaneseq
  %v3922 = vshrl.u32 %v3921, 7
  %v3923 = vsub.s32 7, %v3922
  %v3924 = vrot.slane %v3628, %v3923
  %v3925 = vlaneseq
  %v3926 = vshrl.u32 %v3925, 7
  %v3927 = vsub.s32 0, %v3926
  %v3928 = vrot.slane %v3631, %v3927
  %v3929 = vlaneseq
  %v3930 = vshrl.u32 %v3929, 7
  %v3931 = vsub.s32 1, %v3930
  %v3932 = vrot.slane %v3631, %v3931
  %v3933 = vlaneseq
  %v3934 = vshrl.u32 %v3933, 7
  %v3935 = vsub.s32 2, %v3934
  %v3936 = vrot.slane %v3631, %v3935
  %v3937 = vlaneseq
  %v3938 = vshrl.u32 %v3937, 7
  %v3939 = vsub.s32 3, %v3938
  %v3940 = vrot.slane %v3631, %v3939
  %v3941 = vlaneseq
  %v3942 = vshrl.u32 %v3941, 7
  %v3943 = vsub.s32 4, %v3942
  %v3944 = vrot.slane %v3631, %v3943
  %v3945 = vlaneseq
  %v3946 = vshrl.u32 %v3945, 7
  %v3947 = vsub.s32 5, %v3946
  %v3948 = vrot.slane %v3631, %v3947
  %v3949 = vlaneseq
  %v3950 = vshrl.u32 %v3949, 7
  %v3951 = vsub.s32 6, %v3950
  %v3952 = vrot.slane %v3631, %v3951
  %v3953 = vlaneseq
  %v3954 = vshrl.u32 %v3953, 7
  %v3955 = vsub.s32 7, %v3954
  %v3956 = vrot.slane %v3631, %v3955
  %v3957 = vlaneseq
  %v3958 = vshrl.u32 %v3957, 7
  %v3959 = vsub.s32 0, %v3958
  %v3960 = vrot.slane %v3634, %v3959
  %v3961 = vlaneseq
  %v3962 = vshrl.u32 %v3961, 7
  %v3963 = vsub.s32 1, %v3962
  %v3964 = vrot.slane %v3634, %v3963
  %v3965 = vlaneseq
  %v3966 = vshrl.u32 %v3965, 7
  %v3967 = vsub.s32 2, %v3966
  %v3968 = vrot.slane %v3634, %v3967
  %v3969 = vlaneseq
  %v3970 = vshrl.u32 %v3969, 7
  %v3971 = vsub.s32 3, %v3970
  %v3972 = vrot.slane %v3634, %v3971
  %v3973 = vlaneseq
  %v3974 = vshrl.u32 %v3973, 7
  %v3975 = vsub.s32 4, %v3974
  %v3976 = vrot.slane %v3634, %v3975
  %v3977 = vlaneseq
  %v3978 = vshrl.u32 %v3977, 7
  %v3979 = vsub.s32 5, %v3978
  %v3980 = vrot.slane %v3634, %v3979
  %v3981 = vlaneseq
  %v3982 = vshrl.u32 %v3981, 7
  %v3983 = vsub.s32 6, %v3982
  %v3984 = vrot.slane %v3634, %v3983
  %v3985 = vlaneseq
  %v3986 = vshrl.u32 %v3985, 7
  %v3987 = vsub.s32 7, %v3986
  %v3988 = vrot.slane %v3634, %v3987
  %v3989 = vlaneseq
  %v3990 = vshrl.u32 %v3989, 7
  %v3991 = vsub.s32 0, %v3990
  %v3992 = vrot.slane %v3637, %v3991
  %v3993 = vlaneseq
  %v3994 = vshrl.u32 %v3993, 7
  %v3995 = vsub.s32 1, %v3994
  %v3996 = vrot.slane %v3637, %v3995
  %v3997 = vlaneseq
  %v3998 = vshrl.u32 %v3997, 7
  %v3999 = vsub.s32 2, %v3998
  %v4000 = vrot.slane %v3637, %v3999
  %v4001 = vlaneseq
  %v4002 = vshrl.u32 %v4001, 7
  %v4003 = vsub.s32 3, %v4002
  %v4004 = vrot.slane %v3637, %v4003
  %v4005 = vlaneseq
  %v4006 = vshrl.u32 %v4005, 7
  %v4007 = vsub.s32 4, %v4006
  %v4008 = vrot.slane %v3637, %v4007
  %v4009 = vlaneseq
  %v4010 = vshrl.u32 %v4009, 7
  %v4011 = vsub.s32 5, %v4010
  %v4012 = vrot.slane %v3637, %v4011
  %v4013 = vlaneseq
  %v4014 = vshrl.u32 %v4013, 7
  %v4015 = vsub.s32 6, %v4014
  %v4016 = vrot.slane %v3637, %v4015
  %v4017 = vlaneseq
  %v4018 = vshrl.u32 %v4017, 7
  %v4019 = vsub.s32 7, %v4018
  %v4020 = vrot.slane %v3637, %v4019
  %v4021 = vlaneseq
  %v4022 = vshrl.u32 %v4021, 7
  %v4023 = vsub.s32 0, %v4022
  %v4024 = vrot.slane %v3640, %v4023
  %v4025 = vlaneseq
  %v4026 = vshrl.u32 %v4025, 7
  %v4027 = vsub.s32 1, %v4026
  %v4028 = vrot.slane %v3640, %v4027
  %v4029 = vlaneseq
  %v4030 = vshrl.u32 %v4029, 7
  %v4031 = vsub.s32 2, %v4030
  %v4032 = vrot.slane %v3640, %v4031
  %v4033 = vlaneseq
  %v4034 = vshrl.u32 %v4033, 7
  %v4035 = vsub.s32 3, %v4034
  %v4036 = vrot.slane %v3640, %v4035
  %v4037 = vlaneseq
  %v4038 = vshrl.u32 %v4037, 7
  %v4039 = vsub.s32 4, %v4038
  %v4040 = vrot.slane %v3640, %v4039
  %v4041 = vlaneseq
  %v4042 = vshrl.u32 %v4041, 7
  %v4043 = vsub.s32 5, %v4042
  %v4044 = vrot.slane %v3640, %v4043
  %v4045 = vlaneseq
  %v4046 = vshrl.u32 %v4045, 7
  %v4047 = vsub.s32 6, %v4046
  %v4048 = vrot.slane %v3640, %v4047
  %v4049 = vlaneseq
  %v4050 = vshrl.u32 %v4049, 7
  %v4051 = vsub.s32 7, %v4050
  %v4052 = vrot.slane %v3640, %v4051
  %v4053 = vlaneseq
  %v4054 = vshrl.u32 %v4053, 7
  %v4055 = vsub.s32 0, %v4054
  %v4056 = vrot.slane %v3643, %v4055
  %v4057 = vlaneseq
  %v4058 = vshrl.u32 %v4057, 7
  %v4059 = vsub.s32 1, %v4058
  %v4060 = vrot.slane %v3643, %v4059
  %v4061 = vlaneseq
  %v4062 = vshrl.u32 %v4061, 7
  %v4063 = vsub.s32 2, %v4062
  %v4064 = vrot.slane %v3643, %v4063
  %v4065 = vlaneseq
  %v4066 = vshrl.u32 %v4065, 7
  %v4067 = vsub.s32 3, %v4066
  %v4068 = vrot.slane %v3643, %v4067
  %v4069 = vlaneseq
  %v4070 = vshrl.u32 %v4069, 7
  %v4071 = vsub.s32 4, %v4070
  %v4072 = vrot.slane %v3643, %v4071
  %v4073 = vlaneseq
  %v4074 = vshrl.u32 %v4073, 7
  %v4075 = vsub.s32 5, %v4074
  %v4076 = vrot.slane %v3643, %v4075
  %v4077 = vlaneseq
  %v4078 = vshrl.u32 %v4077, 7
  %v4079 = vsub.s32 6, %v4078
  %v4080 = vrot.slane %v3643, %v4079
  %v4081 = vlaneseq
  %v4082 = vshrl.u32 %v4081, 7
  %v4083 = vsub.s32 7, %v4082
  %v4084 = vrot.slane %v3643, %v4083
  %v4085 = vlaneseq
  %v4086 = vshrl.u32 %v4085, 7
  %v4087 = vsub.s32 0, %v4086
  %v4088 = vrot.slane %v3646, %v4087
  %v4089 = vlaneseq
  %v4090 = vshrl.u32 %v4089, 7
  %v4091 = vsub.s32 1, %v4090
  %v4092 = vrot.slane %v3646, %v4091
  %v4093 = vlaneseq
  %v4094 = vshrl.u32 %v4093, 7
  %v4095 = vsub.s32 2, %v4094
  %v4096 = vrot.slane %v3646, %v4095
  %v4097 = vlaneseq
  %v4098 = vshrl.u32 %v4097, 7
  %v4099 = vsub.s32 3, %v4098
  %v4100 = vrot.slane %v3646, %v4099
  %v4101 = vlaneseq
  %v4102 = vshrl.u32 %v4101, 7
  %v4103 = vsub.s32 4, %v4102
  %v4104 = vrot.slane %v3646, %v4103
  %v4105 = vlaneseq
  %v4106 = vshrl.u32 %v4105, 7
  %v4107 = vsub.s32 5, %v4106
  %v4108 = vrot.slane %v3646, %v4107
  %v4109 = vlaneseq
  %v4110 = vshrl.u32 %v4109, 7
  %v4111 = vsub.s32 6, %v4110
  %v4112 = vrot.slane %v3646, %v4111
  %v4113 = vlaneseq
  %v4114 = vshrl.u32 %v4113, 7
  %v4115 = vsub.s32 7, %v4114
  %v4116 = vrot.slane %v3646, %v4115
  %v4117 = vlaneseq
  %v4118 = vshrl.u32 %v4117, 7
  %v4119 = vsub.s32 0, %v4118
  %v4120 = vrot.slane %v3649, %v4119
  %v4121 = vlaneseq
  %v4122 = vshrl.u32 %v4121, 7
  %v4123 = vsub.s32 1, %v4122
  %v4124 = vrot.slane %v3649, %v4123
  %v4125 = vlaneseq
  %v4126 = vshrl.u32 %v4125, 7
  %v4127 = vsub.s32 2, %v4126
  %v4128 = vrot.slane %v3649, %v4127
  %v4129 = vlaneseq
  %v4130 = vshrl.u32 %v4129, 7
  %v4131 = vsub.s32 3, %v4130
  %v4132 = vrot.slane %v3649, %v4131
  %v4133 = vlaneseq
  %v4134 = vshrl.u32 %v4133, 7
  %v4135 = vsub.s32 4, %v4134
  %v4136 = vrot.slane %v3649, %v4135
  %v4137 = vlaneseq
  %v4138 = vshrl.u32 %v4137, 7
  %v4139 = vsub.s32 5, %v4138
  %v4140 = vrot.slane %v3649, %v4139
  %v4141 = vlaneseq
  %v4142 = vshrl.u32 %v4141, 7
  %v4143 = vsub.s32 6, %v4142
  %v4144 = vrot.slane %v3649, %v4143
  %v4145 = vlaneseq
  %v4146 = vshrl.u32 %v4145, 7
  %v4147 = vsub.s32 7, %v4146
  %v4148 = vrot.slane %v3649, %v4147
  %v4149 = vlaneseq
  %v4150 = vshrl.u32 %v4149, 7
  %v4151 = vsub.s32 0, %v4150
  %v4152 = vrot.slane %v3652, %v4151
  %v4153 = vlaneseq
  %v4154 = vshrl.u32 %v4153, 7
  %v4155 = vsub.s32 1, %v4154
  %v4156 = vrot.slane %v3652, %v4155
  %v4157 = vlaneseq
  %v4158 = vshrl.u32 %v4157, 7
  %v4159 = vsub.s32 2, %v4158
  %v4160 = vrot.slane %v3652, %v4159
  %v4161 = vlaneseq
  %v4162 = vshrl.u32 %v4161, 7
  %v4163 = vsub.s32 3, %v4162
  %v4164 = vrot.slane %v3652, %v4163
  %v4165 = vlaneseq
  %v4166 = vshrl.u32 %v4165, 7
  %v4167 = vsub.s32 4, %v4166
  %v4168 = vrot.slane %v3652, %v4167
  %v4169 = vlaneseq
  %v4170 = vshrl.u32 %v4169, 7
  %v4171 = vsub.s32 5, %v4170
  %v4172 = vrot.slane %v3652, %v4171
  %v4173 = vlaneseq
  %v4174 = vshrl.u32 %v4173, 7
  %v4175 = vsub.s32 6, %v4174
  %v4176 = vrot.slane %v3652, %v4175
  %v4177 = vlaneseq
  %v4178 = vshrl.u32 %v4177, 7
  %v4179 = vsub.s32 7, %v4178
  %v4180 = vrot.slane %v3652, %v4179
  %v4181 = vcombine.low %v3672, %v3676
  %v4182 = vcombine.low %v3680, %v3684
  %v4183 = vcombine.low %v3688, %v3692
  %v4184 = vcombine.low %v3696, %v3700
  %v4186 = vunpack.c.l.s4 1966171168
  %v4187 = vunpack.c.0.s8 %v4186
  %v4188 = vlaneseq
  %v4189 = vshrl.u32 %v4188, 7
  %v4190 = vsub.s32 %v4187, %v4189
  %v4191 = vrot.slane %v4181, %v4190
  %v4193 = vunpack.c.l.s4 1966171168
  %v4194 = vunpack.c.0.s8 %v4193
  %v4195 = vlaneseq
  %v4196 = vshrl.u32 %v4195, 7
  %v4197 = vsub.s32 %v4194, %v4196
  %v4198 = vrot.slane %v4182, %v4197
  %v4200 = vunpack.c.l.s4 1966171168
  %v4201 = vunpack.c.0.s8 %v4200
  %v4202 = vlaneseq
  %v4203 = vshrl.u32 %v4202, 7
  %v4204 = vsub.s32 %v4201, %v4203
  %v4205 = vrot.slane %v4183, %v4204
  %v4207 = vunpack.c.l.s4 1966171168
  %v4208 = vunpack.c.0.s8 %v4207
  %v4209 = vlaneseq
  %v4210 = vshrl.u32 %v4209, 7
  %v4211 = vsub.s32 %v4208, %v4210
  %v4212 = vrot.slane %v4184, %v4211
  %v4213 = vcombine.low %v4191, %v4198
  %v4214 = vcombine.low %v4205, %v4212
  %v4216 = vunpack.c.l.s4 1966171168
  %v4217 = vunpack.c.0.s8 %v4216
  %v4218 = vlaneseq
  %v4219 = vshrl.u32 %v4218, 7
  %v4220 = vsub.s32 %v4217, %v4219
  %v4221 = vrot.slane %v4213, %v4220
  %v4223 = vunpack.c.l.s4 1966171168
  %v4224 = vunpack.c.0.s8 %v4223
  %v4225 = vlaneseq
  %v4226 = vshrl.u32 %v4225, 7
  %v4227 = vsub.s32 %v4224, %v4226
  %v4228 = vrot.slane %v4214, %v4227
  %v4229 = vcombine.low %v4221, %v4228
  %v4230 = vcombine.low %v3704, %v3708
  %v4231 = vcombine.low %v3712, %v3716
  %v4232 = vcombine.low %v3720, %v3724
  %v4233 = vcombine.low %v3728, %v3732
  %v4235 = vunpack.c.l.s4 1966171168
  %v4236 = vunpack.c.0.s8 %v4235
  %v4237 = vlaneseq
  %v4238 = vshrl.u32 %v4237, 7
  %v4239 = vsub.s32 %v4236, %v4238
  %v4240 = vrot.slane %v4230, %v4239
  %v4242 = vunpack.c.l.s4 1966171168
  %v4243 = vunpack.c.0.s8 %v4242
  %v4244 = vlaneseq
  %v4245 = vshrl.u32 %v4244, 7
  %v4246 = vsub.s32 %v4243, %v4245
  %v4247 = vrot.slane %v4231, %v4246
  %v4249 = vunpack.c.l.s4 1966171168
  %v4250 = vunpack.c.0.s8 %v4249
  %v4251 = vlaneseq
  %v4252 = vshrl.u32 %v4251, 7
  %v4253 = vsub.s32 %v4250, %v4252
  %v4254 = vrot.slane %v4232, %v4253
  %v4256 = vunpack.c.l.s4 1966171168
  %v4257 = vunpack.c.0.s8 %v4256
  %v4258 = vlaneseq
  %v4259 = vshrl.u32 %v4258, 7
  %v4260 = vsub.s32 %v4257, %v4259
  %v4261 = vrot.slane %v4233, %v4260
  %v4262 = vcombine.low %v4240, %v4247
  %v4263 = vcombine.low %v4254, %v4261
  %v4265 = vunpack.c.l.s4 1966171168
  %v4266 = vunpack.c.0.s8 %v4265
  %v4267 = vlaneseq
  %v4268 = vshrl.u32 %v4267, 7
  %v4269 = vsub.s32 %v4266, %v4268
  %v4270 = vrot.slane %v4262, %v4269
  %v4272 = vunpack.c.l.s4 1966171168
  %v4273 = vunpack.c.0.s8 %v4272
  %v4274 = vlaneseq
  %v4275 = vshrl.u32 %v4274, 7
  %v4276 = vsub.s32 %v4273, %v4275
  %v4277 = vrot.slane %v4263, %v4276
  %v4278 = vcombine.low %v4270, %v4277
  %v4279 = vcombine.low %v3736, %v3740
  %v4280 = vcombine.low %v3744, %v3748
  %v4281 = vcombine.low %v3752, %v3756
  %v4282 = vcombine.low %v3760, %v3764
  %v4284 = vunpack.c.l.s4 1966171168
  %v4285 = vunpack.c.0.s8 %v4284
  %v4286 = vlaneseq
  %v4287 = vshrl.u32 %v4286, 7
  %v4288 = vsub.s32 %v4285, %v4287
  %v4289 = vrot.slane %v4279, %v4288
  %v4291 = vunpack.c.l.s4 1966171168
  %v4292 = vunpack.c.0.s8 %v4291
  %v4293 = vlaneseq
  %v4294 = vshrl.u32 %v4293, 7
  %v4295 = vsub.s32 %v4292, %v4294
  %v4296 = vrot.slane %v4280, %v4295
  %v4298 = vunpack.c.l.s4 1966171168
  %v4299 = vunpack.c.0.s8 %v4298
  %v4300 = vlaneseq
  %v4301 = vshrl.u32 %v4300, 7
  %v4302 = vsub.s32 %v4299, %v4301
  %v4303 = vrot.slane %v4281, %v4302
  %v4305 = vunpack.c.l.s4 1966171168
  %v4306 = vunpack.c.0.s8 %v4305
  %v4307 = vlaneseq
  %v4308 = vshrl.u32 %v4307, 7
  %v4309 = vsub.s32 %v4306, %v4308
  %v4310 = vrot.slane %v4282, %v4309
  %v4311 = vcombine.low %v4289, %v4296
  %v4312 = vcombine.low %v4303, %v4310
  %v4314 = vunpack.c.l.s4 1966171168
  %v4315 = vunpack.c.0.s8 %v4314
  %v4316 = vlaneseq
  %v4317 = vshrl.u32 %v4316, 7
  %v4318 = vsub.s32 %v4315, %v4317
  %v4319 = vrot.slane %v4311, %v4318
  %v4321 = vunpack.c.l.s4 1966171168
  %v4322 = vunpack.c.0.s8 %v4321
  %v4323 = vlaneseq
  %v4324 = vshrl.u32 %v4323, 7
  %v4325 = vsub.s32 %v4322, %v4324
  %v4326 = vrot.slane %v4312, %v4325
  %v4327 = vcombine.low %v4319, %v4326
  %v4328 = vcombine.low %v3768, %v3772
  %v4329 = vcombine.low %v3776, %v3780
  %v4330 = vcombine.low %v3784, %v3788
  %v4331 = vcombine.low %v3792, %v3796
  %v4333 = vunpack.c.l.s4 1966171168
  %v4334 = vunpack.c.0.s8 %v4333
  %v4335 = vlaneseq
  %v4336 = vshrl.u32 %v4335, 7
  %v4337 = vsub.s32 %v4334, %v4336
  %v4338 = vrot.slane %v4328, %v4337
  %v4340 = vunpack.c.l.s4 1966171168
  %v4341 = vunpack.c.0.s8 %v4340
  %v4342 = vlaneseq
  %v4343 = vshrl.u32 %v4342, 7
  %v4344 = vsub.s32 %v4341, %v4343
  %v4345 = vrot.slane %v4329, %v4344
  %v4347 = vunpack.c.l.s4 1966171168
  %v4348 = vunpack.c.0.s8 %v4347
  %v4349 = vlaneseq
  %v4350 = vshrl.u32 %v4349, 7
  %v4351 = vsub.s32 %v4348, %v4350
  %v4352 = vrot.slane %v4330, %v4351
  %v4354 = vunpack.c.l.s4 1966171168
  %v4355 = vunpack.c.0.s8 %v4354
  %v4356 = vlaneseq
  %v4357 = vshrl.u32 %v4356, 7
  %v4358 = vsub.s32 %v4355, %v4357
  %v4359 = vrot.slane %v4331, %v4358
  %v4360 = vcombine.low %v4338, %v4345
  %v4361 = vcombine.low %v4352, %v4359
  %v4363 = vunpack.c.l.s4 1966171168
  %v4364 = vunpack.c.0.s8 %v4363
  %v4365 = vlaneseq
  %v4366 = vshrl.u32 %v4365, 7
  %v4367 = vsub.s32 %v4364, %v4366
  %v4368 = vrot.slane %v4360, %v4367
  %v4370 = vunpack.c.l.s4 1966171168
  %v4371 = vunpack.c.0.s8 %v4370
  %v4372 = vlaneseq
  %v4373 = vshrl.u32 %v4372, 7
  %v4374 = vsub.s32 %v4371, %v4373
  %v4375 = vrot.slane %v4361, %v4374
  %v4376 = vcombine.low %v4368, %v4375
  %v4377 = vcombine.low %v3800, %v3804
  %v4378 = vcombine.low %v3808, %v3812
  %v4379 = vcombine.low %v3816, %v3820
  %v4380 = vcombine.low %v3824, %v3828
  %v4382 = vunpack.c.l.s4 1966171168
  %v4383 = vunpack.c.0.s8 %v4382
  %v4384 = vlaneseq
  %v4385 = vshrl.u32 %v4384, 7
  %v4386 = vsub.s32 %v4383, %v4385
  %v4387 = vrot.slane %v4377, %v4386
  %v4389 = vunpack.c.l.s4 1966171168
  %v4390 = vunpack.c.0.s8 %v4389
  %v4391 = vlaneseq
  %v4392 = vshrl.u32 %v4391, 7
  %v4393 = vsub.s32 %v4390, %v4392
  %v4394 = vrot.slane %v4378, %v4393
  %v4396 = vunpack.c.l.s4 1966171168
  %v4397 = vunpack.c.0.s8 %v4396
  %v4398 = vlaneseq
  %v4399 = vshrl.u32 %v4398, 7
  %v4400 = vsub.s32 %v4397, %v4399
  %v4401 = vrot.slane %v4379, %v4400
  %v4403 = vunpack.c.l.s4 1966171168
  %v4404 = vunpack.c.0.s8 %v4403
  %v4405 = vlaneseq
  %v4406 = vshrl.u32 %v4405, 7
  %v4407 = vsub.s32 %v4404, %v4406
  %v4408 = vrot.slane %v4380, %v4407
  %v4409 = vcombine.low %v4387, %v4394
  %v4410 = vcombine.low %v4401, %v4408
  %v4412 = vunpack.c.l.s4 1966171168
  %v4413 = vunpack.c.0.s8 %v4412
  %v4414 = vlaneseq
  %v4415 = vshrl.u32 %v4414, 7
  %v4416 = vsub.s32 %v4413, %v4415
  %v4417 = vrot.slane %v4409, %v4416
  %v4419 = vunpack.c.l.s4 1966171168
  %v4420 = vunpack.c.0.s8 %v4419
  %v4421 = vlaneseq
  %v4422 = vshrl.u32 %v4421, 7
  %v4423 = vsub.s32 %v4420, %v4422
  %v4424 = vrot.slane %v4410, %v4423
  %v4425 = vcombine.low %v4417, %v4424
  %v4426 = vcombine.low %v3832, %v3836
  %v4427 = vcombine.low %v3840, %v3844
  %v4428 = vcombine.low %v3848, %v3852
  %v4429 = vcombine.low %v3856, %v3860
  %v4431 = vunpack.c.l.s4 1966171168
  %v4432 = vunpack.c.0.s8 %v4431
  %v4433 = vlaneseq
  %v4434 = vshrl.u32 %v4433, 7
  %v4435 = vsub.s32 %v4432, %v4434
  %v4436 = vrot.slane %v4426, %v4435
  %v4438 = vunpack.c.l.s4 1966171168
  %v4439 = vunpack.c.0.s8 %v4438
  %v4440 = vlaneseq
  %v4441 = vshrl.u32 %v4440, 7
  %v4442 = vsub.s32 %v4439, %v4441
  %v4443 = vrot.slane %v4427, %v4442
  %v4445 = vunpack.c.l.s4 1966171168
  %v4446 = vunpack.c.0.s8 %v4445
  %v4447 = vlaneseq
  %v4448 = vshrl.u32 %v4447, 7
  %v4449 = vsub.s32 %v4446, %v4448
  %v4450 = vrot.slane %v4428, %v4449
  %v4452 = vunpack.c.l.s4 1966171168
  %v4453 = vunpack.c.0.s8 %v4452
  %v4454 = vlaneseq
  %v4455 = vshrl.u32 %v4454, 7
  %v4456 = vsub.s32 %v4453, %v4455
  %v4457 = vrot.slane %v4429, %v4456
  %v4458 = vcombine.low %v4436, %v4443
  %v4459 = vcombine.low %v4450, %v4457
  %v4461 = vunpack.c.l.s4 1966171168
  %v4462 = vunpack.c.0.s8 %v4461
  %v4463 = vlaneseq
  %v4464 = vshrl.u32 %v4463, 7
  %v4465 = vsub.s32 %v4462, %v4464
  %v4466 = vrot.slane %v4458, %v4465
  %v4468 = vunpack.c.l.s4 1966171168
  %v4469 = vunpack.c.0.s8 %v4468
  %v4470 = vlaneseq
  %v4471 = vshrl.u32 %v4470, 7
  %v4472 = vsub.s32 %v4469, %v4471
  %v4473 = vrot.slane %v4459, %v4472
  %v4474 = vcombine.low %v4466, %v4473
  %v4475 = vcombine.low %v3864, %v3868
  %v4476 = vcombine.low %v3872, %v3876
  %v4477 = vcombine.low %v3880, %v3884
  %v4478 = vcombine.low %v3888, %v3892
  %v4480 = vunpack.c.l.s4 1966171168
  %v4481 = vunpack.c.0.s8 %v4480
  %v4482 = vlaneseq
  %v4483 = vshrl.u32 %v4482, 7
  %v4484 = vsub.s32 %v4481, %v4483
  %v4485 = vrot.slane %v4475, %v4484
  %v4487 = vunpack.c.l.s4 1966171168
  %v4488 = vunpack.c.0.s8 %v4487
  %v4489 = vlaneseq
  %v4490 = vshrl.u32 %v4489, 7
  %v4491 = vsub.s32 %v4488, %v4490
  %v4492 = vrot.slane %v4476, %v4491
  %v4494 = vunpack.c.l.s4 1966171168
  %v4495 = vunpack.c.0.s8 %v4494
  %v4496 = vlaneseq
  %v4497 = vshrl.u32 %v4496, 7
  %v4498 = vsub.s32 %v4495, %v4497
  %v4499 = vrot.slane %v4477, %v4498
  %v4501 = vunpack.c.l.s4 1966171168
  %v4502 = vunpack.c.0.s8 %v4501
  %v4503 = vlaneseq
  %v4504 = vshrl.u32 %v4503, 7
  %v4505 = vsub.s32 %v4502, %v4504
  %v4506 = vrot.slane %v4478, %v4505
  %v4507 = vcombine.low %v4485, %v4492
  %v4508 = vcombine.low %v4499, %v4506
  %v4510 = vunpack.c.l.s4 1966171168
  %v4511 = vunpack.c.0.s8 %v4510
  %v4512 = vlaneseq
  %v4513 = vshrl.u32 %v4512, 7
  %v4514 = vsub.s32 %v4511, %v4513
  %v4515 = vrot.slane %v4507, %v4514
  %v4517 = vunpack.c.l.s4 1966171168
  %v4518 = vunpack.c.0.s8 %v4517
  %v4519 = vlaneseq
  %v4520 = vshrl.u32 %v4519, 7
  %v4521 = vsub.s32 %v4518, %v4520
  %v4522 = vrot.slane %v4508, %v4521
  %v4523 = vcombine.low %v4515, %v4522
  %v4524 = vcombine.low %v3896, %v3900
  %v4525 = vcombine.low %v3904, %v3908
  %v4526 = vcombine.low %v3912, %v3916
  %v4527 = vcombine.low %v3920, %v3924
  %v4529 = vunpack.c.l.s4 1966171168
  %v4530 = vunpack.c.0.s8 %v4529
  %v4531 = vlaneseq
  %v4532 = vshrl.u32 %v4531, 7
  %v4533 = vsub.s32 %v4530, %v4532
  %v4534 = vrot.slane %v4524, %v4533
  %v4536 = vunpack.c.l.s4 1966171168
  %v4537 = vunpack.c.0.s8 %v4536
  %v4538 = vlaneseq
  %v4539 = vshrl.u32 %v4538, 7
  %v4540 = vsub.s32 %v4537, %v4539
  %v4541 = vrot.slane %v4525, %v4540
  %v4543 = vunpack.c.l.s4 1966171168
  %v4544 = vunpack.c.0.s8 %v4543
  %v4545 = vlaneseq
  %v4546 = vshrl.u32 %v4545, 7
  %v4547 = vsub.s32 %v4544, %v4546
  %v4548 = vrot.slane %v4526, %v4547
  %v4550 = vunpack.c.l.s4 1966171168
  %v4551 = vunpack.c.0.s8 %v4550
  %v4552 = vlaneseq
  %v4553 = vshrl.u32 %v4552, 7
  %v4554 = vsub.s32 %v4551, %v4553
  %v4555 = vrot.slane %v4527, %v4554
  %v4556 = vcombine.low %v4534, %v4541
  %v4557 = vcombine.low %v4548, %v4555
  %v4559 = vunpack.c.l.s4 1966171168
  %v4560 = vunpack.c.0.s8 %v4559
  %v4561 = vlaneseq
  %v4562 = vshrl.u32 %v4561, 7
  %v4563 = vsub.s32 %v4560, %v4562
  %v4564 = vrot.slane %v4556, %v4563
  %v4566 = vunpack.c.l.s4 1966171168
  %v4567 = vunpack.c.0.s8 %v4566
  %v4568 = vlaneseq
  %v4569 = vshrl.u32 %v4568, 7
  %v4570 = vsub.s32 %v4567, %v4569
  %v4571 = vrot.slane %v4557, %v4570
  %v4572 = vcombine.low %v4564, %v4571
  %v4573 = vcombine.low %v3928, %v3932
  %v4574 = vcombine.low %v3936, %v3940
  %v4575 = vcombine.low %v3944, %v3948
  %v4576 = vcombine.low %v3952, %v3956
  %v4578 = vunpack.c.l.s4 1966171168
  %v4579 = vunpack.c.0.s8 %v4578
  %v4580 = vlaneseq
  %v4581 = vshrl.u32 %v4580, 7
  %v4582 = vsub.s32 %v4579, %v4581
  %v4583 = vrot.slane %v4573, %v4582
  %v4585 = vunpack.c.l.s4 1966171168
  %v4586 = vunpack.c.0.s8 %v4585
  %v4587 = vlaneseq
  %v4588 = vshrl.u32 %v4587, 7
  %v4589 = vsub.s32 %v4586, %v4588
  %v4590 = vrot.slane %v4574, %v4589
  %v4592 = vunpack.c.l.s4 1966171168
  %v4593 = vunpack.c.0.s8 %v4592
  %v4594 = vlaneseq
  %v4595 = vshrl.u32 %v4594, 7
  %v4596 = vsub.s32 %v4593, %v4595
  %v4597 = vrot.slane %v4575, %v4596
  %v4599 = vunpack.c.l.s4 1966171168
  %v4600 = vunpack.c.0.s8 %v4599
  %v4601 = vlaneseq
  %v4602 = vshrl.u32 %v4601, 7
  %v4603 = vsub.s32 %v4600, %v4602
  %v4604 = vrot.slane %v4576, %v4603
  %v4605 = vcombine.low %v4583, %v4590
  %v4606 = vcombine.low %v4597, %v4604
  %v4608 = vunpack.c.l.s4 1966171168
  %v4609 = vunpack.c.0.s8 %v4608
  %v4610 = vlaneseq
  %v4611 = vshrl.u32 %v4610, 7
  %v4612 = vsub.s32 %v4609, %v4611
  %v4613 = vrot.slane %v4605, %v4612
  %v4615 = vunpack.c.l.s4 1966171168
  %v4616 = vunpack.c.0.s8 %v4615
  %v4617 = vlaneseq
  %v4618 = vshrl.u32 %v4617, 7
  %v4619 = vsub.s32 %v4616, %v4618
  %v4620 = vrot.slane %v4606, %v4619
  %v4621 = vcombine.low %v4613, %v4620
  %v4622 = vcombine.low %v3960, %v3964
  %v4623 = vcombine.low %v3968, %v3972
  %v4624 = vcombine.low %v3976, %v3980
  %v4625 = vcombine.low %v3984, %v3988
  %v4627 = vunpack.c.l.s4 1966171168
  %v4628 = vunpack.c.0.s8 %v4627
  %v4629 = vlaneseq
  %v4630 = vshrl.u32 %v4629, 7
  %v4631 = vsub.s32 %v4628, %v4630
  %v4632 = vrot.slane %v4622, %v4631
  %v4634 = vunpack.c.l.s4 1966171168
  %v4635 = vunpack.c.0.s8 %v4634
  %v4636 = vlaneseq
  %v4637 = vshrl.u32 %v4636, 7
  %v4638 = vsub.s32 %v4635, %v4637
  %v4639 = vrot.slane %v4623, %v4638
  %v4641 = vunpack.c.l.s4 1966171168
  %v4642 = vunpack.c.0.s8 %v4641
  %v4643 = vlaneseq
  %v4644 = vshrl.u32 %v4643, 7
  %v4645 = vsub.s32 %v4642, %v4644
  %v4646 = vrot.slane %v4624, %v4645
  %v4648 = vunpack.c.l.s4 1966171168
  %v4649 = vunpack.c.0.s8 %v4648
  %v4650 = vlaneseq
  %v4651 = vshrl.u32 %v4650, 7
  %v4652 = vsub.s32 %v4649, %v4651
  %v4653 = vrot.slane %v4625, %v4652
  %v4654 = vcombine.low %v4632, %v4639
  %v4655 = vcombine.low %v4646, %v4653
  %v4657 = vunpack.c.l.s4 1966171168
  %v4658 = vunpack.c.0.s8 %v4657
  %v4659 = vlaneseq
  %v4660 = vshrl.u32 %v4659, 7
  %v4661 = vsub.s32 %v4658, %v4660
  %v4662 = vrot.slane %v4654, %v4661
  %v4664 = vunpack.c.l.s4 1966171168
  %v4665 = vunpack.c.0.s8 %v4664
  %v4666 = vlaneseq
  %v4667 = vshrl.u32 %v4666, 7
  %v4668 = vsub.s32 %v4665, %v4667
  %v4669 = vrot.slane %v4655, %v4668
  %v4670 = vcombine.low %v4662, %v4669
  %v4671 = vcombine.low %v3992, %v3996
  %v4672 = vcombine.low %v4000, %v4004
  %v4673 = vcombine.low %v4008, %v4012
  %v4674 = vcombine.low %v4016, %v4020
  %v4676 = vunpack.c.l.s4 1966171168
  %v4677 = vunpack.c.0.s8 %v4676
  %v4678 = vlaneseq
  %v4679 = vshrl.u32 %v4678, 7
  %v4680 = vsub.s32 %v4677, %v4679
  %v4681 = vrot.slane %v4671, %v4680
  %v4683 = vunpack.c.l.s4 1966171168
  %v4684 = vunpack.c.0.s8 %v4683
  %v4685 = vlaneseq
  %v4686 = vshrl.u32 %v4685, 7
  %v4687 = vsub.s32 %v4684, %v4686
  %v4688 = vrot.slane %v4672, %v4687
  %v4690 = vunpack.c.l.s4 1966171168
  %v4691 = vunpack.c.0.s8 %v4690
  %v4692 = vlaneseq
  %v4693 = vshrl.u32 %v4692, 7
  %v4694 = vsub.s32 %v4691, %v4693
  %v4695 = vrot.slane %v4673, %v4694
  %v4697 = vunpack.c.l.s4 1966171168
  %v4698 = vunpack.c.0.s8 %v4697
  %v4699 = vlaneseq
  %v4700 = vshrl.u32 %v4699, 7
  %v4701 = vsub.s32 %v4698, %v4700
  %v4702 = vrot.slane %v4674, %v4701
  %v4703 = vcombine.low %v4681, %v4688
  %v4704 = vcombine.low %v4695, %v4702
  %v4706 = vunpack.c.l.s4 1966171168
  %v4707 = vunpack.c.0.s8 %v4706
  %v4708 = vlaneseq
  %v4709 = vshrl.u32 %v4708, 7
  %v4710 = vsub.s32 %v4707, %v4709
  %v4711 = vrot.slane %v4703, %v4710
  %v4713 = vunpack.c.l.s4 1966171168
  %v4714 = vunpack.c.0.s8 %v4713
  %v4715 = vlaneseq
  %v4716 = vshrl.u32 %v4715, 7
  %v4717 = vsub.s32 %v4714, %v4716
  %v4718 = vrot.slane %v4704, %v4717
  %v4719 = vcombine.low %v4711, %v4718
  %v4720 = vcombine.low %v4024, %v4028
  %v4721 = vcombine.low %v4032, %v4036
  %v4722 = vcombine.low %v4040, %v4044
  %v4723 = vcombine.low %v4048, %v4052
  %v4725 = vunpack.c.l.s4 1966171168
  %v4726 = vunpack.c.0.s8 %v4725
  %v4727 = vlaneseq
  %v4728 = vshrl.u32 %v4727, 7
  %v4729 = vsub.s32 %v4726, %v4728
  %v4730 = vrot.slane %v4720, %v4729
  %v4732 = vunpack.c.l.s4 1966171168
  %v4733 = vunpack.c.0.s8 %v4732
  %v4734 = vlaneseq
  %v4735 = vshrl.u32 %v4734, 7
  %v4736 = vsub.s32 %v4733, %v4735
  %v4737 = vrot.slane %v4721, %v4736
  %v4739 = vunpack.c.l.s4 1966171168
  %v4740 = vunpack.c.0.s8 %v4739
  %v4741 = vlaneseq
  %v4742 = vshrl.u32 %v4741, 7
  %v4743 = vsub.s32 %v4740, %v4742
  %v4744 = vrot.slane %v4722, %v4743
  %v4746 = vunpack.c.l.s4 1966171168
  %v4747 = vunpack.c.0.s8 %v4746
  %v4748 = vlaneseq
  %v4749 = vshrl.u32 %v4748, 7
  %v4750 = vsub.s32 %v4747, %v4749
  %v4751 = vrot.slane %v4723, %v4750
  %v4752 = vcombine.low %v4730, %v4737
  %v4753 = vcombine.low %v4744, %v4751
  %v4755 = vunpack.c.l.s4 1966171168
  %v4756 = vunpack.c.0.s8 %v4755
  %v4757 = vlaneseq
  %v4758 = vshrl.u32 %v4757, 7
  %v4759 = vsub.s32 %v4756, %v4758
  %v4760 = vrot.slane %v4752, %v4759
  %v4762 = vunpack.c.l.s4 1966171168
  %v4763 = vunpack.c.0.s8 %v4762
  %v4764 = vlaneseq
  %v4765 = vshrl.u32 %v4764, 7
  %v4766 = vsub.s32 %v4763, %v4765
  %v4767 = vrot.slane %v4753, %v4766
  %v4768 = vcombine.low %v4760, %v4767
  %v4769 = vcombine.low %v4056, %v4060
  %v4770 = vcombine.low %v4064, %v4068
  %v4771 = vcombine.low %v4072, %v4076
  %v4772 = vcombine.low %v4080, %v4084
  %v4774 = vunpack.c.l.s4 1966171168
  %v4775 = vunpack.c.0.s8 %v4774
  %v4776 = vlaneseq
  %v4777 = vshrl.u32 %v4776, 7
  %v4778 = vsub.s32 %v4775, %v4777
  %v4779 = vrot.slane %v4769, %v4778
  %v4781 = vunpack.c.l.s4 1966171168
  %v4782 = vunpack.c.0.s8 %v4781
  %v4783 = vlaneseq
  %v4784 = vshrl.u32 %v4783, 7
  %v4785 = vsub.s32 %v4782, %v4784
  %v4786 = vrot.slane %v4770, %v4785
  %v4788 = vunpack.c.l.s4 1966171168
  %v4789 = vunpack.c.0.s8 %v4788
  %v4790 = vlaneseq
  %v4791 = vshrl.u32 %v4790, 7
  %v4792 = vsub.s32 %v4789, %v4791
  %v4793 = vrot.slane %v4771, %v4792
  %v4795 = vunpack.c.l.s4 1966171168
  %v4796 = vunpack.c.0.s8 %v4795
  %v4797 = vlaneseq
  %v4798 = vshrl.u32 %v4797, 7
  %v4799 = vsub.s32 %v4796, %v4798
  %v4800 = vrot.slane %v4772, %v4799
  %v4801 = vcombine.low %v4779, %v4786
  %v4802 = vcombine.low %v4793, %v4800
  %v4804 = vunpack.c.l.s4 1966171168
  %v4805 = vunpack.c.0.s8 %v4804
  %v4806 = vlaneseq
  %v4807 = vshrl.u32 %v4806, 7
  %v4808 = vsub.s32 %v4805, %v4807
  %v4809 = vrot.slane %v4801, %v4808
  %v4811 = vunpack.c.l.s4 1966171168
  %v4812 = vunpack.c.0.s8 %v4811
  %v4813 = vlaneseq
  %v4814 = vshrl.u32 %v4813, 7
  %v4815 = vsub.s32 %v4812, %v4814
  %v4816 = vrot.slane %v4802, %v4815
  %v4817 = vcombine.low %v4809, %v4816
  %v4818 = vcombine.low %v4088, %v4092
  %v4819 = vcombine.low %v4096, %v4100
  %v4820 = vcombine.low %v4104, %v4108
  %v4821 = vcombine.low %v4112, %v4116
  %v4823 = vunpack.c.l.s4 1966171168
  %v4824 = vunpack.c.0.s8 %v4823
  %v4825 = vlaneseq
  %v4826 = vshrl.u32 %v4825, 7
  %v4827 = vsub.s32 %v4824, %v4826
  %v4828 = vrot.slane %v4818, %v4827
  %v4830 = vunpack.c.l.s4 1966171168
  %v4831 = vunpack.c.0.s8 %v4830
  %v4832 = vlaneseq
  %v4833 = vshrl.u32 %v4832, 7
  %v4834 = vsub.s32 %v4831, %v4833
  %v4835 = vrot.slane %v4819, %v4834
  %v4837 = vunpack.c.l.s4 1966171168
  %v4838 = vunpack.c.0.s8 %v4837
  %v4839 = vlaneseq
  %v4840 = vshrl.u32 %v4839, 7
  %v4841 = vsub.s32 %v4838, %v4840
  %v4842 = vrot.slane %v4820, %v4841
  %v4844 = vunpack.c.l.s4 1966171168
  %v4845 = vunpack.c.0.s8 %v4844
  %v4846 = vlaneseq
  %v4847 = vshrl.u32 %v4846, 7
  %v4848 = vsub.s32 %v4845, %v4847
  %v4849 = vrot.slane %v4821, %v4848
  %v4850 = vcombine.low %v4828, %v4835
  %v4851 = vcombine.low %v4842, %v4849
  %v4853 = vunpack.c.l.s4 1966171168
  %v4854 = vunpack.c.0.s8 %v4853
  %v4855 = vlaneseq
  %v4856 = vshrl.u32 %v4855, 7
  %v4857 = vsub.s32 %v4854, %v4856
  %v4858 = vrot.slane %v4850, %v4857
  %v4860 = vunpack.c.l.s4 1966171168
  %v4861 = vunpack.c.0.s8 %v4860
  %v4862 = vlaneseq
  %v4863 = vshrl.u32 %v4862, 7
  %v4864 = vsub.s32 %v4861, %v4863
  %v4865 = vrot.slane %v4851, %v4864
  %v4866 = vcombine.low %v4858, %v4865
  %v4867 = vcombine.low %v4120, %v4124
  %v4868 = vcombine.low %v4128, %v4132
  %v4869 = vcombine.low %v4136, %v4140
  %v4870 = vcombine.low %v4144, %v4148
  %v4872 = vunpack.c.l.s4 1966171168
  %v4873 = vunpack.c.0.s8 %v4872
  %v4874 = vlaneseq
  %v4875 = vshrl.u32 %v4874, 7
  %v4876 = vsub.s32 %v4873, %v4875
  %v4877 = vrot.slane %v4867, %v4876
  %v4879 = vunpack.c.l.s4 1966171168
  %v4880 = vunpack.c.0.s8 %v4879
  %v4881 = vlaneseq
  %v4882 = vshrl.u32 %v4881, 7
  %v4883 = vsub.s32 %v4880, %v4882
  %v4884 = vrot.slane %v4868, %v4883
  %v4886 = vunpack.c.l.s4 1966171168
  %v4887 = vunpack.c.0.s8 %v4886
  %v4888 = vlaneseq
  %v4889 = vshrl.u32 %v4888, 7
  %v4890 = vsub.s32 %v4887, %v4889
  %v4891 = vrot.slane %v4869, %v4890
  %v4893 = vunpack.c.l.s4 1966171168
  %v4894 = vunpack.c.0.s8 %v4893
  %v4895 = vlaneseq
  %v4896 = vshrl.u32 %v4895, 7
  %v4897 = vsub.s32 %v4894, %v4896
  %v4898 = vrot.slane %v4870, %v4897
  %v4899 = vcombine.low %v4877, %v4884
  %v4900 = vcombine.low %v4891, %v4898
  %v4902 = vunpack.c.l.s4 1966171168
  %v4903 = vunpack.c.0.s8 %v4902
  %v4904 = vlaneseq
  %v4905 = vshrl.u32 %v4904, 7
  %v4906 = vsub.s32 %v4903, %v4905
  %v4907 = vrot.slane %v4899, %v4906
  %v4909 = vunpack.c.l.s4 1966171168
  %v4910 = vunpack.c.0.s8 %v4909
  %v4911 = vlaneseq
  %v4912 = vshrl.u32 %v4911, 7
  %v4913 = vsub.s32 %v4910, %v4912
  %v4914 = vrot.slane %v4900, %v4913
  %v4915 = vcombine.low %v4907, %v4914
  %v4916 = vcombine.low %v4152, %v4156
  %v4917 = vcombine.low %v4160, %v4164
  %v4918 = vcombine.low %v4168, %v4172
  %v4919 = vcombine.low %v4176, %v4180
  %v4921 = vunpack.c.l.s4 1966171168
  %v4922 = vunpack.c.0.s8 %v4921
  %v4923 = vlaneseq
  %v4924 = vshrl.u32 %v4923, 7
  %v4925 = vsub.s32 %v4922, %v4924
  %v4926 = vrot.slane %v4916, %v4925
  %v4928 = vunpack.c.l.s4 1966171168
  %v4929 = vunpack.c.0.s8 %v4928
  %v4930 = vlaneseq
  %v4931 = vshrl.u32 %v4930, 7
  %v4932 = vsub.s32 %v4929, %v4931
  %v4933 = vrot.slane %v4917, %v4932
  %v4935 = vunpack.c.l.s4 1966171168
  %v4936 = vunpack.c.0.s8 %v4935
  %v4937 = vlaneseq
  %v4938 = vshrl.u32 %v4937, 7
  %v4939 = vsub.s32 %v4936, %v4938
  %v4940 = vrot.slane %v4918, %v4939
  %v4942 = vunpack.c.l.s4 1966171168
  %v4943 = vunpack.c.0.s8 %v4942
  %v4944 = vlaneseq
  %v4945 = vshrl.u32 %v4944, 7
  %v4946 = vsub.s32 %v4943, %v4945
  %v4947 = vrot.slane %v4919, %v4946
  %v4948 = vcombine.low %v4926, %v4933
  %v4949 = vcombine.low %v4940, %v4947
  %v4951 = vunpack.c.l.s4 1966171168
  %v4952 = vunpack.c.0.s8 %v4951
  %v4953 = vlaneseq
  %v4954 = vshrl.u32 %v4953, 7
  %v4955 = vsub.s32 %v4952, %v4954
  %v4956 = vrot.slane %v4948, %v4955
  %v4958 = vunpack.c.l.s4 1966171168
  %v4959 = vunpack.c.0.s8 %v4958
  %v4960 = vlaneseq
  %v4961 = vshrl.u32 %v4960, 7
  %v4962 = vsub.s32 %v4959, %v4961
  %v4963 = vrot.slane %v4949, %v4962
  %v4964 = vcombine.low %v4956, %v4963
  %4965 = vset.pattern.permute.xlu0 0
  %4966 = vperm.xlu0 %4965, %v4229
  %v4967 = vpop.permute.xlu0 %4966
  %4968 = vset.pattern.permute.xlu0 0
  %4969 = vperm.xlu0 %4968, %v4278
  %v4970 = vpop.permute.xlu0 %4969
  %4971 = vset.pattern.permute.xlu0 0
  %4972 = vperm.xlu0 %4971, %v4327
  %v4973 = vpop.permute.xlu0 %4972
  %4974 = vset.pattern.permute.xlu0 0
  %4975 = vperm.xlu0 %4974, %v4376
  %v4976 = vpop.permute.xlu0 %4975
  %4977 = vset.pattern.permute.xlu0 0
  %4978 = vperm.xlu0 %4977, %v4425
  %v4979 = vpop.permute.xlu0 %4978
  %4980 = vset.pattern.permute.xlu0 0
  %4981 = vperm.xlu0 %4980, %v4474
  %v4982 = vpop.permute.xlu0 %4981
  %4983 = vset.pattern.permute.xlu0 0
  %4984 = vperm.xlu0 %4983, %v4523
  %v4985 = vpop.permute.xlu0 %4984
  %4986 = vset.pattern.permute.xlu0 0
  %4987 = vperm.xlu0 %4986, %v4572
  %v4988 = vpop.permute.xlu0 %4987
  %4989 = vset.pattern.permute.xlu0 0
  %4990 = vperm.xlu0 %4989, %v4621
  %v4991 = vpop.permute.xlu0 %4990
  %4992 = vset.pattern.permute.xlu0 0
  %4993 = vperm.xlu0 %4992, %v4670
  %v4994 = vpop.permute.xlu0 %4993
  %4995 = vset.pattern.permute.xlu0 0
  %4996 = vperm.xlu0 %4995, %v4719
  %v4997 = vpop.permute.xlu0 %4996
  %4998 = vset.pattern.permute.xlu0 0
  %4999 = vperm.xlu0 %4998, %v4768
  %v5000 = vpop.permute.xlu0 %4999
  %5001 = vset.pattern.permute.xlu0 0
  %5002 = vperm.xlu0 %5001, %v4817
  %v5003 = vpop.permute.xlu0 %5002
  %5004 = vset.pattern.permute.xlu0 0
  %5005 = vperm.xlu0 %5004, %v4866
  %v5006 = vpop.permute.xlu0 %5005
  %5007 = vset.pattern.permute.xlu0 0
  %5008 = vperm.xlu0 %5007, %v4915
  %v5009 = vpop.permute.xlu0 %5008
  %5010 = vset.pattern.permute.xlu0 0
  %5011 = vperm.xlu0 %5010, %v4964
  %v5012 = vpop.permute.xlu0 %5011
  %v5013 = vlaneseq
  %v5014 = vand.u32 %v5013, 127
  %v5015 = vlaneseq
  %v5016 = vshrl.u32 %v5015, 7
  %v5017 = vsub.s32 %v5014, %v5016
  %v5018 = vrot.slane %v4967, %v5017
  %v5019 = vadd.s32 %v5014, 4294967288
  %v5020 = vlaneseq
  %v5021 = vshrl.u32 %v5020, 7
  %v5022 = vsub.s32 %v5019, %v5021
  %v5023 = vrot.slane %v4970, %v5022
  %vm5024 = vcmask 130112
  %v5025 = vsel %vm5024, %v5023, %v5018
  %v5026 = vadd.s32 %v5014, 4294967280
  %v5027 = vlaneseq
  %v5028 = vshrl.u32 %v5027, 7
  %v5029 = vsub.s32 %v5026, %v5028
  %v5030 = vrot.slane %v4973, %v5029
  %vm5031 = vcmask 195712
  %v5032 = vsel %vm5031, %v5030, %v5025
  %v5033 = vadd.s32 %v5014, 4294967272
  %v5034 = vlaneseq
  %v5035 = vshrl.u32 %v5034, 7
  %v5036 = vsub.s32 %v5033, %v5035
  %v5037 = vrot.slane %v4976, %v5036
  %vm5038 = vcmask 261312
  %v5039 = vsel %vm5038, %v5037, %v5032
  %v5040 = vadd.s32 %v5014, 4294967264
  %v5041 = vlaneseq
  %v5042 = vshrl.u32 %v5041, 7
  %v5043 = vsub.s32 %v5040, %v5042
  %v5044 = vrot.slane %v4979, %v5043
  %vm5045 = vcmask 326912
  %v5046 = vsel %vm5045, %v5044, %v5039
  %v5047 = vadd.s32 %v5014, 4294967256
  %v5048 = vlaneseq
  %v5049 = vshrl.u32 %v5048, 7
  %v5050 = vsub.s32 %v5047, %v5049
  %v5051 = vrot.slane %v4982, %v5050
  %vm5052 = vcmask 392512
  %v5053 = vsel %vm5052, %v5051, %v5046
  %v5054 = vadd.s32 %v5014, 4294967248
  %v5055 = vlaneseq
  %v5056 = vshrl.u32 %v5055, 7
  %v5057 = vsub.s32 %v5054, %v5056
  %v5058 = vrot.slane %v4985, %v5057
  %vm5059 = vcmask 458112
  %v5060 = vsel %vm5059, %v5058, %v5053
  %v5061 = vadd.s32 %v5014, 4294967240
  %v5062 = vlaneseq
  %v5063 = vshrl.u32 %v5062, 7
  %v5064 = vsub.s32 %v5061, %v5063
  %v5065 = vrot.slane %v4988, %v5064
  %vm5066 = vcmask 523712
  %v5067 = vsel %vm5066, %v5065, %v5060
  %v5068 = vadd.s32 %v5014, 4294967232
  %v5069 = vlaneseq
  %v5070 = vshrl.u32 %v5069, 7
  %v5071 = vsub.s32 %v5068, %v5070
  %v5072 = vrot.slane %v4991, %v5071
  %vm5073 = vcmask 589312
  %v5074 = vsel %vm5073, %v5072, %v5067
  %v5075 = vadd.s32 %v5014, 4294967224
  %v5076 = vlaneseq
  %v5077 = vshrl.u32 %v5076, 7
  %v5078 = vsub.s32 %v5075, %v5077
  %v5079 = vrot.slane %v4994, %v5078
  %vm5080 = vcmask 654912
  %v5081 = vsel %vm5080, %v5079, %v5074
  %v5082 = vadd.s32 %v5014, 4294967216
  %v5083 = vlaneseq
  %v5084 = vshrl.u32 %v5083, 7
  %v5085 = vsub.s32 %v5082, %v5084
  %v5086 = vrot.slane %v4997, %v5085
  %vm5087 = vcmask 720512
  %v5088 = vsel %vm5087, %v5086, %v5081
  %v5089 = vadd.s32 %v5014, 4294967208
  %v5090 = vlaneseq
  %v5091 = vshrl.u32 %v5090, 7
  %v5092 = vsub.s32 %v5089, %v5091
  %v5093 = vrot.slane %v5000, %v5092
  %vm5094 = vcmask 786112
  %v5095 = vsel %vm5094, %v5093, %v5088
  %v5096 = vadd.s32 %v5014, 4294967200
  %v5097 = vlaneseq
  %v5098 = vshrl.u32 %v5097, 7
  %v5099 = vsub.s32 %v5096, %v5098
  %v5100 = vrot.slane %v5003, %v5099
  %vm5101 = vcmask 851712
  %v5102 = vsel %vm5101, %v5100, %v5095
  %v5103 = vadd.s32 %v5014, 4294967192
  %v5104 = vlaneseq
  %v5105 = vshrl.u32 %v5104, 7
  %v5106 = vsub.s32 %v5103, %v5105
  %v5107 = vrot.slane %v5006, %v5106
  %vm5108 = vcmask 917312
  %v5109 = vsel %vm5108, %v5107, %v5102
  %v5110 = vadd.s32 %v5014, 4294967184
  %v5111 = vlaneseq
  %v5112 = vshrl.u32 %v5111, 7
  %v5113 = vsub.s32 %v5110, %v5112
  %v5114 = vrot.slane %v5009, %v5113
  %vm5115 = vcmask 982912
  %v5116 = vsel %vm5115, %v5114, %v5109
  %v5117 = vadd.s32 %v5014, 4294967176
  %v5118 = vlaneseq
  %v5119 = vshrl.u32 %v5118, 7
  %v5120 = vsub.s32 %v5117, %v5119
  %v5121 = vrot.slane %v5012, %v5120
  %vm5122 = vcmask 1048512
  %v5123 = vsel %vm5122, %v5121, %v5116
  %v5125 = vunpack.c.l.s4 1966171168
  %v5126 = vunpack.c.0.s8 %v5125
  %v5127 = vlaneseq
  %v5128 = vshrl.u32 %v5127, 7
  %v5129 = vsub.s32 %v5126, %v5128
  %v5130 = vrot.slane %v5123, %v5129
  %v5132 = vunpack.c.l.s4 1966171168
  %v5133 = vunpack.c.0.s8 %v5132
  %v5134 = vlaneseq
  %v5135 = vshrl.u32 %v5134, 7
  %v5136 = vsub.s32 %v5133, %v5135
  %v5137 = vrot.slane %v5130, %v5136
  %v5139 = vadd.f32 %v3603, %v5137
  %5140 = vst [vmem:[#allocation2] sm:$0x1] %v5139
  // Predicated region
  $region18: #{rotate_score.1} parent=0 // pred_check
    %p5141 = pneg %p14
  $region19: #{rotate_score.1} parent=0 // pred_check_branch
    %5143 = sbr.rel (%p5141) target = $region21
  $region20: #{rotate_score.1} parent=0 // pred_region
    %v5144 = vld [vmem:[#allocation2] sm:$0x1]
    %v5145 = vsub.f32 0.0, %v5144
    %5146 = vst [vmem:[%s3] sm:$0x1] %v5145
  $region21: #{rotate_score.1} parent=0 // pred_fallthru
    _
  // Predicated region
  $region22: #{rotate_score.1} parent=0 // pred_check
    _
  $region23: #{rotate_score.1} parent=0 // pred_check_branch
    %5148 = sbr.rel (0) target = $region25
  $region24: #{rotate_score.1} parent=0 // pred_region
    _
  $region25: #{rotate_score.1} parent=0 // pred_fallthru
    _
  // Predicated region
  $region26: #{rotate_score.1} parent=0 // pred_check
    _
  $region27: #{rotate_score.1} parent=0 // pred_check_branch
    %5150 = sbr.rel (0) target = $region29
  $region28: #{rotate_score.1} parent=0 // pred_region
    _
  $region29: #{rotate_score.1} parent=0 // pred_fallthru
    _

</llo_original>
